<compile_context>
chip_gen: v7x
topology: tpu7x:2x2x1
jax: 0.10.0
libtpu: 0.0.40
codegen_flags: <defaults>
</compile_context>

<pallas_src>
import functools

import numpy as np

import jax
import jax.numpy as jnp
from jax.experimental import pallas as pl
from jax.experimental.pallas import tpu as pltpu

EPS = 1e-5  # nn.InstanceNorm2d default eps (affine=False, biased variance)


# ----------------------------------------------------------------------------
# In-kernel helpers
# ----------------------------------------------------------------------------
def _instance_norm_silu(y):
    """InstanceNorm (no affine) over the lane/spatial axis + SiLU.  y: (channels, positions)."""
    mean = jnp.mean(y, axis=1, keepdims=True)
    d = y - mean                                   # computed once, reused below
    var = jnp.mean(d * d, axis=1, keepdims=True)
    yn = d * jax.lax.rsqrt(var + EPS)
    return yn * jax.nn.sigmoid(yn)                 # SiLU


def _autoencoder_kernel(patches_ref, w_enc_ref, b_enc_ref, w_cat_ref, b_dec_ref,
                        scat_ref, o_ref):
    # patches_ref: (K_e=C_in*9, N*P_e)   encoder im2col, lanes = (sample, latent position)
    # w_enc_ref:   (C_lat, K_e)          flattened Conv2d weight
    # b_enc_ref:   (C_lat, 1)
    # w_cat_ref:   (C_out, 9*C_lat)      tap-stacked ConvTranspose2d weight, col = t*C_lat + c_in
    # b_dec_ref:   (C_out, 1)
    # scat_ref:    (P_e, 9*P_out) bf16   0/1 scatter, col = t*P_out + output position
    # o_ref:       (N, C_out, P_out)
    n_batch, _, p_out = o_ref.shape
    c_lat = w_enc_ref.shape[0]
    p_e = scat_ref.shape[0]
    n_taps = scat_ref.shape[1] // p_out

    # ---- Encoder: Conv2d(k=3, s=2, p=1) for the whole batch in ONE matmul ----
    y_e = jnp.dot(w_enc_ref[...], patches_ref[...],
                  preferred_element_type=jnp.float32) + b_enc_ref[...]    # (C_lat, N*P_e)

    # Per-sample InstanceNorm + SiLU (lane slices keep sample statistics separate),
    # restacked with batch on sublanes for the decoder matmuls.
    z_dec = jnp.concatenate(
        [_instance_norm_silu(y_e[:, n * p_e:(n + 1) * p_e]) for n in range(n_batch)],
        axis=0)                                                           # (N*C_lat, P_e)

    # ---- Decoder: ConvTranspose2d(k=3, s=2, p=1, op=1) as TWO matmuls ----
    # Stage A: scatter every latent position to its per-tap output position, all taps and
    # the whole batch at once (0/1 values -> exact in f32).
    s_wide = scat_ref[...].astype(jnp.float32)                            # (P_e, 9*P_out)
    zw = jnp.dot(z_dec, s_wide, preferred_element_type=jnp.float32)       # (N*C_lat, 9*P_out)

    # Relayout rows (n, c_in) x cols (t, po)  ->  rows (t, c_in) x cols (n, po).
    # All slice offsets are multiples of (8, 128): aligned vreg/VMEM copies only.
    z_big = jnp.concatenate(
        [jnp.concatenate(
            [zw[n * c_lat:(n + 1) * c_lat, t * p_out:(t + 1) * p_out]
             for n in range(n_batch)], axis=1)
         for t in range(n_taps)], axis=0)                                 # (9*C_lat, N*P_out)

    # Stage B: contract (taps x input channels) against tap-stacked weights in ONE matmul.
    y_d = jnp.dot(w_cat_ref[...], z_big,
                  preferred_element_type=jnp.float32) + b_dec_ref[...]    # (C_out, N*P_out)

    # Per-sample InstanceNorm + SiLU; each store is lane-dense (P_out = 2*128).
    for n in range(n_batch):
        o_ref[n] = _instance_norm_silu(y_d[:, n * p_out:(n + 1) * p_out])


def _fused_autoencoder(patches, w_enc, b_enc, w_cat, b_dec, scat, n_batch, c_out, p_out):
    return pl.pallas_call(
        _autoencoder_kernel,
        out_shape=jax.ShapeDtypeStruct((n_batch, c_out, p_out), jnp.float32),
        grid=(1,),
        in_specs=[
            pl.BlockSpec(patches.shape, lambda i: (0, 0)),
            pl.BlockSpec(w_enc.shape, lambda i: (0, 0)),
            pl.BlockSpec(b_enc.shape, lambda i: (0, 0)),
            pl.BlockSpec(w_cat.shape, lambda i: (0, 0)),
            pl.BlockSpec(b_dec.shape, lambda i: (0, 0)),
            pl.BlockSpec(scat.shape, lambda i: (0, 0)),
        ],
        out_specs=pl.BlockSpec((n_batch, c_out, p_out), lambda i: (0, 0, 0)),
        compiler_params=pltpu.CompilerParams(
            dimension_semantics=("arbitrary",)),
    )(patches, w_enc, b_enc, w_cat, b_dec, scat)


# ----------------------------------------------------------------------------
# Host-side glue (tiny, layout-only)
# ----------------------------------------------------------------------------
def _encoder_im2col(x, kh=3, kw=3, stride=2, pad=1):
    """x: (N, C, H, W) -> patches (N, C*kh*kw, Hout*Wout)."""
    n, c, h, w = x.shape
    xp = jnp.pad(x, ((0, 0), (0, 0), (pad, pad), (pad, pad)))
    h_out = (h + 2 * pad - kh) // stride + 1
    w_out = (w + 2 * pad - kw) // stride + 1
    cols = [xp[:, :, ky:ky + stride * h_out:stride, kx:kx + stride * w_out:stride]
            for ky in range(kh) for kx in range(kw)]
    patches = jnp.stack(cols, axis=2)                       # (N, C, kh*kw, Hout, Wout)
    patches = patches.reshape(n, c * kh * kw, h_out * w_out)
    return patches, h_out, w_out


@functools.lru_cache(maxsize=None)
def _dec_scatter_wide(h_in, w_in, stride, pad, kh, kw, h_out, w_out):
    """Tap-concatenated 0/1 scatter for the transposed conv.

    s[iy*w_in+ix, t*P_out + oy*w_out+ox] = 1  iff  oy = iy*stride - pad + ky and
    ox = ix*stride - pad + kx (t = ky*kw + kx) land inside the output; this is the exact
    ConvTranspose2d index map including padding / output_padding boundaries.
    """
    p_out = h_out * w_out
    s = np.zeros((h_in * w_in, kh * kw * p_out), np.float32)
    for ky in range(kh):
        for kx in range(kw):
            t = ky * kw + kx
            for iy in range(h_in):
                oy = iy * stride - pad + ky
                if not 0 <= oy < h_out:
                    continue
                for ix in range(w_in):
                    ox = ix * stride - pad + kx
                    if not 0 <= ox < w_out:
                        continue
                    s[iy * w_in + ix, t * p_out + oy * w_out + ox] = 1.0
    return s


def autoencoder_forward(x, params):
    enc_w, enc_b = params["enc_w"], params["enc_b"]
    dec_w, dec_b = params["dec_w"], params["dec_b"]
    n, c_in, h, w = x.shape
    c_lat = enc_w.shape[0]
    c_out = dec_w.shape[1]

    # Encoder im2col on the (tiny) input; batch + spatial concatenated on the lane axis.
    patches, h_lat, w_lat = _encoder_im2col(x, 3, 3, 2, 1)   # (N, C_in*9, P_e)
    p_e = h_lat * w_lat
    patches = patches.transpose(1, 0, 2).reshape(c_in * 9, n * p_e)   # (27, N*P_e)

    w_enc = enc_w.reshape(c_lat, c_in * 9)                   # (C_lat, 27), K = c*9 + ky*3 + kx
    b_enc_r = enc_b.reshape(c_lat, 1)

    # Tap-stacked ConvTranspose weights: (C_in, C_out, ky, kx) -> (C_out, ky, kx, C_in)
    # -> (C_out, 9*C_in) with column index t*C_in + c_in.
    w_cat = jnp.transpose(dec_w, (1, 2, 3, 0)).reshape(c_out, 9 * c_lat)
    b_dec_r = dec_b.reshape(c_out, 1)

    h_out, w_out = 2 * h_lat, 2 * w_lat                      # (h-1)*2 - 2 + 3 + 1 = 2h
    p_out = h_out * w_out
    # bf16 storage of an exact 0/1 constant -> halves the largest input DMA.
    scat = jnp.asarray(_dec_scatter_wide(h_lat, w_lat, 2, 1, 3, 3, h_out, w_out),
                       dtype=jnp.bfloat16)                   # (P_e, 9*P_out)

    y = _fused_autoencoder(patches, w_enc, b_enc_r, w_cat, b_dec_r, scat, n, c_out, p_out)
    # (N, C_out, H_out*W_out) -> NCHW is a pure reshape (row-major spatial), no transpose.
    return y.reshape(n, c_out, h_out, w_out)


# ----------------------------------------------------------------------------
# Pure-JAX/XLA reference of the same module (for a correctness cross-check).
# ----------------------------------------------------------------------------
def _reference_forward(x, params):
    enc_w, enc_b = params["enc_w"], params["enc_b"]
    dec_w, dec_b = params["dec_w"], params["dec_b"]

    def inorm_silu(t):
        mean = t.mean(axis=(2, 3), keepdims=True)
        var = ((t - mean) ** 2).mean(axis=(2, 3), keepdims=True)
        tn = (t - mean) * jax.lax.rsqrt(var + EPS)
        return tn * jax.nn.sigmoid(tn)

    dn = ("NCHW", "OIHW", "NCHW")
    z = jax.lax.conv_general_dilated(
        x, enc_w, window_strides=(2, 2), padding=((1, 1), (1, 1)),
        dimension_numbers=dn, precision=jax.lax.Precision.HIGHEST)
    z = inorm_silu(z + enc_b.reshape(1, -1, 1, 1))
    # ConvTranspose2d(k3,s2,p1,op1) == conv over lhs-dilated input with flipped/swapped kernel.
    w_eq = jnp.flip(dec_w, axis=(2, 3)).transpose(1, 0, 2, 3)   # (C_out, C_in, 3, 3)
    y = jax.lax.conv_general_dilated(
        z, w_eq, window_strides=(1, 1), padding=((1, 2), (1, 2)),
        lhs_dilation=(2, 2), dimension_numbers=dn,
        precision=jax.lax.Precision.HIGHEST)
    return inorm_silu(y + dec_b.reshape(1, -1, 1, 1))


def init_params(key, in_channels=3, out_channels=3, latent_dim=64):
    k1, k2, k3, k4 = jax.random.split(key, 4)
    # deterministic synthetic init (shapes match nn.Conv2d / nn.ConvTranspose2d)
    enc_w = jax.random.normal(k1, (latent_dim, in_channels, 3, 3), jnp.float32) * 0.1
    enc_b = jax.random.normal(k2, (latent_dim,), jnp.float32) * 0.1
    dec_w = jax.random.normal(k3, (latent_dim, out_channels, 3, 3), jnp.float32) * 0.1
    dec_b = jax.random.normal(k4, (out_channels,), jnp.float32) * 0.1
    return {"enc_w": enc_w, "enc_b": enc_b, "dec_w": dec_w, "dec_b": dec_b}


if __name__ == "__main__":
    key = jax.random.PRNGKey(0)
    pkey, xkey = jax.random.split(key)
    params = init_params(pkey, in_channels=3, out_channels=3, latent_dim=64)

    # NCHW input, matching PyTorch convention.
    x = jax.random.normal(xkey, (2, 3, 16, 16), jnp.float32)

    y = jax.block_until_ready(jax.jit(autoencoder_forward)(x, params))

    assert y.shape == (2, 3, 16, 16), y.shape
    assert bool(jnp.all(jnp.isfinite(y)))

    # Cross-check against the XLA reference (loose tol: tolerant of matmul precision modes).
    y_ref = jax.block_until_ready(jax.jit(_reference_forward)(x, params))
    max_err = float(jnp.max(jnp.abs(y - y_ref)))
    assert max_err < 5e-2, max_err

    print("KERNEL_OK")
</pallas_src>

<mosaic_0001>
module attributes {stable_mosaic.version = 11 : i64} {
  func.func @_autoencoder_kernel(%arg0: i32, %arg1: memref<27x128xf32, #tpu.memory_space<vmem>>, %arg2: memref<64x27xf32, #tpu.memory_space<vmem>>, %arg3: memref<64x1xf32, #tpu.memory_space<vmem>>, %arg4: memref<3x576xf32, #tpu.memory_space<vmem>>, %arg5: memref<3x1xf32, #tpu.memory_space<vmem>>, %arg6: memref<64x2304xbf16, #tpu.memory_space<vmem>>, %arg7: memref<2x3x256xf32, #tpu.memory_space<vmem>>) attributes {dimension_semantics = [#tpu.dimension_semantics<arbitrary>], iteration_bounds = array<i64: 1>, scalar_prefetch = 0 : i64, scratch_operands = 0 : i64, tpu.core_type = #tpu.core_type<tc>, window_params = [{pipeline_mode = #tpu.pipeline_mode<synchronous>, transform_indices = @transform_0, window_bounds = array<i64: 27, 128>}, {pipeline_mode = #tpu.pipeline_mode<synchronous>, transform_indices = @transform_1, window_bounds = array<i64: 64, 27>}, {pipeline_mode = #tpu.pipeline_mode<synchronous>, transform_indices = @transform_2, window_bounds = array<i64: 64, 1>}, {pipeline_mode = #tpu.pipeline_mode<synchronous>, transform_indices = @transform_3, window_bounds = array<i64: 3, 576>}, {pipeline_mode = #tpu.pipeline_mode<synchronous>, transform_indices = @transform_4, window_bounds = array<i64: 3, 1>}, {pipeline_mode = #tpu.pipeline_mode<synchronous>, transform_indices = @transform_5, window_bounds = array<i64: 64, 2304>}, {pipeline_mode = #tpu.pipeline_mode<synchronous>, transform_indices = @transform_6, window_bounds = array<i64: 2, 3, 256>}]} {
    %c0 = arith.constant 0 : index
    %c0_0 = arith.constant 0 : index
    %0 = vector.load %arg2[%c0, %c0_0] : memref<64x27xf32, #tpu.memory_space<vmem>>, vector<64x27xf32>
    %c0_1 = arith.constant 0 : index
    %c0_2 = arith.constant 0 : index
    %1 = vector.load %arg1[%c0_1, %c0_2] : memref<27x128xf32, #tpu.memory_space<vmem>>, vector<27x128xf32>
    %cst = arith.constant dense<0.000000e+00> : vector<64x128xf32>
    %2 = tpu.matmul %0, %1, %cst {dimension_numbers = #tpu.dot_dimension_numbers<[1], [0], [0], [1], [0, 0, 1, 1], [], []>} : vector<64x27xf32>, vector<27x128xf32>, vector<64x128xf32> -> vector<64x128xf32>
    %c0_3 = arith.constant 0 : index
    %c0_4 = arith.constant 0 : index
    %3 = vector.load %arg3[%c0_3, %c0_4] : memref<64x1xf32, #tpu.memory_space<vmem>>, vector<64x1xf32>
    %4 = vector.broadcast %3 : vector<64x1xf32> to vector<64x128xf32>
    %5 = arith.addf %2, %4 : vector<64x128xf32>
    %6 = vector.extract_strided_slice %5 {offsets = [0, 0], sizes = [64, 64], strides = [1, 1]} : vector<64x128xf32> to vector<64x64xf32>
    %cst_5 = arith.constant dense<0.000000e+00> : vector<64xf32>
    %7 = vector.multi_reduction <add>, %6, %cst_5 [1] : vector<64x64xf32> to vector<64xf32>
    %8 = vector.shape_cast %7 : vector<64xf32> to vector<64x1xf32>
    %cst_6 = arith.constant 6.400000e+01 : f32
    %9 = vector.broadcast %cst_6 : f32 to vector<64x1xf32>
    %10 = arith.divf %8, %9 : vector<64x1xf32>
    %11 = vector.broadcast %10 : vector<64x1xf32> to vector<64x64xf32>
    %12 = arith.subf %6, %11 : vector<64x64xf32>
    %13 = arith.mulf %12, %12 : vector<64x64xf32>
    %cst_7 = arith.constant dense<0.000000e+00> : vector<64xf32>
    %14 = vector.multi_reduction <add>, %13, %cst_7 [1] : vector<64x64xf32> to vector<64xf32>
    %15 = vector.shape_cast %14 : vector<64xf32> to vector<64x1xf32>
    %cst_8 = arith.constant 6.400000e+01 : f32
    %16 = vector.broadcast %cst_8 : f32 to vector<64x1xf32>
    %17 = arith.divf %15, %16 : vector<64x1xf32>
    %cst_9 = arith.constant 9.99999974E-6 : f32
    %18 = vector.broadcast %cst_9 : f32 to vector<64x1xf32>
    %19 = arith.addf %17, %18 : vector<64x1xf32>
    %20 = math.rsqrt %19 : vector<64x1xf32>
    %21 = vector.broadcast %20 : vector<64x1xf32> to vector<64x64xf32>
    %22 = arith.mulf %12, %21 : vector<64x64xf32>
    %23 = arith.negf %22 : vector<64x64xf32>
    %24 = math.exp %23 : vector<64x64xf32>
    %cst_10 = arith.constant 1.000000e+00 : f32
    %25 = vector.broadcast %cst_10 : f32 to vector<64x64xf32>
    %26 = arith.addf %25, %24 : vector<64x64xf32>
    %27 = arith.divf %25, %26 : vector<64x64xf32>
    %28 = arith.mulf %22, %27 : vector<64x64xf32>
    %29 = vector.extract_strided_slice %5 {offsets = [0, 64], sizes = [64, 64], strides = [1, 1]} : vector<64x128xf32> to vector<64x64xf32>
    %cst_11 = arith.constant dense<0.000000e+00> : vector<64xf32>
    %30 = vector.multi_reduction <add>, %29, %cst_11 [1] : vector<64x64xf32> to vector<64xf32>
    %31 = vector.shape_cast %30 : vector<64xf32> to vector<64x1xf32>
    %cst_12 = arith.constant 6.400000e+01 : f32
    %32 = vector.broadcast %cst_12 : f32 to vector<64x1xf32>
    %33 = arith.divf %31, %32 : vector<64x1xf32>
    %34 = vector.broadcast %33 : vector<64x1xf32> to vector<64x64xf32>
    %35 = arith.subf %29, %34 : vector<64x64xf32>
    %36 = arith.mulf %35, %35 : vector<64x64xf32>
    %cst_13 = arith.constant dense<0.000000e+00> : vector<64xf32>
    %37 = vector.multi_reduction <add>, %36, %cst_13 [1] : vector<64x64xf32> to vector<64xf32>
    %38 = vector.shape_cast %37 : vector<64xf32> to vector<64x1xf32>
    %cst_14 = arith.constant 6.400000e+01 : f32
    %39 = vector.broadcast %cst_14 : f32 to vector<64x1xf32>
    %40 = arith.divf %38, %39 : vector<64x1xf32>
    %cst_15 = arith.constant 9.99999974E-6 : f32
    %41 = vector.broadcast %cst_15 : f32 to vector<64x1xf32>
    %42 = arith.addf %40, %41 : vector<64x1xf32>
    %43 = math.rsqrt %42 : vector<64x1xf32>
    %44 = vector.broadcast %43 : vector<64x1xf32> to vector<64x64xf32>
    %45 = arith.mulf %35, %44 : vector<64x64xf32>
    %46 = arith.negf %45 : vector<64x64xf32>
    %47 = math.exp %46 : vector<64x64xf32>
    %cst_16 = arith.constant 1.000000e+00 : f32
    %48 = vector.broadcast %cst_16 : f32 to vector<64x64xf32>
    %49 = arith.addf %48, %47 : vector<64x64xf32>
    %50 = arith.divf %48, %49 : vector<64x64xf32>
    %51 = arith.mulf %45, %50 : vector<64x64xf32>
    %52 = tpu.concatenate %28, %51 in 0 : vector<64x64xf32>, vector<64x64xf32> -> vector<128x64xf32>
    %c0_17 = arith.constant 0 : index
    %c0_18 = arith.constant 0 : index
    %53 = vector.load %arg6[%c0_17, %c0_18] : memref<64x2304xbf16, #tpu.memory_space<vmem>>, vector<64x2304xbf16>
    %54 = arith.extf %53 : vector<64x2304xbf16> to vector<64x2304xf32>
    %cst_19 = arith.constant dense<0.000000e+00> : vector<128x2304xf32>
    %55 = tpu.matmul %52, %54, %cst_19 {dimension_numbers = #tpu.dot_dimension_numbers<[1], [0], [0], [1], [0, 0, 1, 1], [], []>} : vector<128x64xf32>, vector<64x2304xf32>, vector<128x2304xf32> -> vector<128x2304xf32>
    %56 = vector.extract_strided_slice %55 {offsets = [0, 0], sizes = [64, 256], strides = [1, 1]} : vector<128x2304xf32> to vector<64x256xf32>
    %57 = vector.extract_strided_slice %55 {offsets = [64, 0], sizes = [64, 256], strides = [1, 1]} : vector<128x2304xf32> to vector<64x256xf32>
    %58 = tpu.concatenate %56, %57 in 1 : vector<64x256xf32>, vector<64x256xf32> -> vector<64x512xf32>
    %59 = vector.extract_strided_slice %55 {offsets = [0, 256], sizes = [64, 256], strides = [1, 1]} : vector<128x2304xf32> to vector<64x256xf32>
    %60 = vector.extract_strided_slice %55 {offsets = [64, 256], sizes = [64, 256], strides = [1, 1]} : vector<128x2304xf32> to vector<64x256xf32>
    %61 = tpu.concatenate %59, %60 in 1 : vector<64x256xf32>, vector<64x256xf32> -> vector<64x512xf32>
    %62 = vector.extract_strided_slice %55 {offsets = [0, 512], sizes = [64, 256], strides = [1, 1]} : vector<128x2304xf32> to vector<64x256xf32>
    %63 = vector.extract_strided_slice %55 {offsets = [64, 512], sizes = [64, 256], strides = [1, 1]} : vector<128x2304xf32> to vector<64x256xf32>
    %64 = tpu.concatenate %62, %63 in 1 : vector<64x256xf32>, vector<64x256xf32> -> vector<64x512xf32>
    %65 = vector.extract_strided_slice %55 {offsets = [0, 768], sizes = [64, 256], strides = [1, 1]} : vector<128x2304xf32> to vector<64x256xf32>
    %66 = vector.extract_strided_slice %55 {offsets = [64, 768], sizes = [64, 256], strides = [1, 1]} : vector<128x2304xf32> to vector<64x256xf32>
    %67 = tpu.concatenate %65, %66 in 1 : vector<64x256xf32>, vector<64x256xf32> -> vector<64x512xf32>
    %68 = vector.extract_strided_slice %55 {offsets = [0, 1024], sizes = [64, 256], strides = [1, 1]} : vector<128x2304xf32> to vector<64x256xf32>
    %69 = vector.extract_strided_slice %55 {offsets = [64, 1024], sizes = [64, 256], strides = [1, 1]} : vector<128x2304xf32> to vector<64x256xf32>
    %70 = tpu.concatenate %68, %69 in 1 : vector<64x256xf32>, vector<64x256xf32> -> vector<64x512xf32>
    %71 = vector.extract_strided_slice %55 {offsets = [0, 1280], sizes = [64, 256], strides = [1, 1]} : vector<128x2304xf32> to vector<64x256xf32>
    %72 = vector.extract_strided_slice %55 {offsets = [64, 1280], sizes = [64, 256], strides = [1, 1]} : vector<128x2304xf32> to vector<64x256xf32>
    %73 = tpu.concatenate %71, %72 in 1 : vector<64x256xf32>, vector<64x256xf32> -> vector<64x512xf32>
    %74 = vector.extract_strided_slice %55 {offsets = [0, 1536], sizes = [64, 256], strides = [1, 1]} : vector<128x2304xf32> to vector<64x256xf32>
    %75 = vector.extract_strided_slice %55 {offsets = [64, 1536], sizes = [64, 256], strides = [1, 1]} : vector<128x2304xf32> to vector<64x256xf32>
    %76 = tpu.concatenate %74, %75 in 1 : vector<64x256xf32>, vector<64x256xf32> -> vector<64x512xf32>
    %77 = vector.extract_strided_slice %55 {offsets = [0, 1792], sizes = [64, 256], strides = [1, 1]} : vector<128x2304xf32> to vector<64x256xf32>
    %78 = vector.extract_strided_slice %55 {offsets = [64, 1792], sizes = [64, 256], strides = [1, 1]} : vector<128x2304xf32> to vector<64x256xf32>
    %79 = tpu.concatenate %77, %78 in 1 : vector<64x256xf32>, vector<64x256xf32> -> vector<64x512xf32>
    %80 = vector.extract_strided_slice %55 {offsets = [0, 2048], sizes = [64, 256], strides = [1, 1]} : vector<128x2304xf32> to vector<64x256xf32>
    %81 = vector.extract_strided_slice %55 {offsets = [64, 2048], sizes = [64, 256], strides = [1, 1]} : vector<128x2304xf32> to vector<64x256xf32>
    %82 = tpu.concatenate %80, %81 in 1 : vector<64x256xf32>, vector<64x256xf32> -> vector<64x512xf32>
    %83 = tpu.concatenate %58, %61, %64, %67, %70, %73, %76, %79, %82 in 0 : vector<64x512xf32>, vector<64x512xf32>, vector<64x512xf32>, vector<64x512xf32>, vector<64x512xf32>, vector<64x512xf32>, vector<64x512xf32>, vector<64x512xf32>, vector<64x512xf32> -> vector<576x512xf32>
    %c0_20 = arith.constant 0 : index
    %c0_21 = arith.constant 0 : index
    %84 = vector.load %arg4[%c0_20, %c0_21] : memref<3x576xf32, #tpu.memory_space<vmem>>, vector<3x576xf32>
    %cst_22 = arith.constant dense<0.000000e+00> : vector<3x512xf32>
    %85 = tpu.matmul %84, %83, %cst_22 {dimension_numbers = #tpu.dot_dimension_numbers<[1], [0], [0], [1], [0, 0, 1, 1], [], []>} : vector<3x576xf32>, vector<576x512xf32>, vector<3x512xf32> -> vector<3x512xf32>
    %c0_23 = arith.constant 0 : index
    %c0_24 = arith.constant 0 : index
    %86 = vector.load %arg5[%c0_23, %c0_24] : memref<3x1xf32, #tpu.memory_space<vmem>>, vector<3x1xf32>
    %87 = vector.broadcast %86 : vector<3x1xf32> to vector<3x512xf32>
    %88 = arith.addf %85, %87 : vector<3x512xf32>
    %89 = vector.extract_strided_slice %88 {offsets = [0, 0], sizes = [3, 256], strides = [1, 1]} : vector<3x512xf32> to vector<3x256xf32>
    %cst_25 = arith.constant dense<0.000000e+00> : vector<3xf32>
    %90 = vector.multi_reduction <add>, %89, %cst_25 [1] : vector<3x256xf32> to vector<3xf32>
    %91 = vector.shape_cast %90 : vector<3xf32> to vector<3x1xf32>
    %cst_26 = arith.constant 2.560000e+02 : f32
    %92 = vector.broadcast %cst_26 : f32 to vector<3x1xf32>
    %93 = arith.divf %91, %92 : vector<3x1xf32>
    %94 = vector.broadcast %93 : vector<3x1xf32> to vector<3x256xf32>
    %95 = arith.subf %89, %94 : vector<3x256xf32>
    %96 = arith.mulf %95, %95 : vector<3x256xf32>
    %cst_27 = arith.constant dense<0.000000e+00> : vector<3xf32>
    %97 = vector.multi_reduction <add>, %96, %cst_27 [1] : vector<3x256xf32> to vector<3xf32>
    %98 = vector.shape_cast %97 : vector<3xf32> to vector<3x1xf32>
    %cst_28 = arith.constant 2.560000e+02 : f32
    %99 = vector.broadcast %cst_28 : f32 to vector<3x1xf32>
    %100 = arith.divf %98, %99 : vector<3x1xf32>
    %cst_29 = arith.constant 9.99999974E-6 : f32
    %101 = vector.broadcast %cst_29 : f32 to vector<3x1xf32>
    %102 = arith.addf %100, %101 : vector<3x1xf32>
    %103 = math.rsqrt %102 : vector<3x1xf32>
    %104 = vector.broadcast %103 : vector<3x1xf32> to vector<3x256xf32>
    %105 = arith.mulf %95, %104 : vector<3x256xf32>
    %106 = arith.negf %105 : vector<3x256xf32>
    %107 = math.exp %106 : vector<3x256xf32>
    %cst_30 = arith.constant 1.000000e+00 : f32
    %108 = vector.broadcast %cst_30 : f32 to vector<3x256xf32>
    %109 = arith.addf %108, %107 : vector<3x256xf32>
    %110 = arith.divf %108, %109 : vector<3x256xf32>
    %111 = arith.mulf %105, %110 : vector<3x256xf32>
    %c0_31 = arith.constant 0 : index
    %c0_32 = arith.constant 0 : index
    %c0_33 = arith.constant 0 : index
    %112 = vector.load %arg7[%c0_31, %c0_32, %c0_33] : memref<2x3x256xf32, #tpu.memory_space<vmem>>, vector<1x3x256xf32>
    %113 = vector.shape_cast %112 : vector<1x3x256xf32> to vector<3x256xf32>
    %114 = vector.shape_cast %111 : vector<3x256xf32> to vector<1x3x256xf32>
    tpu.vector_store %arg7[%c0_31, %c0_32, %c0_33], %114 {strides = array<i32>} : memref<2x3x256xf32, #tpu.memory_space<vmem>>, vector<1x3x256xf32>,
    %115 = vector.extract_strided_slice %88 {offsets = [0, 256], sizes = [3, 256], strides = [1, 1]} : vector<3x512xf32> to vector<3x256xf32>
    %cst_34 = arith.constant dense<0.000000e+00> : vector<3xf32>
    %116 = vector.multi_reduction <add>, %115, %cst_34 [1] : vector<3x256xf32> to vector<3xf32>
    %117 = vector.shape_cast %116 : vector<3xf32> to vector<3x1xf32>
    %cst_35 = arith.constant 2.560000e+02 : f32
    %118 = vector.broadcast %cst_35 : f32 to vector<3x1xf32>
    %119 = arith.divf %117, %118 : vector<3x1xf32>
    %120 = vector.broadcast %119 : vector<3x1xf32> to vector<3x256xf32>
    %121 = arith.subf %115, %120 : vector<3x256xf32>
    %122 = arith.mulf %121, %121 : vector<3x256xf32>
    %cst_36 = arith.constant dense<0.000000e+00> : vector<3xf32>
    %123 = vector.multi_reduction <add>, %122, %cst_36 [1] : vector<3x256xf32> to vector<3xf32>
    %124 = vector.shape_cast %123 : vector<3xf32> to vector<3x1xf32>
    %cst_37 = arith.constant 2.560000e+02 : f32
    %125 = vector.broadcast %cst_37 : f32 to vector<3x1xf32>
    %126 = arith.divf %124, %125 : vector<3x1xf32>
    %cst_38 = arith.constant 9.99999974E-6 : f32
    %127 = vector.broadcast %cst_38 : f32 to vector<3x1xf32>
    %128 = arith.addf %126, %127 : vector<3x1xf32>
    %129 = math.rsqrt %128 : vector<3x1xf32>
    %130 = vector.broadcast %129 : vector<3x1xf32> to vector<3x256xf32>
    %131 = arith.mulf %121, %130 : vector<3x256xf32>
    %132 = arith.negf %131 : vector<3x256xf32>
    %133 = math.exp %132 : vector<3x256xf32>
    %cst_39 = arith.constant 1.000000e+00 : f32
    %134 = vector.broadcast %cst_39 : f32 to vector<3x256xf32>
    %135 = arith.addf %134, %133 : vector<3x256xf32>
    %136 = arith.divf %134, %135 : vector<3x256xf32>
    %137 = arith.mulf %131, %136 : vector<3x256xf32>
    %c1 = arith.constant 1 : index
    %c0_40 = arith.constant 0 : index
    %c0_41 = arith.constant 0 : index
    %138 = vector.load %arg7[%c1, %c0_40, %c0_41] : memref<2x3x256xf32, #tpu.memory_space<vmem>>, vector<1x3x256xf32>
    %139 = vector.shape_cast %138 : vector<1x3x256xf32> to vector<3x256xf32>
    %140 = vector.shape_cast %137 : vector<3x256xf32> to vector<1x3x256xf32>
    tpu.vector_store %arg7[%c1, %c0_40, %c0_41], %140 {strides = array<i32>} : memref<2x3x256xf32, #tpu.memory_space<vmem>>, vector<1x3x256xf32>,
    return
  }
  func.func @transform_0(%arg0: i32) -> (i32, i32) {
    %c0_i32 = arith.constant 0 : i32
    %c0_i32_0 = arith.constant 0 : i32
    %c0_i32_1 = arith.constant 0 : i32
    return %c0_i32, %c0_i32_0 : i32, i32
  }
  func.func @transform_1(%arg0: i32) -> (i32, i32) {
    %c0_i32 = arith.constant 0 : i32
    %c0_i32_0 = arith.constant 0 : i32
    %c0_i32_1 = arith.constant 0 : i32
    return %c0_i32, %c0_i32_0 : i32, i32
  }
  func.func @transform_2(%arg0: i32) -> (i32, i32) {
    %c0_i32 = arith.constant 0 : i32
    %c0_i32_0 = arith.constant 0 : i32
    %c0_i32_1 = arith.constant 0 : i32
    return %c0_i32, %c0_i32_0 : i32, i32
  }
  func.func @transform_3(%arg0: i32) -> (i32, i32) {
    %c0_i32 = arith.constant 0 : i32
    %c0_i32_0 = arith.constant 0 : i32
    %c0_i32_1 = arith.constant 0 : i32
    return %c0_i32, %c0_i32_0 : i32, i32
  }
  func.func @transform_4(%arg0: i32) -> (i32, i32) {
    %c0_i32 = arith.constant 0 : i32
    %c0_i32_0 = arith.constant 0 : i32
    %c0_i32_1 = arith.constant 0 : i32
    return %c0_i32, %c0_i32_0 : i32, i32
  }
  func.func @transform_5(%arg0: i32) -> (i32, i32) {
    %c0_i32 = arith.constant 0 : i32
    %c0_i32_0 = arith.constant 0 : i32
    %c0_i32_1 = arith.constant 0 : i32
    return %c0_i32, %c0_i32_0 : i32, i32
  }
  func.func @transform_6(%arg0: i32) -> (i32, i32, i32) {
    %c0_i32 = arith.constant 0 : i32
    %c0_i32_0 = arith.constant 0 : i32
    %c0_i32_1 = arith.constant 0 : i32
    %c0_i32_2 = arith.constant 0 : i32
    return %c0_i32, %c0_i32_0, %c0_i32_1 : i32, i32, i32
  }
}

</mosaic_0001>

<llo_original>
// kernel: autoencoder_forward.1
$region0: #{autoencoder_forward.1}
  #allocation0 [shape = 'u32[]', space=smem, size = 0x4, offset = 0x4, fixed_abs, tag = 'smem constant byte address 0x4 - core index']
  #allocation1 [shape = 'u32[144,128]{1,0:T(1,128)}', space=vmem, size = 0x12000, scoped, tag = 'internal scratch']
  %s0 = inlined_call_operand.vmem [shape: f32[27,128], index: 0, kind: input, shape index: {}]
  %s1 = inlined_call_operand.vmem [shape: f32[64,27], index: 1, kind: input, shape index: {}]
  %s2 = inlined_call_operand.vmem [shape: f32[64,1], index: 2, kind: input, shape index: {}]
  %s3 = inlined_call_operand.vmem [shape: f32[3,576], index: 3, kind: input, shape index: {}]
  %s4 = inlined_call_operand.vmem [shape: f32[3,1], index: 4, kind: input, shape index: {}]
  %s5 = inlined_call_operand.vmem [shape: bf16[64,2304], index: 5, kind: input, shape index: {}]
  %s6 = inlined_call_operand.vmem [shape: f32[2,3,256], index: 6, kind: output, shape index: {}]
  %s7 = sld [smem:[#allocation0]]
  $region34: #{autoencoder_forward.1} parent=0
    _
  %s9 = ssub.s32 1, %s7
  %s10 = scalar_select 0, %s9, %s7
  // Predicated region
  $region2: #{autoencoder_forward.1} parent=0 // pred_check
    _
  $region3: #{autoencoder_forward.1} parent=0 // pred_check_branch
    %12 = sbr.rel (0) target = $region5
  $region4: #{autoencoder_forward.1} parent=0 // pred_region
    _
  $region5: #{autoencoder_forward.1} parent=0 // pred_fallthru
    _
  // Predicated region
  $region6: #{autoencoder_forward.1} parent=0 // pred_check
    _
  $region7: #{autoencoder_forward.1} parent=0 // pred_check_branch
    %14 = sbr.rel (0) target = $region9
  $region8: #{autoencoder_forward.1} parent=0 // pred_region
    _
  $region9: #{autoencoder_forward.1} parent=0 // pred_fallthru
    _
  // Predicated region
  $region10: #{autoencoder_forward.1} parent=0 // pred_check
    _
  $region11: #{autoencoder_forward.1} parent=0 // pred_check_branch
    %16 = sbr.rel (0) target = $region13
  $region12: #{autoencoder_forward.1} parent=0 // pred_region
    _
  $region13: #{autoencoder_forward.1} parent=0 // pred_fallthru
    _
  // Predicated region
  $region14: #{autoencoder_forward.1} parent=0 // pred_check
    _
  $region15: #{autoencoder_forward.1} parent=0 // pred_check_branch
    %18 = sbr.rel (0) target = $region17
  $region16: #{autoencoder_forward.1} parent=0 // pred_region
    _
  $region17: #{autoencoder_forward.1} parent=0 // pred_fallthru
    _
  // Predicated region
  $region18: #{autoencoder_forward.1} parent=0 // pred_check
    _
  $region19: #{autoencoder_forward.1} parent=0 // pred_check_branch
    %20 = sbr.rel (0) target = $region21
  $region20: #{autoencoder_forward.1} parent=0 // pred_region
    _
  $region21: #{autoencoder_forward.1} parent=0 // pred_fallthru
    _
  // Predicated region
  $region22: #{autoencoder_forward.1} parent=0 // pred_check
    _
  $region23: #{autoencoder_forward.1} parent=0 // pred_check_branch
    %22 = sbr.rel (0) target = $region25
  $region24: #{autoencoder_forward.1} parent=0 // pred_region
    _
  $region25: #{autoencoder_forward.1} parent=0 // pred_fallthru
    _
  %v23 = vld [vmem:[%s1] sm:$0xff]
  %v24 = vld [vmem:[%s1 + $0x8] sm:$0xff]
  %v25 = vld [vmem:[%s1 + $0x10] sm:$0xff]
  %v26 = vld [vmem:[%s1 + $0x18] sm:$0xff]
  %v27 = vld [vmem:[%s1 + $0x20] sm:$0xff]
  %v28 = vld [vmem:[%s1 + $0x28] sm:$0xff]
  %v29 = vld [vmem:[%s1 + $0x30] sm:$0xff]
  %v30 = vld [vmem:[%s1 + $0x38] sm:$0xff]
  %v31 = vld [vmem:[%s0] sm:$0xff]
  %v32 = vld [vmem:[%s0 + $0x8] sm:$0xff]
  %v33 = vld [vmem:[%s0 + $0x10] sm:$0xff]
  %v34 = vld [vmem:[%s0 + $0x18] sm:$0x7]
  %v35 = vld [vmem:[%s2] sm:$0xff]
  %v36 = vld [vmem:[%s2 + $0x8] sm:$0xff]
  %v37 = vld [vmem:[%s2 + $0x10] sm:$0xff]
  %v38 = vld [vmem:[%s2 + $0x18] sm:$0xff]
  %v39 = vld [vmem:[%s2 + $0x20] sm:$0xff]
  %v40 = vld [vmem:[%s2 + $0x28] sm:$0xff]
  %v41 = vld [vmem:[%s2 + $0x30] sm:$0xff]
  %v42 = vld [vmem:[%s2 + $0x38] sm:$0xff]
  %44 = vset.pattern.permute.xlu0 0
  %45 = vperm.xlu0 %44, %v35
  %v46 = vpop.permute.xlu0 %45
  %49 = vset.pattern.permute.xlu0 0
  %50 = vperm.xlu0 %49, %v36
  %v51 = vpop.permute.xlu0 %50
  %54 = vset.pattern.permute.xlu0 0
  %55 = vperm.xlu0 %54, %v37
  %v56 = vpop.permute.xlu0 %55
  %59 = vset.pattern.permute.xlu0 0
  %60 = vperm.xlu0 %59, %v38
  %v61 = vpop.permute.xlu0 %60
  %64 = vset.pattern.permute.xlu0 0
  %65 = vperm.xlu0 %64, %v39
  %v66 = vpop.permute.xlu0 %65
  %69 = vset.pattern.permute.xlu0 0
  %70 = vperm.xlu0 %69, %v40
  %v71 = vpop.permute.xlu0 %70
  %74 = vset.pattern.permute.xlu0 0
  %75 = vperm.xlu0 %74, %v41
  %v76 = vpop.permute.xlu0 %75
  %79 = vset.pattern.permute.xlu0 0
  %80 = vperm.xlu0 %79, %v42
  %v81 = vpop.permute.xlu0 %80
  %vm83 = vcmask 220160
  %v85 = vsel %vm83, %v23, 0
  %v88 = vsel %vm83, %v24, 0
  %v91 = vsel %vm83, %v25, 0
  %v94 = vsel %vm83, %v26, 0
  %v97 = vsel %vm83, %v27, 0
  %v100 = vsel %vm83, %v28, 0
  %v103 = vsel %vm83, %v29, 0
  %v106 = vsel %vm83, %v30, 0
  %vm108 = vcmask 1042432
  %v110 = vsel %vm108, %v34, 0
  %112 = vmatprep.subr.mxu0 0.0
  %113 = vmatpush1.msra.mxu0 %v31
  %114 = vmatprep.subr.mxu0 0.0
  %115 = vmatpush1.msra.mxu0 %v32
  %116 = vmatprep.subr.mxu0 0.0
  %117 = vmatpush1.msra.mxu0 %v33
  %118 = vmatprep.subr.mxu0 0.0
  %119 = vmatpush1.msra.mxu0 %v110
  %120 = vmatprep.subr.mxu0 0.0
  %121 = vmatpush1.msra.mxu0 0.0
  %122 = vmatprep.subr.mxu0 0.0
  %123 = vmatpush1.msra.mxu0 0.0
  %124 = vmatprep.subr.mxu0 0.0
  %125 = vmatpush1.msra.mxu0 0.0
  %126 = vmatprep.subr.mxu0 0.0
  %127 = vmatpush1.msra.mxu0 0.0
  %128 = vmatprep.subr.mxu0 0.0
  %129 = vmatpush1.msra.mxu0 0.0
  %130 = vmatprep.subr.mxu0 0.0
  %131 = vmatpush1.msra.mxu0 0.0
  %132 = vmatprep.subr.mxu0 0.0
  %133 = vmatpush1.msra.mxu0 0.0
  %134 = vmatprep.subr.mxu0 0.0
  %135 = vmatpush1.msra.mxu0 0.0
  %136 = vmatprep.subr.mxu0 0.0
  %137 = vmatpush1.msra.mxu0 0.0
  %138 = vmatprep.subr.mxu0 0.0
  %139 = vmatpush1.msra.mxu0 0.0
  %140 = vmatprep.subr.mxu0 0.0
  %141 = vmatpush1.msra.mxu0 0.0
  %142 = vmatprep.subr.mxu0 0.0
  %143 = vmatpush1.msra.mxu0 0.0
  %144 = vmatprep.subr.mxu0 0.0
  %145 = vmatpush1.msra.mxu0 0.0
  %146 = vmatprep.subr.mxu0 0.0
  %147 = vmatpush1.msra.mxu0 0.0
  %148 = vmatprep.subr.mxu0 0.0
  %149 = vmatpush1.msra.mxu0 0.0
  %150 = vmatprep.subr.mxu0 0.0
  %151 = vmatpush1.msra.mxu0 0.0
  %152 = vmatprep.subr.mxu0 0.0
  %153 = vmatpush1.msra.mxu0 0.0
  %154 = vmatprep.subr.mxu0 0.0
  %155 = vmatpush1.msra.mxu0 0.0
  %156 = vmatprep.subr.mxu0 0.0
  %157 = vmatpush1.msra.mxu0 0.0
  %158 = vmatprep.subr.mxu0 0.0
  %159 = vmatpush1.msra.mxu0 0.0
  %160 = vmatprep.subr.mxu0 0.0
  %161 = vmatpush1.msra.mxu0 0.0
  %162 = vmatprep.subr.mxu0 0.0
  %163 = vmatpush1.msra.mxu0 0.0
  %164 = vmatprep.subr.mxu0 0.0
  %165 = vmatpush1.msra.mxu0 0.0
  %166 = vmatprep.subr.mxu0 0.0
  %167 = vmatpush1.msra.mxu0 0.0
  %168 = vmatprep.subr.mxu0 0.0
  %169 = vmatpush1.msra.mxu0 0.0
  %170 = vmatprep.subr.mxu0 0.0
  %171 = vmatpush1.msra.mxu0 0.0
  %172 = vmatprep.subr.mxu0 0.0
  %173 = vmatpush1.msra.mxu0 0.0
  %174 = vmatprep.subr.mxu0 0.0
  %175 = vmatpush1.msra.mxu0 0.0
  %176 = vmatprep.mubr.f32.mxu0 0.0
  %177 = vmatmul.mubr.f32.gmra.mrb[0].mxu0 %v85
  %v178 = vpop.f32.mrb[0].mxu0
  %v179 = vadd.f32 %v46, %v178
  %v180 = vpop.f32.mrb[0].mxu0
  %181 = vmatprep.mubr.f32.mxu0 0.0
  %182 = vmatmul.mubr.f32.gmra.mrb[0].mxu0 %v88
  %v183 = vpop.f32.mrb[0].mxu0
  %v184 = vadd.f32 %v51, %v183
  %v185 = vpop.f32.mrb[0].mxu0
  %186 = vmatprep.mubr.f32.mxu0 0.0
  %187 = vmatmul.mubr.f32.gmra.mrb[0].mxu0 %v91
  %v188 = vpop.f32.mrb[0].mxu0
  %v189 = vadd.f32 %v56, %v188
  %v190 = vpop.f32.mrb[0].mxu0
  %191 = vmatprep.mubr.f32.mxu0 0.0
  %192 = vmatmul.mubr.f32.gmra.mrb[0].mxu0 %v94
  %v193 = vpop.f32.mrb[0].mxu0
  %v194 = vadd.f32 %v61, %v193
  %v195 = vpop.f32.mrb[0].mxu0
  %196 = vmatprep.mubr.f32.mxu0 0.0
  %197 = vmatmul.mubr.f32.gmra.mrb[0].mxu0 %v97
  %v198 = vpop.f32.mrb[0].mxu0
  %v199 = vadd.f32 %v66, %v198
  %v200 = vpop.f32.mrb[0].mxu0
  %201 = vmatprep.mubr.f32.mxu0 0.0
  %202 = vmatmul.mubr.f32.gmra.mrb[0].mxu0 %v100
  %v203 = vpop.f32.mrb[0].mxu0
  %v204 = vadd.f32 %v71, %v203
  %v205 = vpop.f32.mrb[0].mxu0
  %206 = vmatprep.mubr.f32.mxu0 0.0
  %207 = vmatmul.mubr.f32.gmra.mrb[0].mxu0 %v103
  %v208 = vpop.f32.mrb[0].mxu0
  %v209 = vadd.f32 %v76, %v208
  %v210 = vpop.f32.mrb[0].mxu0
  %211 = vmatprep.mubr.f32.mxu0 0.0
  %212 = vmatmul.mubr.f32.gmra.mrb[0].mxu0 %v106
  %v213 = vpop.f32.mrb[0].mxu0
  %v214 = vadd.f32 %v81, %v213
  %v215 = vpop.f32.mrb[0].mxu0
  %216 = vdwg.mxu0
  %vm217 = vcmask 523264
  %v218 = vsel %vm217, %v179, 0.0
  %219 = vadd.xlane.f32.xlu0 %v218
  %v220 = vpop.xlane.xlu0 %219
  %v221 = vsel %vm217, %v184, 0.0
  %222 = vadd.xlane.f32.xlu0 %v221
  %v223 = vpop.xlane.xlu0 %222
  %v224 = vsel %vm217, %v189, 0.0
  %225 = vadd.xlane.f32.xlu0 %v224
  %v226 = vpop.xlane.xlu0 %225
  %v227 = vsel %vm217, %v194, 0.0
  %228 = vadd.xlane.f32.xlu0 %v227
  %v229 = vpop.xlane.xlu0 %228
  %v230 = vsel %vm217, %v199, 0.0
  %231 = vadd.xlane.f32.xlu0 %v230
  %v232 = vpop.xlane.xlu0 %231
  %v233 = vsel %vm217, %v204, 0.0
  %234 = vadd.xlane.f32.xlu0 %v233
  %v235 = vpop.xlane.xlu0 %234
  %v236 = vsel %vm217, %v209, 0.0
  %237 = vadd.xlane.f32.xlu0 %v236
  %v238 = vpop.xlane.xlu0 %237
  %v239 = vsel %vm217, %v214, 0.0
  %240 = vadd.xlane.f32.xlu0 %v239
  %v241 = vpop.xlane.xlu0 %240
  %v242 = vrcp.pop 64.0
  %v243 = vmul.f32 %v220, %v242
  %v244 = vmul.f32 %v223, %v242
  %v245 = vmul.f32 %v226, %v242
  %v246 = vmul.f32 %v229, %v242
  %v247 = vmul.f32 %v232, %v242
  %v248 = vmul.f32 %v235, %v242
  %v249 = vmul.f32 %v238, %v242
  %v250 = vmul.f32 %v241, %v242
  %v251 = vsub.f32 %v179, %v243
  %v252 = vsub.f32 %v184, %v244
  %v253 = vsub.f32 %v189, %v245
  %v254 = vsub.f32 %v194, %v246
  %v255 = vsub.f32 %v199, %v247
  %v256 = vsub.f32 %v204, %v248
  %v257 = vsub.f32 %v209, %v249
  %v258 = vsub.f32 %v214, %v250
  %v259 = vmul.f32 %v251, %v251
  %v260 = vmul.f32 %v252, %v252
  %v261 = vmul.f32 %v253, %v253
  %v262 = vmul.f32 %v254, %v254
  %v263 = vmul.f32 %v255, %v255
  %v264 = vmul.f32 %v256, %v256
  %v265 = vmul.f32 %v257, %v257
  %v266 = vmul.f32 %v258, %v258
  %v267 = vsel %vm217, %v259, 0.0
  %268 = vadd.xlane.f32.xlu0 %v267
  %v269 = vpop.xlane.xlu0 %268
  %v270 = vsel %vm217, %v260, 0.0
  %271 = vadd.xlane.f32.xlu0 %v270
  %v272 = vpop.xlane.xlu0 %271
  %v273 = vsel %vm217, %v261, 0.0
  %274 = vadd.xlane.f32.xlu0 %v273
  %v275 = vpop.xlane.xlu0 %274
  %v276 = vsel %vm217, %v262, 0.0
  %277 = vadd.xlane.f32.xlu0 %v276
  %v278 = vpop.xlane.xlu0 %277
  %v279 = vsel %vm217, %v263, 0.0
  %280 = vadd.xlane.f32.xlu0 %v279
  %v281 = vpop.xlane.xlu0 %280
  %v282 = vsel %vm217, %v264, 0.0
  %283 = vadd.xlane.f32.xlu0 %v282
  %v284 = vpop.xlane.xlu0 %283
  %v285 = vsel %vm217, %v265, 0.0
  %286 = vadd.xlane.f32.xlu0 %v285
  %v287 = vpop.xlane.xlu0 %286
  %v288 = vsel %vm217, %v266, 0.0
  %289 = vadd.xlane.f32.xlu0 %v288
  %v290 = vpop.xlane.xlu0 %289
  %v291 = vmul.f32 %v269, %v242
  %v292 = vmul.f32 %v272, %v242
  %v293 = vmul.f32 %v275, %v242
  %v294 = vmul.f32 %v278, %v242
  %v295 = vmul.f32 %v281, %v242
  %v296 = vmul.f32 %v284, %v242
  %v297 = vmul.f32 %v287, %v242
  %v298 = vmul.f32 %v290, %v242
  %v299 = vadd.f32 %v291, 1e-05
  %v300 = vadd.f32 %v292, 1e-05
  %v301 = vadd.f32 %v293, 1e-05
  %v302 = vadd.f32 %v294, 1e-05
  %v303 = vadd.f32 %v295, 1e-05
  %v304 = vadd.f32 %v296, 1e-05
  %v305 = vadd.f32 %v297, 1e-05
  %v306 = vadd.f32 %v298, 1e-05
  %v307 = vrsqrt.pop %v299
  %v308 = vrsqrt.pop %v300
  %v309 = vrsqrt.pop %v301
  %v310 = vrsqrt.pop %v302
  %v311 = vrsqrt.pop %v303
  %v312 = vrsqrt.pop %v304
  %v313 = vrsqrt.pop %v305
  %v314 = vrsqrt.pop %v306
  %v315 = vmul.f32 %v251, %v307
  %v316 = vmul.f32 %v252, %v308
  %v317 = vmul.f32 %v253, %v309
  %v318 = vmul.f32 %v254, %v310
  %v319 = vmul.f32 %v255, %v311
  %v320 = vmul.f32 %v256, %v312
  %v321 = vmul.f32 %v257, %v313
  %v322 = vmul.f32 %v258, %v314
  %v323 = vxor.u32 %v315, 2147483648
  %v324 = vxor.u32 %v316, 2147483648
  %v325 = vxor.u32 %v317, 2147483648
  %v326 = vxor.u32 %v318, 2147483648
  %v327 = vxor.u32 %v319, 2147483648
  %v328 = vxor.u32 %v320, 2147483648
  %v329 = vxor.u32 %v321, 2147483648
  %v330 = vxor.u32 %v322, 2147483648
  %v331 = vmul.f32 %v323, 1.442695
  %v332 = vpow.pop %v331
  %v333 = vmul.f32 %v324, 1.442695
  %v334 = vpow.pop %v333
  %v335 = vmul.f32 %v325, 1.442695
  %v336 = vpow.pop %v335
  %v337 = vmul.f32 %v326, 1.442695
  %v338 = vpow.pop %v337
  %v339 = vmul.f32 %v327, 1.442695
  %v340 = vpow.pop %v339
  %v341 = vmul.f32 %v328, 1.442695
  %v342 = vpow.pop %v341
  %v343 = vmul.f32 %v329, 1.442695
  %v344 = vpow.pop %v343
  %v345 = vmul.f32 %v330, 1.442695
  %v346 = vpow.pop %v345
  %v347 = vadd.f32 %v332, 1.0
  %v348 = vadd.f32 %v334, 1.0
  %v349 = vadd.f32 %v336, 1.0
  %v350 = vadd.f32 %v338, 1.0
  %v351 = vadd.f32 %v340, 1.0
  %v352 = vadd.f32 %v342, 1.0
  %v353 = vadd.f32 %v344, 1.0
  %v354 = vadd.f32 %v346, 1.0
  %v355 = vrcp.pop %v347
  %v356 = vmul.f32 1.0, %v355
  %v357 = vrcp.pop %v348
  %v358 = vmul.f32 1.0, %v357
  %v359 = vrcp.pop %v349
  %v360 = vmul.f32 1.0, %v359
  %v361 = vrcp.pop %v350
  %v362 = vmul.f32 1.0, %v361
  %v363 = vrcp.pop %v351
  %v364 = vmul.f32 1.0, %v363
  %v365 = vrcp.pop %v352
  %v366 = vmul.f32 1.0, %v365
  %v367 = vrcp.pop %v353
  %v368 = vmul.f32 1.0, %v367
  %v369 = vrcp.pop %v354
  %v370 = vmul.f32 1.0, %v369
  %v371 = vmul.f32 %v315, %v356
  %v372 = vmul.f32 %v316, %v358
  %v373 = vmul.f32 %v317, %v360
  %v374 = vmul.f32 %v318, %v362
  %v375 = vmul.f32 %v319, %v364
  %v376 = vmul.f32 %v320, %v366
  %v377 = vmul.f32 %v321, %v368
  %v378 = vmul.f32 %v322, %v370
  %387 = vrot.lane.b32.xlu0 %v179, 64
  %v388 = vpop.permute.xlu0 %387
  %389 = vrot.lane.b32.xlu0 %v184, 64
  %v390 = vpop.permute.xlu0 %389
  %391 = vrot.lane.b32.xlu0 %v189, 64
  %v392 = vpop.permute.xlu0 %391
  %393 = vrot.lane.b32.xlu0 %v194, 64
  %v394 = vpop.permute.xlu0 %393
  %395 = vrot.lane.b32.xlu0 %v199, 64
  %v396 = vpop.permute.xlu0 %395
  %397 = vrot.lane.b32.xlu0 %v204, 64
  %v398 = vpop.permute.xlu0 %397
  %399 = vrot.lane.b32.xlu0 %v209, 64
  %v400 = vpop.permute.xlu0 %399
  %401 = vrot.lane.b32.xlu0 %v214, 64
  %v402 = vpop.permute.xlu0 %401
  %v411 = vsel %vm217, %v388, 0.0
  %412 = vadd.xlane.f32.xlu0 %v411
  %v413 = vpop.xlane.xlu0 %412
  %v414 = vsel %vm217, %v390, 0.0
  %415 = vadd.xlane.f32.xlu0 %v414
  %v416 = vpop.xlane.xlu0 %415
  %v417 = vsel %vm217, %v392, 0.0
  %418 = vadd.xlane.f32.xlu0 %v417
  %v419 = vpop.xlane.xlu0 %418
  %v420 = vsel %vm217, %v394, 0.0
  %421 = vadd.xlane.f32.xlu0 %v420
  %v422 = vpop.xlane.xlu0 %421
  %v423 = vsel %vm217, %v396, 0.0
  %424 = vadd.xlane.f32.xlu0 %v423
  %v425 = vpop.xlane.xlu0 %424
  %v426 = vsel %vm217, %v398, 0.0
  %427 = vadd.xlane.f32.xlu0 %v426
  %v428 = vpop.xlane.xlu0 %427
  %v429 = vsel %vm217, %v400, 0.0
  %430 = vadd.xlane.f32.xlu0 %v429
  %v431 = vpop.xlane.xlu0 %430
  %v432 = vsel %vm217, %v402, 0.0
  %433 = vadd.xlane.f32.xlu0 %v432
  %v434 = vpop.xlane.xlu0 %433
  %v435 = vmul.f32 %v413, %v242
  %v436 = vmul.f32 %v416, %v242
  %v437 = vmul.f32 %v419, %v242
  %v438 = vmul.f32 %v422, %v242
  %v439 = vmul.f32 %v425, %v242
  %v440 = vmul.f32 %v428, %v242
  %v441 = vmul.f32 %v431, %v242
  %v442 = vmul.f32 %v434, %v242
  %v443 = vsub.f32 %v179, %v435
  %v444 = vsub.f32 %v184, %v436
  %v445 = vsub.f32 %v189, %v437
  %v446 = vsub.f32 %v194, %v438
  %v447 = vsub.f32 %v199, %v439
  %v448 = vsub.f32 %v204, %v440
  %v449 = vsub.f32 %v209, %v441
  %v450 = vsub.f32 %v214, %v442
  %v451 = vmul.f32 %v443, %v443
  %v452 = vmul.f32 %v444, %v444
  %v453 = vmul.f32 %v445, %v445
  %v454 = vmul.f32 %v446, %v446
  %v455 = vmul.f32 %v447, %v447
  %v456 = vmul.f32 %v448, %v448
  %v457 = vmul.f32 %v449, %v449
  %v458 = vmul.f32 %v450, %v450
  %467 = vrot.lane.b32.xlu0 %v451, 64
  %v468 = vpop.permute.xlu0 %467
  %469 = vrot.lane.b32.xlu0 %v452, 64
  %v470 = vpop.permute.xlu0 %469
  %471 = vrot.lane.b32.xlu0 %v453, 64
  %v472 = vpop.permute.xlu0 %471
  %473 = vrot.lane.b32.xlu0 %v454, 64
  %v474 = vpop.permute.xlu0 %473
  %475 = vrot.lane.b32.xlu0 %v455, 64
  %v476 = vpop.permute.xlu0 %475
  %477 = vrot.lane.b32.xlu0 %v456, 64
  %v478 = vpop.permute.xlu0 %477
  %479 = vrot.lane.b32.xlu0 %v457, 64
  %v480 = vpop.permute.xlu0 %479
  %481 = vrot.lane.b32.xlu0 %v458, 64
  %v482 = vpop.permute.xlu0 %481
  %v491 = vsel %vm217, %v468, 0.0
  %492 = vadd.xlane.f32.xlu0 %v491
  %v493 = vpop.xlane.xlu0 %492
  %v494 = vsel %vm217, %v470, 0.0
  %495 = vadd.xlane.f32.xlu0 %v494
  %v496 = vpop.xlane.xlu0 %495
  %v497 = vsel %vm217, %v472, 0.0
  %498 = vadd.xlane.f32.xlu0 %v497
  %v499 = vpop.xlane.xlu0 %498
  %v500 = vsel %vm217, %v474, 0.0
  %501 = vadd.xlane.f32.xlu0 %v500
  %v502 = vpop.xlane.xlu0 %501
  %v503 = vsel %vm217, %v476, 0.0
  %504 = vadd.xlane.f32.xlu0 %v503
  %v505 = vpop.xlane.xlu0 %504
  %v506 = vsel %vm217, %v478, 0.0
  %507 = vadd.xlane.f32.xlu0 %v506
  %v508 = vpop.xlane.xlu0 %507
  %v509 = vsel %vm217, %v480, 0.0
  %510 = vadd.xlane.f32.xlu0 %v509
  %v511 = vpop.xlane.xlu0 %510
  %v512 = vsel %vm217, %v482, 0.0
  %513 = vadd.xlane.f32.xlu0 %v512
  %v514 = vpop.xlane.xlu0 %513
  %v515 = vmul.f32 %v493, %v242
  %v516 = vmul.f32 %v496, %v242
  %v517 = vmul.f32 %v499, %v242
  %v518 = vmul.f32 %v502, %v242
  %v519 = vmul.f32 %v505, %v242
  %v520 = vmul.f32 %v508, %v242
  %v521 = vmul.f32 %v511, %v242
  %v522 = vmul.f32 %v514, %v242
  %v523 = vadd.f32 %v515, 1e-05
  %v524 = vadd.f32 %v516, 1e-05
  %v525 = vadd.f32 %v517, 1e-05
  %v526 = vadd.f32 %v518, 1e-05
  %v527 = vadd.f32 %v519, 1e-05
  %v528 = vadd.f32 %v520, 1e-05
  %v529 = vadd.f32 %v521, 1e-05
  %v530 = vadd.f32 %v522, 1e-05
  %v531 = vrsqrt.pop %v523
  %v532 = vrsqrt.pop %v524
  %v533 = vrsqrt.pop %v525
  %v534 = vrsqrt.pop %v526
  %v535 = vrsqrt.pop %v527
  %v536 = vrsqrt.pop %v528
  %v537 = vrsqrt.pop %v529
  %v538 = vrsqrt.pop %v530
  %v539 = vmul.f32 %v443, %v531
  %v540 = vmul.f32 %v444, %v532
  %v541 = vmul.f32 %v445, %v533
  %v542 = vmul.f32 %v446, %v534
  %v543 = vmul.f32 %v447, %v535
  %v544 = vmul.f32 %v448, %v536
  %v545 = vmul.f32 %v449, %v537
  %v546 = vmul.f32 %v450, %v538
  %v547 = vxor.u32 %v539, 2147483648
  %v548 = vxor.u32 %v540, 2147483648
  %v549 = vxor.u32 %v541, 2147483648
  %v550 = vxor.u32 %v542, 2147483648
  %v551 = vxor.u32 %v543, 2147483648
  %v552 = vxor.u32 %v544, 2147483648
  %v553 = vxor.u32 %v545, 2147483648
  %v554 = vxor.u32 %v546, 2147483648
  %v555 = vmul.f32 %v547, 1.442695
  %v556 = vpow.pop %v555
  %v557 = vmul.f32 %v548, 1.442695
  %v558 = vpow.pop %v557
  %v559 = vmul.f32 %v549, 1.442695
  %v560 = vpow.pop %v559
  %v561 = vmul.f32 %v550, 1.442695
  %v562 = vpow.pop %v561
  %v563 = vmul.f32 %v551, 1.442695
  %v564 = vpow.pop %v563
  %v565 = vmul.f32 %v552, 1.442695
  %v566 = vpow.pop %v565
  %v567 = vmul.f32 %v553, 1.442695
  %v568 = vpow.pop %v567
  %v569 = vmul.f32 %v554, 1.442695
  %v570 = vpow.pop %v569
  %v571 = vadd.f32 %v556, 1.0
  %v572 = vadd.f32 %v558, 1.0
  %v573 = vadd.f32 %v560, 1.0
  %v574 = vadd.f32 %v562, 1.0
  %v575 = vadd.f32 %v564, 1.0
  %v576 = vadd.f32 %v566, 1.0
  %v577 = vadd.f32 %v568, 1.0
  %v578 = vadd.f32 %v570, 1.0
  %v579 = vrcp.pop %v571
  %v580 = vmul.f32 1.0, %v579
  %v581 = vrcp.pop %v572
  %v582 = vmul.f32 1.0, %v581
  %v583 = vrcp.pop %v573
  %v584 = vmul.f32 1.0, %v583
  %v585 = vrcp.pop %v574
  %v586 = vmul.f32 1.0, %v585
  %v587 = vrcp.pop %v575
  %v588 = vmul.f32 1.0, %v587
  %v589 = vrcp.pop %v576
  %v590 = vmul.f32 1.0, %v589
  %v591 = vrcp.pop %v577
  %v592 = vmul.f32 1.0, %v591
  %v593 = vrcp.pop %v578
  %v594 = vmul.f32 1.0, %v593
  %v595 = vmul.f32 %v539, %v580
  %v596 = vmul.f32 %v540, %v582
  %v597 = vmul.f32 %v541, %v584
  %v598 = vmul.f32 %v542, %v586
  %v599 = vmul.f32 %v543, %v588
  %v600 = vmul.f32 %v544, %v590
  %v601 = vmul.f32 %v545, %v592
  %v602 = vmul.f32 %v546, %v594
  %611 = vrot.lane.b32.xlu0 %v595, 64
  %v612 = vpop.permute.xlu0 %611
  %613 = vrot.lane.b32.xlu0 %v596, 64
  %v614 = vpop.permute.xlu0 %613
  %615 = vrot.lane.b32.xlu0 %v597, 64
  %v616 = vpop.permute.xlu0 %615
  %617 = vrot.lane.b32.xlu0 %v598, 64
  %v618 = vpop.permute.xlu0 %617
  %619 = vrot.lane.b32.xlu0 %v599, 64
  %v620 = vpop.permute.xlu0 %619
  %621 = vrot.lane.b32.xlu0 %v600, 64
  %v622 = vpop.permute.xlu0 %621
  %623 = vrot.lane.b32.xlu0 %v601, 64
  %v624 = vpop.permute.xlu0 %623
  %625 = vrot.lane.b32.xlu0 %v602, 64
  %v626 = vpop.permute.xlu0 %625
  %v627 = vld [vmem:[%s5] sm:$0xff]
  %v628 = vld [vmem:[%s5 + $0x8] sm:$0xff]
  %v629 = vld [vmem:[%s5 + $0x10] sm:$0xff]
  %v630 = vld [vmem:[%s5 + $0x18] sm:$0xff]
  %v631 = vld [vmem:[%s5 + $0x20] sm:$0xff]
  %v632 = vld [vmem:[%s5 + $0x28] sm:$0xff]
  %v633 = vld [vmem:[%s5 + $0x30] sm:$0xff]
  %v634 = vld [vmem:[%s5 + $0x38] sm:$0xff]
  %v635 = vld [vmem:[%s5 + $0x40] sm:$0xff]
  %v636 = vld [vmem:[%s5 + $0x48] sm:$0xff]
  %v637 = vld [vmem:[%s5 + $0x50] sm:$0xff]
  %v638 = vld [vmem:[%s5 + $0x58] sm:$0xff]
  %v639 = vld [vmem:[%s5 + $0x60] sm:$0xff]
  %v640 = vld [vmem:[%s5 + $0x68] sm:$0xff]
  %v641 = vld [vmem:[%s5 + $0x70] sm:$0xff]
  %v642 = vld [vmem:[%s5 + $0x78] sm:$0xff]
  %v643 = vld [vmem:[%s5 + $0x80] sm:$0xff]
  %v644 = vld [vmem:[%s5 + $0x88] sm:$0xff]
  %v645 = vld [vmem:[%s5 + $0x90] sm:$0xff]
  %v646 = vld [vmem:[%s5 + $0x98] sm:$0xff]
  %v647 = vld [vmem:[%s5 + $0xa0] sm:$0xff]
  %v648 = vld [vmem:[%s5 + $0xa8] sm:$0xff]
  %v649 = vld [vmem:[%s5 + $0xb0] sm:$0xff]
  %v650 = vld [vmem:[%s5 + $0xb8] sm:$0xff]
  %v651 = vld [vmem:[%s5 + $0xc0] sm:$0xff]
  %v652 = vld [vmem:[%s5 + $0xc8] sm:$0xff]
  %v653 = vld [vmem:[%s5 + $0xd0] sm:$0xff]
  %v654 = vld [vmem:[%s5 + $0xd8] sm:$0xff]
  %v655 = vld [vmem:[%s5 + $0xe0] sm:$0xff]
  %v656 = vld [vmem:[%s5 + $0xe8] sm:$0xff]
  %v657 = vld [vmem:[%s5 + $0xf0] sm:$0xff]
  %v658 = vld [vmem:[%s5 + $0xf8] sm:$0xff]
  %v659 = vld [vmem:[%s5 + $0x100] sm:$0xff]
  %v660 = vld [vmem:[%s5 + $0x108] sm:$0xff]
  %v661 = vld [vmem:[%s5 + $0x110] sm:$0xff]
  %v662 = vld [vmem:[%s5 + $0x118] sm:$0xff]
  %v663 = vld [vmem:[%s5 + $0x120] sm:$0xff]
  %v664 = vld [vmem:[%s5 + $0x128] sm:$0xff]
  %v665 = vld [vmem:[%s5 + $0x130] sm:$0xff]
  %v666 = vld [vmem:[%s5 + $0x138] sm:$0xff]
  %v667 = vld [vmem:[%s5 + $0x140] sm:$0xff]
  %v668 = vld [vmem:[%s5 + $0x148] sm:$0xff]
  %v669 = vld [vmem:[%s5 + $0x150] sm:$0xff]
  %v670 = vld [vmem:[%s5 + $0x158] sm:$0xff]
  %v671 = vld [vmem:[%s5 + $0x160] sm:$0xff]
  %v672 = vld [vmem:[%s5 + $0x168] sm:$0xff]
  %v673 = vld [vmem:[%s5 + $0x170] sm:$0xff]
  %v674 = vld [vmem:[%s5 + $0x178] sm:$0xff]
  %v675 = vld [vmem:[%s5 + $0x180] sm:$0xff]
  %v676 = vld [vmem:[%s5 + $0x188] sm:$0xff]
  %v677 = vld [vmem:[%s5 + $0x190] sm:$0xff]
  %v678 = vld [vmem:[%s5 + $0x198] sm:$0xff]
  %v679 = vld [vmem:[%s5 + $0x1a0] sm:$0xff]
  %v680 = vld [vmem:[%s5 + $0x1a8] sm:$0xff]
  %v681 = vld [vmem:[%s5 + $0x1b0] sm:$0xff]
  %v682 = vld [vmem:[%s5 + $0x1b8] sm:$0xff]
  %v683 = vld [vmem:[%s5 + $0x1c0] sm:$0xff]
  %v684 = vld [vmem:[%s5 + $0x1c8] sm:$0xff]
  %v685 = vld [vmem:[%s5 + $0x1d0] sm:$0xff]
  %v686 = vld [vmem:[%s5 + $0x1d8] sm:$0xff]
  %v687 = vld [vmem:[%s5 + $0x1e0] sm:$0xff]
  %v688 = vld [vmem:[%s5 + $0x1e8] sm:$0xff]
  %v689 = vld [vmem:[%s5 + $0x1f0] sm:$0xff]
  %v690 = vld [vmem:[%s5 + $0x1f8] sm:$0xff]
  %v691 = vld [vmem:[%s5 + $0x200] sm:$0xff]
  %v692 = vld [vmem:[%s5 + $0x208] sm:$0xff]
  %v693 = vld [vmem:[%s5 + $0x210] sm:$0xff]
  %v694 = vld [vmem:[%s5 + $0x218] sm:$0xff]
  %v695 = vld [vmem:[%s5 + $0x220] sm:$0xff]
  %v696 = vld [vmem:[%s5 + $0x228] sm:$0xff]
  %v697 = vld [vmem:[%s5 + $0x230] sm:$0xff]
  %v698 = vld [vmem:[%s5 + $0x238] sm:$0xff]
  %v699 = vunpack.c.l.bf16 %v627
  %v700 = vunpack.c.h.bf16 %v627
  %v701 = vunpack.c.l.bf16 %v628
  %v702 = vunpack.c.h.bf16 %v628
  %v703 = vunpack.c.l.bf16 %v629
  %v704 = vunpack.c.h.bf16 %v629
  %v705 = vunpack.c.l.bf16 %v630
  %v706 = vunpack.c.h.bf16 %v630
  %v707 = vunpack.c.l.bf16 %v631
  %v708 = vunpack.c.h.bf16 %v631
  %v709 = vunpack.c.l.bf16 %v632
  %v710 = vunpack.c.h.bf16 %v632
  %v711 = vunpack.c.l.bf16 %v633
  %v712 = vunpack.c.h.bf16 %v633
  %v713 = vunpack.c.l.bf16 %v634
  %v714 = vunpack.c.h.bf16 %v634
  %v715 = vunpack.c.l.bf16 %v635
  %v716 = vunpack.c.h.bf16 %v635
  %v717 = vunpack.c.l.bf16 %v636
  %v718 = vunpack.c.h.bf16 %v636
  %v719 = vunpack.c.l.bf16 %v637
  %v720 = vunpack.c.h.bf16 %v637
  %v721 = vunpack.c.l.bf16 %v638
  %v722 = vunpack.c.h.bf16 %v638
  %v723 = vunpack.c.l.bf16 %v639
  %v724 = vunpack.c.h.bf16 %v639
  %v725 = vunpack.c.l.bf16 %v640
  %v726 = vunpack.c.h.bf16 %v640
  %v727 = vunpack.c.l.bf16 %v641
  %v728 = vunpack.c.h.bf16 %v641
  %v729 = vunpack.c.l.bf16 %v642
  %v730 = vunpack.c.h.bf16 %v642
  %v731 = vunpack.c.l.bf16 %v643
  %v732 = vunpack.c.h.bf16 %v643
  %v733 = vunpack.c.l.bf16 %v644
  %v734 = vunpack.c.h.bf16 %v644
  %v735 = vunpack.c.l.bf16 %v645
  %v736 = vunpack.c.h.bf16 %v645
  %v737 = vunpack.c.l.bf16 %v646
  %v738 = vunpack.c.h.bf16 %v646
  %v739 = vunpack.c.l.bf16 %v647
  %v740 = vunpack.c.h.bf16 %v647
  %v741 = vunpack.c.l.bf16 %v648
  %v742 = vunpack.c.h.bf16 %v648
  %v743 = vunpack.c.l.bf16 %v649
  %v744 = vunpack.c.h.bf16 %v649
  %v745 = vunpack.c.l.bf16 %v650
  %v746 = vunpack.c.h.bf16 %v650
  %v747 = vunpack.c.l.bf16 %v651
  %v748 = vunpack.c.h.bf16 %v651
  %v749 = vunpack.c.l.bf16 %v652
  %v750 = vunpack.c.h.bf16 %v652
  %v751 = vunpack.c.l.bf16 %v653
  %v752 = vunpack.c.h.bf16 %v653
  %v753 = vunpack.c.l.bf16 %v654
  %v754 = vunpack.c.h.bf16 %v654
  %v755 = vunpack.c.l.bf16 %v655
  %v756 = vunpack.c.h.bf16 %v655
  %v757 = vunpack.c.l.bf16 %v656
  %v758 = vunpack.c.h.bf16 %v656
  %v759 = vunpack.c.l.bf16 %v657
  %v760 = vunpack.c.h.bf16 %v657
  %v761 = vunpack.c.l.bf16 %v658
  %v762 = vunpack.c.h.bf16 %v658
  %v763 = vunpack.c.l.bf16 %v659
  %v764 = vunpack.c.h.bf16 %v659
  %v765 = vunpack.c.l.bf16 %v660
  %v766 = vunpack.c.h.bf16 %v660
  %v767 = vunpack.c.l.bf16 %v661
  %v768 = vunpack.c.h.bf16 %v661
  %v769 = vunpack.c.l.bf16 %v662
  %v770 = vunpack.c.h.bf16 %v662
  %v771 = vunpack.c.l.bf16 %v663
  %v772 = vunpack.c.h.bf16 %v663
  %v773 = vunpack.c.l.bf16 %v664
  %v774 = vunpack.c.h.bf16 %v664
  %v775 = vunpack.c.l.bf16 %v665
  %v776 = vunpack.c.h.bf16 %v665
  %v777 = vunpack.c.l.bf16 %v666
  %v778 = vunpack.c.h.bf16 %v666
  %v779 = vunpack.c.l.bf16 %v667
  %v780 = vunpack.c.h.bf16 %v667
  %v781 = vunpack.c.l.bf16 %v668
  %v782 = vunpack.c.h.bf16 %v668
  %v783 = vunpack.c.l.bf16 %v669
  %v784 = vunpack.c.h.bf16 %v669
  %v785 = vunpack.c.l.bf16 %v670
  %v786 = vunpack.c.h.bf16 %v670
  %v787 = vunpack.c.l.bf16 %v671
  %v788 = vunpack.c.h.bf16 %v671
  %v789 = vunpack.c.l.bf16 %v672
  %v790 = vunpack.c.h.bf16 %v672
  %v791 = vunpack.c.l.bf16 %v673
  %v792 = vunpack.c.h.bf16 %v673
  %v793 = vunpack.c.l.bf16 %v674
  %v794 = vunpack.c.h.bf16 %v674
  %v795 = vunpack.c.l.bf16 %v675
  %v796 = vunpack.c.h.bf16 %v675
  %v797 = vunpack.c.l.bf16 %v676
  %v798 = vunpack.c.h.bf16 %v676
  %v799 = vunpack.c.l.bf16 %v677
  %v800 = vunpack.c.h.bf16 %v677
  %v801 = vunpack.c.l.bf16 %v678
  %v802 = vunpack.c.h.bf16 %v678
  %v803 = vunpack.c.l.bf16 %v679
  %v804 = vunpack.c.h.bf16 %v679
  %v805 = vunpack.c.l.bf16 %v680
  %v806 = vunpack.c.h.bf16 %v680
  %v807 = vunpack.c.l.bf16 %v681
  %v808 = vunpack.c.h.bf16 %v681
  %v809 = vunpack.c.l.bf16 %v682
  %v810 = vunpack.c.h.bf16 %v682
  %v811 = vunpack.c.l.bf16 %v683
  %v812 = vunpack.c.h.bf16 %v683
  %v813 = vunpack.c.l.bf16 %v684
  %v814 = vunpack.c.h.bf16 %v684
  %v815 = vunpack.c.l.bf16 %v685
  %v816 = vunpack.c.h.bf16 %v685
  %v817 = vunpack.c.l.bf16 %v686
  %v818 = vunpack.c.h.bf16 %v686
  %v819 = vunpack.c.l.bf16 %v687
  %v820 = vunpack.c.h.bf16 %v687
  %v821 = vunpack.c.l.bf16 %v688
  %v822 = vunpack.c.h.bf16 %v688
  %v823 = vunpack.c.l.bf16 %v689
  %v824 = vunpack.c.h.bf16 %v689
  %v825 = vunpack.c.l.bf16 %v690
  %v826 = vunpack.c.h.bf16 %v690
  %v827 = vunpack.c.l.bf16 %v691
  %v828 = vunpack.c.h.bf16 %v691
  %v829 = vunpack.c.l.bf16 %v692
  %v830 = vunpack.c.h.bf16 %v692
  %v831 = vunpack.c.l.bf16 %v693
  %v832 = vunpack.c.h.bf16 %v693
  %v833 = vunpack.c.l.bf16 %v694
  %v834 = vunpack.c.h.bf16 %v694
  %v835 = vunpack.c.l.bf16 %v695
  %v836 = vunpack.c.h.bf16 %v695
  %v837 = vunpack.c.l.bf16 %v696
  %v838 = vunpack.c.h.bf16 %v696
  %v839 = vunpack.c.l.bf16 %v697
  %v840 = vunpack.c.h.bf16 %v697
  %v841 = vunpack.c.l.bf16 %v698
  %v842 = vunpack.c.h.bf16 %v698
  %v844 = vsel %vm217, %v371, 0
  %v847 = vsel %vm217, %v372, 0
  %v850 = vsel %vm217, %v373, 0
  %v853 = vsel %vm217, %v374, 0
  %v856 = vsel %vm217, %v375, 0
  %v859 = vsel %vm217, %v376, 0
  %v862 = vsel %vm217, %v377, 0
  %v865 = vsel %vm217, %v378, 0
  %v867 = vsel %vm217, %v612, 0
  %v869 = vsel %vm217, %v614, 0
  %v871 = vsel %vm217, %v616, 0
  %v873 = vsel %vm217, %v618, 0
  %v875 = vsel %vm217, %v620, 0
  %v877 = vsel %vm217, %v622, 0
  %v879 = vsel %vm217, %v624, 0
  %v881 = vsel %vm217, %v626, 0
  %883 = vmatprep.subr.mxu0 %v700
  %884 = vmatpush1.msra.mxu0 %v699
  %885 = vmatprep.subr.mxu0 %v718
  %886 = vmatpush1.msra.mxu0 %v717
  %887 = vmatprep.subr.mxu0 %v736
  %888 = vmatpush1.msra.mxu0 %v735
  %889 = vmatprep.subr.mxu0 %v754
  %890 = vmatpush1.msra.mxu0 %v753
  %891 = vmatprep.subr.mxu0 %v772
  %892 = vmatpush1.msra.mxu0 %v771
  %893 = vmatprep.subr.mxu0 %v790
  %894 = vmatpush1.msra.mxu0 %v789
  %895 = vmatprep.subr.mxu0 %v808
  %896 = vmatpush1.msra.mxu0 %v807
  %897 = vmatprep.subr.mxu0 %v826
  %898 = vmatpush1.msra.mxu0 %v825
  %899 = vmatprep.subr.mxu0 0.0
  %900 = vmatpush1.msra.mxu0 0.0
  %901 = vmatprep.subr.mxu0 0.0
  %902 = vmatpush1.msra.mxu0 0.0
  %903 = vmatprep.subr.mxu0 0.0
  %904 = vmatpush1.msra.mxu0 0.0
  %905 = vmatprep.subr.mxu0 0.0
  %906 = vmatpush1.msra.mxu0 0.0
  %907 = vmatprep.subr.mxu0 0.0
  %908 = vmatpush1.msra.mxu0 0.0
  %909 = vmatprep.subr.mxu0 0.0
  %910 = vmatpush1.msra.mxu0 0.0
  %911 = vmatprep.subr.mxu0 0.0
  %912 = vmatpush1.msra.mxu0 0.0
  %913 = vmatprep.subr.mxu0 0.0
  %914 = vmatpush1.msra.mxu0 0.0
  %915 = vmatprep.subr.mxu0 0.0
  %916 = vmatpush1.msra.mxu0 0.0
  %917 = vmatprep.subr.mxu0 0.0
  %918 = vmatpush1.msra.mxu0 0.0
  %919 = vmatprep.subr.mxu0 0.0
  %920 = vmatpush1.msra.mxu0 0.0
  %921 = vmatprep.subr.mxu0 0.0
  %922 = vmatpush1.msra.mxu0 0.0
  %923 = vmatprep.subr.mxu0 0.0
  %924 = vmatpush1.msra.mxu0 0.0
  %925 = vmatprep.subr.mxu0 0.0
  %926 = vmatpush1.msra.mxu0 0.0
  %927 = vmatprep.subr.mxu0 0.0
  %928 = vmatpush1.msra.mxu0 0.0
  %929 = vmatprep.subr.mxu0 0.0
  %930 = vmatpush1.msra.mxu0 0.0
  %931 = vmatprep.subr.mxu0 0.0
  %932 = vmatpush1.msra.mxu0 0.0
  %933 = vmatprep.subr.mxu0 0.0
  %934 = vmatpush1.msra.mxu0 0.0
  %935 = vmatprep.subr.mxu0 0.0
  %936 = vmatpush1.msra.mxu0 0.0
  %937 = vmatprep.subr.mxu0 0.0
  %938 = vmatpush1.msra.mxu0 0.0
  %939 = vmatprep.subr.mxu0 0.0
  %940 = vmatpush1.msra.mxu0 0.0
  %941 = vmatprep.subr.mxu0 0.0
  %942 = vmatpush1.msra.mxu0 0.0
  %943 = vmatprep.subr.mxu0 0.0
  %944 = vmatpush1.msra.mxu0 0.0
  %945 = vmatprep.subr.mxu0 0.0
  %946 = vmatpush1.msra.mxu0 0.0
  %947 = vmatprep.mubr.f32.mxu0 0.0
  %948 = vmatmul.mubr.f32.gmra.mrb[0].mxu0 %v844
  %v949 = vpop.f32.mrb[0].mxu0
  %v950 = vadd.f32 0.0, %v949
  %v951 = vpop.f32.mrb[0].mxu0
  %v952 = vadd.f32 0.0, %v951
  %953 = vmatprep.mubr.f32.mxu0 0.0
  %954 = vmatmul.mubr.f32.gmra.mrb[0].mxu0 %v847
  %v955 = vpop.f32.mrb[0].mxu0
  %v956 = vadd.f32 0.0, %v955
  %v957 = vpop.f32.mrb[0].mxu0
  %v958 = vadd.f32 0.0, %v957
  %959 = vmatprep.mubr.f32.mxu0 0.0
  %960 = vmatmul.mubr.f32.gmra.mrb[0].mxu0 %v850
  %v961 = vpop.f32.mrb[0].mxu0
  %v962 = vadd.f32 0.0, %v961
  %v963 = vpop.f32.mrb[0].mxu0
  %v964 = vadd.f32 0.0, %v963
  %965 = vmatprep.mubr.f32.mxu0 0.0
  %966 = vmatmul.mubr.f32.gmra.mrb[0].mxu0 %v853
  %v967 = vpop.f32.mrb[0].mxu0
  %v968 = vadd.f32 0.0, %v967
  %v969 = vpop.f32.mrb[0].mxu0
  %v970 = vadd.f32 0.0, %v969
  %971 = vmatprep.mubr.f32.mxu0 0.0
  %972 = vmatmul.mubr.f32.gmra.mrb[0].mxu0 %v856
  %v973 = vpop.f32.mrb[0].mxu0
  %v974 = vadd.f32 0.0, %v973
  %v975 = vpop.f32.mrb[0].mxu0
  %v976 = vadd.f32 0.0, %v975
  %977 = vmatprep.mubr.f32.mxu0 0.0
  %978 = vmatmul.mubr.f32.gmra.mrb[0].mxu0 %v859
  %v979 = vpop.f32.mrb[0].mxu0
  %v980 = vadd.f32 0.0, %v979
  %v981 = vpop.f32.mrb[0].mxu0
  %v982 = vadd.f32 0.0, %v981
  %983 = vmatprep.mubr.f32.mxu0 0.0
  %984 = vmatmul.mubr.f32.gmra.mrb[0].mxu0 %v862
  %v985 = vpop.f32.mrb[0].mxu0
  %v986 = vadd.f32 0.0, %v985
  %v987 = vpop.f32.mrb[0].mxu0
  %v988 = vadd.f32 0.0, %v987
  %989 = vmatprep.mubr.f32.mxu0 0.0
  %990 = vmatmul.mubr.f32.gmra.mrb[0].mxu0 %v865
  %v991 = vpop.f32.mrb[0].mxu0
  %v992 = vadd.f32 0.0, %v991
  %v993 = vpop.f32.mrb[0].mxu0
  %v994 = vadd.f32 0.0, %v993
  %995 = vmatprep.mubr.f32.mxu0 0.0
  %996 = vmatmul.mubr.f32.gmra.mrb[0].mxu0 %v867
  %v997 = vpop.f32.mrb[0].mxu0
  %v998 = vadd.f32 0.0, %v997
  %v999 = vpop.f32.mrb[0].mxu0
  %v1000 = vadd.f32 0.0, %v999
  %1001 = vmatprep.mubr.f32.mxu0 0.0
  %1002 = vmatmul.mubr.f32.gmra.mrb[0].mxu0 %v869
  %v1003 = vpop.f32.mrb[0].mxu0
  %v1004 = vadd.f32 0.0, %v1003
  %v1005 = vpop.f32.mrb[0].mxu0
  %v1006 = vadd.f32 0.0, %v1005
  %1007 = vmatprep.mubr.f32.mxu0 0.0
  %1008 = vmatmul.mubr.f32.gmra.mrb[0].mxu0 %v871
  %v1009 = vpop.f32.mrb[0].mxu0
  %v1010 = vadd.f32 0.0, %v1009
  %v1011 = vpop.f32.mrb[0].mxu0
  %v1012 = vadd.f32 0.0, %v1011
  %1013 = vmatprep.mubr.f32.mxu0 0.0
  %1014 = vmatmul.mubr.f32.gmra.mrb[0].mxu0 %v873
  %v1015 = vpop.f32.mrb[0].mxu0
  %v1016 = vadd.f32 0.0, %v1015
  %v1017 = vpop.f32.mrb[0].mxu0
  %v1018 = vadd.f32 0.0, %v1017
  %1019 = vmatprep.mubr.f32.mxu0 0.0
  %1020 = vmatmul.mubr.f32.gmra.mrb[0].mxu0 %v875
  %v1021 = vpop.f32.mrb[0].mxu0
  %v1022 = vadd.f32 0.0, %v1021
  %v1023 = vpop.f32.mrb[0].mxu0
  %v1024 = vadd.f32 0.0, %v1023
  %1025 = vmatprep.mubr.f32.mxu0 0.0
  %1026 = vmatmul.mubr.f32.gmra.mrb[0].mxu0 %v877
  %v1027 = vpop.f32.mrb[0].mxu0
  %v1028 = vadd.f32 0.0, %v1027
  %v1029 = vpop.f32.mrb[0].mxu0
  %v1030 = vadd.f32 0.0, %v1029
  %1031 = vmatprep.mubr.f32.mxu0 0.0
  %1032 = vmatmul.mubr.f32.gmra.mrb[0].mxu0 %v879
  %v1033 = vpop.f32.mrb[0].mxu0
  %v1034 = vadd.f32 0.0, %v1033
  %v1035 = vpop.f32.mrb[0].mxu0
  %v1036 = vadd.f32 0.0, %v1035
  %1037 = vmatprep.mubr.f32.mxu0 0.0
  %1038 = vmatmul.mubr.f32.gmra.mrb[0].mxu0 %v881
  %v1039 = vpop.f32.mrb[0].mxu0
  %v1040 = vadd.f32 0.0, %v1039
  %v1041 = vpop.f32.mrb[0].mxu0
  %v1042 = vadd.f32 0.0, %v1041
  %1043 = vdwg.mxu0
  %1044 = vmatprep.subr.mxu0 %v702
  %1045 = vmatpush1.msra.mxu0 %v701
  %1046 = vmatprep.subr.mxu0 %v720
  %1047 = vmatpush1.msra.mxu0 %v719
  %1048 = vmatprep.subr.mxu0 %v738
  %1049 = vmatpush1.msra.mxu0 %v737
  %1050 = vmatprep.subr.mxu0 %v756
  %1051 = vmatpush1.msra.mxu0 %v755
  %1052 = vmatprep.subr.mxu0 %v774
  %1053 = vmatpush1.msra.mxu0 %v773
  %1054 = vmatprep.subr.mxu0 %v792
  %1055 = vmatpush1.msra.mxu0 %v791
  %1056 = vmatprep.subr.mxu0 %v810
  %1057 = vmatpush1.msra.mxu0 %v809
  %1058 = vmatprep.subr.mxu0 %v828
  %1059 = vmatpush1.msra.mxu0 %v827
  %1060 = vmatprep.subr.mxu0 0.0
  %1061 = vmatpush1.msra.mxu0 0.0
  %1062 = vmatprep.subr.mxu0 0.0
  %1063 = vmatpush1.msra.mxu0 0.0
  %1064 = vmatprep.subr.mxu0 0.0
  %1065 = vmatpush1.msra.mxu0 0.0
  %1066 = vmatprep.subr.mxu0 0.0
  %1067 = vmatpush1.msra.mxu0 0.0
  %1068 = vmatprep.subr.mxu0 0.0
  %1069 = vmatpush1.msra.mxu0 0.0
  %1070 = vmatprep.subr.mxu0 0.0
  %1071 = vmatpush1.msra.mxu0 0.0
  %1072 = vmatprep.subr.mxu0 0.0
  %1073 = vmatpush1.msra.mxu0 0.0
  %1074 = vmatprep.subr.mxu0 0.0
  %1075 = vmatpush1.msra.mxu0 0.0
  %1076 = vmatprep.subr.mxu0 0.0
  %1077 = vmatpush1.msra.mxu0 0.0
  %1078 = vmatprep.subr.mxu0 0.0
  %1079 = vmatpush1.msra.mxu0 0.0
  %1080 = vmatprep.subr.mxu0 0.0
  %1081 = vmatpush1.msra.mxu0 0.0
  %1082 = vmatprep.subr.mxu0 0.0
  %1083 = vmatpush1.msra.mxu0 0.0
  %1084 = vmatprep.subr.mxu0 0.0
  %1085 = vmatpush1.msra.mxu0 0.0
  %1086 = vmatprep.subr.mxu0 0.0
  %1087 = vmatpush1.msra.mxu0 0.0
  %1088 = vmatprep.subr.mxu0 0.0
  %1089 = vmatpush1.msra.mxu0 0.0
  %1090 = vmatprep.subr.mxu0 0.0
  %1091 = vmatpush1.msra.mxu0 0.0
  %1092 = vmatprep.subr.mxu0 0.0
  %1093 = vmatpush1.msra.mxu0 0.0
  %1094 = vmatprep.subr.mxu0 0.0
  %1095 = vmatpush1.msra.mxu0 0.0
  %1096 = vmatprep.subr.mxu0 0.0
  %1097 = vmatpush1.msra.mxu0 0.0
  %1098 = vmatprep.subr.mxu0 0.0
  %1099 = vmatpush1.msra.mxu0 0.0
  %1100 = vmatprep.subr.mxu0 0.0
  %1101 = vmatpush1.msra.mxu0 0.0
  %1102 = vmatprep.subr.mxu0 0.0
  %1103 = vmatpush1.msra.mxu0 0.0
  %1104 = vmatprep.subr.mxu0 0.0
  %1105 = vmatpush1.msra.mxu0 0.0
  %1106 = vmatprep.subr.mxu0 0.0
  %1107 = vmatpush1.msra.mxu0 0.0
  %1108 = vmatprep.mubr.f32.mxu0 0.0
  %1109 = vmatmul.mubr.f32.gmra.mrb[0].mxu0 %v844
  %v1110 = vpop.f32.mrb[0].mxu0
  %v1111 = vadd.f32 0.0, %v1110
  %v1112 = vpop.f32.mrb[0].mxu0
  %v1113 = vadd.f32 0.0, %v1112
  %1114 = vmatprep.mubr.f32.mxu0 0.0
  %1115 = vmatmul.mubr.f32.gmra.mrb[0].mxu0 %v847
  %v1116 = vpop.f32.mrb[0].mxu0
  %v1117 = vadd.f32 0.0, %v1116
  %v1118 = vpop.f32.mrb[0].mxu0
  %v1119 = vadd.f32 0.0, %v1118
  %1120 = vmatprep.mubr.f32.mxu0 0.0
  %1121 = vmatmul.mubr.f32.gmra.mrb[0].mxu0 %v850
  %v1122 = vpop.f32.mrb[0].mxu0
  %v1123 = vadd.f32 0.0, %v1122
  %v1124 = vpop.f32.mrb[0].mxu0
  %v1125 = vadd.f32 0.0, %v1124
  %1126 = vmatprep.mubr.f32.mxu0 0.0
  %1127 = vmatmul.mubr.f32.gmra.mrb[0].mxu0 %v853
  %v1128 = vpop.f32.mrb[0].mxu0
  %v1129 = vadd.f32 0.0, %v1128
  %v1130 = vpop.f32.mrb[0].mxu0
  %v1131 = vadd.f32 0.0, %v1130
  %1132 = vmatprep.mubr.f32.mxu0 0.0
  %1133 = vmatmul.mubr.f32.gmra.mrb[0].mxu0 %v856
  %v1134 = vpop.f32.mrb[0].mxu0
  %v1135 = vadd.f32 0.0, %v1134
  %v1136 = vpop.f32.mrb[0].mxu0
  %v1137 = vadd.f32 0.0, %v1136
  %1138 = vmatprep.mubr.f32.mxu0 0.0
  %1139 = vmatmul.mubr.f32.gmra.mrb[0].mxu0 %v859
  %v1140 = vpop.f32.mrb[0].mxu0
  %v1141 = vadd.f32 0.0, %v1140
  %v1142 = vpop.f32.mrb[0].mxu0
  %v1143 = vadd.f32 0.0, %v1142
  %1144 = vmatprep.mubr.f32.mxu0 0.0
  %1145 = vmatmul.mubr.f32.gmra.mrb[0].mxu0 %v862
  %v1146 = vpop.f32.mrb[0].mxu0
  %v1147 = vadd.f32 0.0, %v1146
  %v1148 = vpop.f32.mrb[0].mxu0
  %v1149 = vadd.f32 0.0, %v1148
  %1150 = vmatprep.mubr.f32.mxu0 0.0
  %1151 = vmatmul.mubr.f32.gmra.mrb[0].mxu0 %v865
  %v1152 = vpop.f32.mrb[0].mxu0
  %v1153 = vadd.f32 0.0, %v1152
  %v1154 = vpop.f32.mrb[0].mxu0
  %v1155 = vadd.f32 0.0, %v1154
  %1156 = vmatprep.mubr.f32.mxu0 0.0
  %1157 = vmatmul.mubr.f32.gmra.mrb[0].mxu0 %v867
  %v1158 = vpop.f32.mrb[0].mxu0
  %v1159 = vadd.f32 0.0, %v1158
  %v1160 = vpop.f32.mrb[0].mxu0
  %v1161 = vadd.f32 0.0, %v1160
  %1162 = vmatprep.mubr.f32.mxu0 0.0
  %1163 = vmatmul.mubr.f32.gmra.mrb[0].mxu0 %v869
  %v1164 = vpop.f32.mrb[0].mxu0
  %v1165 = vadd.f32 0.0, %v1164
  %v1166 = vpop.f32.mrb[0].mxu0
  %v1167 = vadd.f32 0.0, %v1166
  %1168 = vmatprep.mubr.f32.mxu0 0.0
  %1169 = vmatmul.mubr.f32.gmra.mrb[0].mxu0 %v871
  %v1170 = vpop.f32.mrb[0].mxu0
  %v1171 = vadd.f32 0.0, %v1170
  %v1172 = vpop.f32.mrb[0].mxu0
  %v1173 = vadd.f32 0.0, %v1172
  %1174 = vmatprep.mubr.f32.mxu0 0.0
  %1175 = vmatmul.mubr.f32.gmra.mrb[0].mxu0 %v873
  %v1176 = vpop.f32.mrb[0].mxu0
  %v1177 = vadd.f32 0.0, %v1176
  %v1178 = vpop.f32.mrb[0].mxu0
  %v1179 = vadd.f32 0.0, %v1178
  %1180 = vmatprep.mubr.f32.mxu0 0.0
  %1181 = vmatmul.mubr.f32.gmra.mrb[0].mxu0 %v875
  %v1182 = vpop.f32.mrb[0].mxu0
  %v1183 = vadd.f32 0.0, %v1182
  %v1184 = vpop.f32.mrb[0].mxu0
  %v1185 = vadd.f32 0.0, %v1184
  %1186 = vmatprep.mubr.f32.mxu0 0.0
  %1187 = vmatmul.mubr.f32.gmra.mrb[0].mxu0 %v877
  %v1188 = vpop.f32.mrb[0].mxu0
  %v1189 = vadd.f32 0.0, %v1188
  %v1190 = vpop.f32.mrb[0].mxu0
  %v1191 = vadd.f32 0.0, %v1190
  %1192 = vmatprep.mubr.f32.mxu0 0.0
  %1193 = vmatmul.mubr.f32.gmra.mrb[0].mxu0 %v879
  %v1194 = vpop.f32.mrb[0].mxu0
  %v1195 = vadd.f32 0.0, %v1194
  %v1196 = vpop.f32.mrb[0].mxu0
  %v1197 = vadd.f32 0.0, %v1196
  %1198 = vmatprep.mubr.f32.mxu0 0.0
  %1199 = vmatmul.mubr.f32.gmra.mrb[0].mxu0 %v881
  %v1200 = vpop.f32.mrb[0].mxu0
  %v1201 = vadd.f32 0.0, %v1200
  %v1202 = vpop.f32.mrb[0].mxu0
  %v1203 = vadd.f32 0.0, %v1202
  %1204 = vdwg.mxu0
  %1205 = vmatprep.subr.mxu0 %v704
  %1206 = vmatpush1.msra.mxu0 %v703
  %1207 = vmatprep.subr.mxu0 %v722
  %1208 = vmatpush1.msra.mxu0 %v721
  %1209 = vmatprep.subr.mxu0 %v740
  %1210 = vmatpush1.msra.mxu0 %v739
  %1211 = vmatprep.subr.mxu0 %v758
  %1212 = vmatpush1.msra.mxu0 %v757
  %1213 = vmatprep.subr.mxu0 %v776
  %1214 = vmatpush1.msra.mxu0 %v775
  %1215 = vmatprep.subr.mxu0 %v794
  %1216 = vmatpush1.msra.mxu0 %v793
  %1217 = vmatprep.subr.mxu0 %v812
  %1218 = vmatpush1.msra.mxu0 %v811
  %1219 = vmatprep.subr.mxu0 %v830
  %1220 = vmatpush1.msra.mxu0 %v829
  %1221 = vmatprep.subr.mxu0 0.0
  %1222 = vmatpush1.msra.mxu0 0.0
  %1223 = vmatprep.subr.mxu0 0.0
  %1224 = vmatpush1.msra.mxu0 0.0
  %1225 = vmatprep.subr.mxu0 0.0
  %1226 = vmatpush1.msra.mxu0 0.0
  %1227 = vmatprep.subr.mxu0 0.0
  %1228 = vmatpush1.msra.mxu0 0.0
  %1229 = vmatprep.subr.mxu0 0.0
  %1230 = vmatpush1.msra.mxu0 0.0
  %1231 = vmatprep.subr.mxu0 0.0
  %1232 = vmatpush1.msra.mxu0 0.0
  %1233 = vmatprep.subr.mxu0 0.0
  %1234 = vmatpush1.msra.mxu0 0.0
  %1235 = vmatprep.subr.mxu0 0.0
  %1236 = vmatpush1.msra.mxu0 0.0
  %1237 = vmatprep.subr.mxu0 0.0
  %1238 = vmatpush1.msra.mxu0 0.0
  %1239 = vmatprep.subr.mxu0 0.0
  %1240 = vmatpush1.msra.mxu0 0.0
  %1241 = vmatprep.subr.mxu0 0.0
  %1242 = vmatpush1.msra.mxu0 0.0
  %1243 = vmatprep.subr.mxu0 0.0
  %1244 = vmatpush1.msra.mxu0 0.0
  %1245 = vmatprep.subr.mxu0 0.0
  %1246 = vmatpush1.msra.mxu0 0.0
  %1247 = vmatprep.subr.mxu0 0.0
  %1248 = vmatpush1.msra.mxu0 0.0
  %1249 = vmatprep.subr.mxu0 0.0
  %1250 = vmatpush1.msra.mxu0 0.0
  %1251 = vmatprep.subr.mxu0 0.0
  %1252 = vmatpush1.msra.mxu0 0.0
  %1253 = vmatprep.subr.mxu0 0.0
  %1254 = vmatpush1.msra.mxu0 0.0
  %1255 = vmatprep.subr.mxu0 0.0
  %1256 = vmatpush1.msra.mxu0 0.0
  %1257 = vmatprep.subr.mxu0 0.0
  %1258 = vmatpush1.msra.mxu0 0.0
  %1259 = vmatprep.subr.mxu0 0.0
  %1260 = vmatpush1.msra.mxu0 0.0
  %1261 = vmatprep.subr.mxu0 0.0
  %1262 = vmatpush1.msra.mxu0 0.0
  %1263 = vmatprep.subr.mxu0 0.0
  %1264 = vmatpush1.msra.mxu0 0.0
  %1265 = vmatprep.subr.mxu0 0.0
  %1266 = vmatpush1.msra.mxu0 0.0
  %1267 = vmatprep.subr.mxu0 0.0
  %1268 = vmatpush1.msra.mxu0 0.0
  %1269 = vmatprep.mubr.f32.mxu0 0.0
  %1270 = vmatmul.mubr.f32.gmra.mrb[0].mxu0 %v844
  %v1271 = vpop.f32.mrb[0].mxu0
  %v1272 = vadd.f32 0.0, %v1271
  %v1273 = vpop.f32.mrb[0].mxu0
  %v1274 = vadd.f32 0.0, %v1273
  %1275 = vmatprep.mubr.f32.mxu0 0.0
  %1276 = vmatmul.mubr.f32.gmra.mrb[0].mxu0 %v847
  %v1277 = vpop.f32.mrb[0].mxu0
  %v1278 = vadd.f32 0.0, %v1277
  %v1279 = vpop.f32.mrb[0].mxu0
  %v1280 = vadd.f32 0.0, %v1279
  %1281 = vmatprep.mubr.f32.mxu0 0.0
  %1282 = vmatmul.mubr.f32.gmra.mrb[0].mxu0 %v850
  %v1283 = vpop.f32.mrb[0].mxu0
  %v1284 = vadd.f32 0.0, %v1283
  %v1285 = vpop.f32.mrb[0].mxu0
  %v1286 = vadd.f32 0.0, %v1285
  %1287 = vmatprep.mubr.f32.mxu0 0.0
  %1288 = vmatmul.mubr.f32.gmra.mrb[0].mxu0 %v853
  %v1289 = vpop.f32.mrb[0].mxu0
  %v1290 = vadd.f32 0.0, %v1289
  %v1291 = vpop.f32.mrb[0].mxu0
  %v1292 = vadd.f32 0.0, %v1291
  %1293 = vmatprep.mubr.f32.mxu0 0.0
  %1294 = vmatmul.mubr.f32.gmra.mrb[0].mxu0 %v856
  %v1295 = vpop.f32.mrb[0].mxu0
  %v1296 = vadd.f32 0.0, %v1295
  %v1297 = vpop.f32.mrb[0].mxu0
  %v1298 = vadd.f32 0.0, %v1297
  %1299 = vmatprep.mubr.f32.mxu0 0.0
  %1300 = vmatmul.mubr.f32.gmra.mrb[0].mxu0 %v859
  %v1301 = vpop.f32.mrb[0].mxu0
  %v1302 = vadd.f32 0.0, %v1301
  %v1303 = vpop.f32.mrb[0].mxu0
  %v1304 = vadd.f32 0.0, %v1303
  %1305 = vmatprep.mubr.f32.mxu0 0.0
  %1306 = vmatmul.mubr.f32.gmra.mrb[0].mxu0 %v862
  %v1307 = vpop.f32.mrb[0].mxu0
  %v1308 = vadd.f32 0.0, %v1307
  %v1309 = vpop.f32.mrb[0].mxu0
  %v1310 = vadd.f32 0.0, %v1309
  %1311 = vmatprep.mubr.f32.mxu0 0.0
  %1312 = vmatmul.mubr.f32.gmra.mrb[0].mxu0 %v865
  %v1313 = vpop.f32.mrb[0].mxu0
  %v1314 = vadd.f32 0.0, %v1313
  %v1315 = vpop.f32.mrb[0].mxu0
  %v1316 = vadd.f32 0.0, %v1315
  %1317 = vmatprep.mubr.f32.mxu0 0.0
  %1318 = vmatmul.mubr.f32.gmra.mrb[0].mxu0 %v867
  %v1319 = vpop.f32.mrb[0].mxu0
  %v1320 = vadd.f32 0.0, %v1319
  %v1321 = vpop.f32.mrb[0].mxu0
  %v1322 = vadd.f32 0.0, %v1321
  %1323 = vmatprep.mubr.f32.mxu0 0.0
  %1324 = vmatmul.mubr.f32.gmra.mrb[0].mxu0 %v869
  %v1325 = vpop.f32.mrb[0].mxu0
  %v1326 = vadd.f32 0.0, %v1325
  %v1327 = vpop.f32.mrb[0].mxu0
  %v1328 = vadd.f32 0.0, %v1327
  %1329 = vmatprep.mubr.f32.mxu0 0.0
  %1330 = vmatmul.mubr.f32.gmra.mrb[0].mxu0 %v871
  %v1331 = vpop.f32.mrb[0].mxu0
  %v1332 = vadd.f32 0.0, %v1331
  %v1333 = vpop.f32.mrb[0].mxu0
  %v1334 = vadd.f32 0.0, %v1333
  %1335 = vmatprep.mubr.f32.mxu0 0.0
  %1336 = vmatmul.mubr.f32.gmra.mrb[0].mxu0 %v873
  %v1337 = vpop.f32.mrb[0].mxu0
  %v1338 = vadd.f32 0.0, %v1337
  %v1339 = vpop.f32.mrb[0].mxu0
  %v1340 = vadd.f32 0.0, %v1339
  %1341 = vmatprep.mubr.f32.mxu0 0.0
  %1342 = vmatmul.mubr.f32.gmra.mrb[0].mxu0 %v875
  %v1343 = vpop.f32.mrb[0].mxu0
  %v1344 = vadd.f32 0.0, %v1343
  %v1345 = vpop.f32.mrb[0].mxu0
  %v1346 = vadd.f32 0.0, %v1345
  %1347 = vmatprep.mubr.f32.mxu0 0.0
  %1348 = vmatmul.mubr.f32.gmra.mrb[0].mxu0 %v877
  %v1349 = vpop.f32.mrb[0].mxu0
  %v1350 = vadd.f32 0.0, %v1349
  %v1351 = vpop.f32.mrb[0].mxu0
  %v1352 = vadd.f32 0.0, %v1351
  %1353 = vmatprep.mubr.f32.mxu0 0.0
  %1354 = vmatmul.mubr.f32.gmra.mrb[0].mxu0 %v879
  %v1355 = vpop.f32.mrb[0].mxu0
  %v1356 = vadd.f32 0.0, %v1355
  %v1357 = vpop.f32.mrb[0].mxu0
  %v1358 = vadd.f32 0.0, %v1357
  %1359 = vmatprep.mubr.f32.mxu0 0.0
  %1360 = vmatmul.mubr.f32.gmra.mrb[0].mxu0 %v881
  %v1361 = vpop.f32.mrb[0].mxu0
  %v1362 = vadd.f32 0.0, %v1361
  %v1363 = vpop.f32.mrb[0].mxu0
  %v1364 = vadd.f32 0.0, %v1363
  %1365 = vdwg.mxu0
  %1366 = vmatprep.subr.mxu0 %v706
  %1367 = vmatpush1.msra.mxu0 %v705
  %1368 = vmatprep.subr.mxu0 %v724
  %1369 = vmatpush1.msra.mxu0 %v723
  %1370 = vmatprep.subr.mxu0 %v742
  %1371 = vmatpush1.msra.mxu0 %v741
  %1372 = vmatprep.subr.mxu0 %v760
  %1373 = vmatpush1.msra.mxu0 %v759
  %1374 = vmatprep.subr.mxu0 %v778
  %1375 = vmatpush1.msra.mxu0 %v777
  %1376 = vmatprep.subr.mxu0 %v796
  %1377 = vmatpush1.msra.mxu0 %v795
  %1378 = vmatprep.subr.mxu0 %v814
  %1379 = vmatpush1.msra.mxu0 %v813
  %1380 = vmatprep.subr.mxu0 %v832
  %1381 = vmatpush1.msra.mxu0 %v831
  %1382 = vmatprep.subr.mxu0 0.0
  %1383 = vmatpush1.msra.mxu0 0.0
  %1384 = vmatprep.subr.mxu0 0.0
  %1385 = vmatpush1.msra.mxu0 0.0
  %1386 = vmatprep.subr.mxu0 0.0
  %1387 = vmatpush1.msra.mxu0 0.0
  %1388 = vmatprep.subr.mxu0 0.0
  %1389 = vmatpush1.msra.mxu0 0.0
  %1390 = vmatprep.subr.mxu0 0.0
  %1391 = vmatpush1.msra.mxu0 0.0
  %1392 = vmatprep.subr.mxu0 0.0
  %1393 = vmatpush1.msra.mxu0 0.0
  %1394 = vmatprep.subr.mxu0 0.0
  %1395 = vmatpush1.msra.mxu0 0.0
  %1396 = vmatprep.subr.mxu0 0.0
  %1397 = vmatpush1.msra.mxu0 0.0
  %1398 = vmatprep.subr.mxu0 0.0
  %1399 = vmatpush1.msra.mxu0 0.0
  %1400 = vmatprep.subr.mxu0 0.0
  %1401 = vmatpush1.msra.mxu0 0.0
  %1402 = vmatprep.subr.mxu0 0.0
  %1403 = vmatpush1.msra.mxu0 0.0
  %1404 = vmatprep.subr.mxu0 0.0
  %1405 = vmatpush1.msra.mxu0 0.0
  %1406 = vmatprep.subr.mxu0 0.0
  %1407 = vmatpush1.msra.mxu0 0.0
  %1408 = vmatprep.subr.mxu0 0.0
  %1409 = vmatpush1.msra.mxu0 0.0
  %1410 = vmatprep.subr.mxu0 0.0
  %1411 = vmatpush1.msra.mxu0 0.0
  %1412 = vmatprep.subr.mxu0 0.0
  %1413 = vmatpush1.msra.mxu0 0.0
  %1414 = vmatprep.subr.mxu0 0.0
  %1415 = vmatpush1.msra.mxu0 0.0
  %1416 = vmatprep.subr.mxu0 0.0
  %1417 = vmatpush1.msra.mxu0 0.0
  %1418 = vmatprep.subr.mxu0 0.0
  %1419 = vmatpush1.msra.mxu0 0.0
  %1420 = vmatprep.subr.mxu0 0.0
  %1421 = vmatpush1.msra.mxu0 0.0
  %1422 = vmatprep.subr.mxu0 0.0
  %1423 = vmatpush1.msra.mxu0 0.0
  %1424 = vmatprep.subr.mxu0 0.0
  %1425 = vmatpush1.msra.mxu0 0.0
  %1426 = vmatprep.subr.mxu0 0.0
  %1427 = vmatpush1.msra.mxu0 0.0
  %1428 = vmatprep.subr.mxu0 0.0
  %1429 = vmatpush1.msra.mxu0 0.0
  %1430 = vmatprep.mubr.f32.mxu0 0.0
  %1431 = vmatmul.mubr.f32.gmra.mrb[0].mxu0 %v844
  %v1432 = vpop.f32.mrb[0].mxu0
  %v1433 = vadd.f32 0.0, %v1432
  %v1434 = vpop.f32.mrb[0].mxu0
  %v1435 = vadd.f32 0.0, %v1434
  %1436 = vmatprep.mubr.f32.mxu0 0.0
  %1437 = vmatmul.mubr.f32.gmra.mrb[0].mxu0 %v847
  %v1438 = vpop.f32.mrb[0].mxu0
  %v1439 = vadd.f32 0.0, %v1438
  %v1440 = vpop.f32.mrb[0].mxu0
  %v1441 = vadd.f32 0.0, %v1440
  %1442 = vmatprep.mubr.f32.mxu0 0.0
  %1443 = vmatmul.mubr.f32.gmra.mrb[0].mxu0 %v850
  %v1444 = vpop.f32.mrb[0].mxu0
  %v1445 = vadd.f32 0.0, %v1444
  %v1446 = vpop.f32.mrb[0].mxu0
  %v1447 = vadd.f32 0.0, %v1446
  %1448 = vmatprep.mubr.f32.mxu0 0.0
  %1449 = vmatmul.mubr.f32.gmra.mrb[0].mxu0 %v853
  %v1450 = vpop.f32.mrb[0].mxu0
  %v1451 = vadd.f32 0.0, %v1450
  %v1452 = vpop.f32.mrb[0].mxu0
  %v1453 = vadd.f32 0.0, %v1452
  %1454 = vmatprep.mubr.f32.mxu0 0.0
  %1455 = vmatmul.mubr.f32.gmra.mrb[0].mxu0 %v856
  %v1456 = vpop.f32.mrb[0].mxu0
  %v1457 = vadd.f32 0.0, %v1456
  %v1458 = vpop.f32.mrb[0].mxu0
  %v1459 = vadd.f32 0.0, %v1458
  %1460 = vmatprep.mubr.f32.mxu0 0.0
  %1461 = vmatmul.mubr.f32.gmra.mrb[0].mxu0 %v859
  %v1462 = vpop.f32.mrb[0].mxu0
  %v1463 = vadd.f32 0.0, %v1462
  %v1464 = vpop.f32.mrb[0].mxu0
  %v1465 = vadd.f32 0.0, %v1464
  %1466 = vmatprep.mubr.f32.mxu0 0.0
  %1467 = vmatmul.mubr.f32.gmra.mrb[0].mxu0 %v862
  %v1468 = vpop.f32.mrb[0].mxu0
  %v1469 = vadd.f32 0.0, %v1468
  %v1470 = vpop.f32.mrb[0].mxu0
  %v1471 = vadd.f32 0.0, %v1470
  %1472 = vmatprep.mubr.f32.mxu0 0.0
  %1473 = vmatmul.mubr.f32.gmra.mrb[0].mxu0 %v865
  %v1474 = vpop.f32.mrb[0].mxu0
  %v1475 = vadd.f32 0.0, %v1474
  %v1476 = vpop.f32.mrb[0].mxu0
  %v1477 = vadd.f32 0.0, %v1476
  %1478 = vmatprep.mubr.f32.mxu0 0.0
  %1479 = vmatmul.mubr.f32.gmra.mrb[0].mxu0 %v867
  %v1480 = vpop.f32.mrb[0].mxu0
  %v1481 = vadd.f32 0.0, %v1480
  %v1482 = vpop.f32.mrb[0].mxu0
  %v1483 = vadd.f32 0.0, %v1482
  %1484 = vmatprep.mubr.f32.mxu0 0.0
  %1485 = vmatmul.mubr.f32.gmra.mrb[0].mxu0 %v869
  %v1486 = vpop.f32.mrb[0].mxu0
  %v1487 = vadd.f32 0.0, %v1486
  %v1488 = vpop.f32.mrb[0].mxu0
  %v1489 = vadd.f32 0.0, %v1488
  %1490 = vmatprep.mubr.f32.mxu0 0.0
  %1491 = vmatmul.mubr.f32.gmra.mrb[0].mxu0 %v871
  %v1492 = vpop.f32.mrb[0].mxu0
  %v1493 = vadd.f32 0.0, %v1492
  %v1494 = vpop.f32.mrb[0].mxu0
  %v1495 = vadd.f32 0.0, %v1494
  %1496 = vmatprep.mubr.f32.mxu0 0.0
  %1497 = vmatmul.mubr.f32.gmra.mrb[0].mxu0 %v873
  %v1498 = vpop.f32.mrb[0].mxu0
  %v1499 = vadd.f32 0.0, %v1498
  %v1500 = vpop.f32.mrb[0].mxu0
  %v1501 = vadd.f32 0.0, %v1500
  %1502 = vmatprep.mubr.f32.mxu0 0.0
  %1503 = vmatmul.mubr.f32.gmra.mrb[0].mxu0 %v875
  %v1504 = vpop.f32.mrb[0].mxu0
  %v1505 = vadd.f32 0.0, %v1504
  %v1506 = vpop.f32.mrb[0].mxu0
  %v1507 = vadd.f32 0.0, %v1506
  %1508 = vmatprep.mubr.f32.mxu0 0.0
  %1509 = vmatmul.mubr.f32.gmra.mrb[0].mxu0 %v877
  %v1510 = vpop.f32.mrb[0].mxu0
  %v1511 = vadd.f32 0.0, %v1510
  %v1512 = vpop.f32.mrb[0].mxu0
  %v1513 = vadd.f32 0.0, %v1512
  %1514 = vmatprep.mubr.f32.mxu0 0.0
  %1515 = vmatmul.mubr.f32.gmra.mrb[0].mxu0 %v879
  %v1516 = vpop.f32.mrb[0].mxu0
  %v1517 = vadd.f32 0.0, %v1516
  %v1518 = vpop.f32.mrb[0].mxu0
  %v1519 = vadd.f32 0.0, %v1518
  %1520 = vmatprep.mubr.f32.mxu0 0.0
  %1521 = vmatmul.mubr.f32.gmra.mrb[0].mxu0 %v881
  %v1522 = vpop.f32.mrb[0].mxu0
  %v1523 = vadd.f32 0.0, %v1522
  %v1524 = vpop.f32.mrb[0].mxu0
  %v1525 = vadd.f32 0.0, %v1524
  %1526 = vdwg.mxu0
  %1527 = vmatprep.subr.mxu0 %v708
  %1528 = vmatpush1.msra.mxu0 %v707
  %1529 = vmatprep.subr.mxu0 %v726
  %1530 = vmatpush1.msra.mxu0 %v725
  %1531 = vmatprep.subr.mxu0 %v744
  %1532 = vmatpush1.msra.mxu0 %v743
  %1533 = vmatprep.subr.mxu0 %v762
  %1534 = vmatpush1.msra.mxu0 %v761
  %1535 = vmatprep.subr.mxu0 %v780
  %1536 = vmatpush1.msra.mxu0 %v779
  %1537 = vmatprep.subr.mxu0 %v798
  %1538 = vmatpush1.msra.mxu0 %v797
  %1539 = vmatprep.subr.mxu0 %v816
  %1540 = vmatpush1.msra.mxu0 %v815
  %1541 = vmatprep.subr.mxu0 %v834
  %1542 = vmatpush1.msra.mxu0 %v833
  %1543 = vmatprep.subr.mxu0 0.0
  %1544 = vmatpush1.msra.mxu0 0.0
  %1545 = vmatprep.subr.mxu0 0.0
  %1546 = vmatpush1.msra.mxu0 0.0
  %1547 = vmatprep.subr.mxu0 0.0
  %1548 = vmatpush1.msra.mxu0 0.0
  %1549 = vmatprep.subr.mxu0 0.0
  %1550 = vmatpush1.msra.mxu0 0.0
  %1551 = vmatprep.subr.mxu0 0.0
  %1552 = vmatpush1.msra.mxu0 0.0
  %1553 = vmatprep.subr.mxu0 0.0
  %1554 = vmatpush1.msra.mxu0 0.0
  %1555 = vmatprep.subr.mxu0 0.0
  %1556 = vmatpush1.msra.mxu0 0.0
  %1557 = vmatprep.subr.mxu0 0.0
  %1558 = vmatpush1.msra.mxu0 0.0
  %1559 = vmatprep.subr.mxu0 0.0
  %1560 = vmatpush1.msra.mxu0 0.0
  %1561 = vmatprep.subr.mxu0 0.0
  %1562 = vmatpush1.msra.mxu0 0.0
  %1563 = vmatprep.subr.mxu0 0.0
  %1564 = vmatpush1.msra.mxu0 0.0
  %1565 = vmatprep.subr.mxu0 0.0
  %1566 = vmatpush1.msra.mxu0 0.0
  %1567 = vmatprep.subr.mxu0 0.0
  %1568 = vmatpush1.msra.mxu0 0.0
  %1569 = vmatprep.subr.mxu0 0.0
  %1570 = vmatpush1.msra.mxu0 0.0
  %1571 = vmatprep.subr.mxu0 0.0
  %1572 = vmatpush1.msra.mxu0 0.0
  %1573 = vmatprep.subr.mxu0 0.0
  %1574 = vmatpush1.msra.mxu0 0.0
  %1575 = vmatprep.subr.mxu0 0.0
  %1576 = vmatpush1.msra.mxu0 0.0
  %1577 = vmatprep.subr.mxu0 0.0
  %1578 = vmatpush1.msra.mxu0 0.0
  %1579 = vmatprep.subr.mxu0 0.0
  %1580 = vmatpush1.msra.mxu0 0.0
  %1581 = vmatprep.subr.mxu0 0.0
  %1582 = vmatpush1.msra.mxu0 0.0
  %1583 = vmatprep.subr.mxu0 0.0
  %1584 = vmatpush1.msra.mxu0 0.0
  %1585 = vmatprep.subr.mxu0 0.0
  %1586 = vmatpush1.msra.mxu0 0.0
  %1587 = vmatprep.subr.mxu0 0.0
  %1588 = vmatpush1.msra.mxu0 0.0
  %1589 = vmatprep.subr.mxu0 0.0
  %1590 = vmatpush1.msra.mxu0 0.0
  %1591 = vmatprep.mubr.f32.mxu0 0.0
  %1592 = vmatmul.mubr.f32.gmra.mrb[0].mxu0 %v844
  %v1593 = vpop.f32.mrb[0].mxu0
  %v1594 = vadd.f32 0.0, %v1593
  %v1595 = vpop.f32.mrb[0].mxu0
  %v1596 = vadd.f32 0.0, %v1595
  %1597 = vmatprep.mubr.f32.mxu0 0.0
  %1598 = vmatmul.mubr.f32.gmra.mrb[0].mxu0 %v847
  %v1599 = vpop.f32.mrb[0].mxu0
  %v1600 = vadd.f32 0.0, %v1599
  %v1601 = vpop.f32.mrb[0].mxu0
  %v1602 = vadd.f32 0.0, %v1601
  %1603 = vmatprep.mubr.f32.mxu0 0.0
  %1604 = vmatmul.mubr.f32.gmra.mrb[0].mxu0 %v850
  %v1605 = vpop.f32.mrb[0].mxu0
  %v1606 = vadd.f32 0.0, %v1605
  %v1607 = vpop.f32.mrb[0].mxu0
  %v1608 = vadd.f32 0.0, %v1607
  %1609 = vmatprep.mubr.f32.mxu0 0.0
  %1610 = vmatmul.mubr.f32.gmra.mrb[0].mxu0 %v853
  %v1611 = vpop.f32.mrb[0].mxu0
  %v1612 = vadd.f32 0.0, %v1611
  %v1613 = vpop.f32.mrb[0].mxu0
  %v1614 = vadd.f32 0.0, %v1613
  %1615 = vmatprep.mubr.f32.mxu0 0.0
  %1616 = vmatmul.mubr.f32.gmra.mrb[0].mxu0 %v856
  %v1617 = vpop.f32.mrb[0].mxu0
  %v1618 = vadd.f32 0.0, %v1617
  %v1619 = vpop.f32.mrb[0].mxu0
  %v1620 = vadd.f32 0.0, %v1619
  %1621 = vmatprep.mubr.f32.mxu0 0.0
  %1622 = vmatmul.mubr.f32.gmra.mrb[0].mxu0 %v859
  %v1623 = vpop.f32.mrb[0].mxu0
  %v1624 = vadd.f32 0.0, %v1623
  %v1625 = vpop.f32.mrb[0].mxu0
  %v1626 = vadd.f32 0.0, %v1625
  %1627 = vmatprep.mubr.f32.mxu0 0.0
  %1628 = vmatmul.mubr.f32.gmra.mrb[0].mxu0 %v862
  %v1629 = vpop.f32.mrb[0].mxu0
  %v1630 = vadd.f32 0.0, %v1629
  %v1631 = vpop.f32.mrb[0].mxu0
  %v1632 = vadd.f32 0.0, %v1631
  %1633 = vmatprep.mubr.f32.mxu0 0.0
  %1634 = vmatmul.mubr.f32.gmra.mrb[0].mxu0 %v865
  %v1635 = vpop.f32.mrb[0].mxu0
  %v1636 = vadd.f32 0.0, %v1635
  %v1637 = vpop.f32.mrb[0].mxu0
  %v1638 = vadd.f32 0.0, %v1637
  %1639 = vmatprep.mubr.f32.mxu0 0.0
  %1640 = vmatmul.mubr.f32.gmra.mrb[0].mxu0 %v867
  %v1641 = vpop.f32.mrb[0].mxu0
  %v1642 = vadd.f32 0.0, %v1641
  %v1643 = vpop.f32.mrb[0].mxu0
  %v1644 = vadd.f32 0.0, %v1643
  %1645 = vmatprep.mubr.f32.mxu0 0.0
  %1646 = vmatmul.mubr.f32.gmra.mrb[0].mxu0 %v869
  %v1647 = vpop.f32.mrb[0].mxu0
  %v1648 = vadd.f32 0.0, %v1647
  %v1649 = vpop.f32.mrb[0].mxu0
  %v1650 = vadd.f32 0.0, %v1649
  %1651 = vmatprep.mubr.f32.mxu0 0.0
  %1652 = vmatmul.mubr.f32.gmra.mrb[0].mxu0 %v871
  %v1653 = vpop.f32.mrb[0].mxu0
  %v1654 = vadd.f32 0.0, %v1653
  %v1655 = vpop.f32.mrb[0].mxu0
  %v1656 = vadd.f32 0.0, %v1655
  %1657 = vmatprep.mubr.f32.mxu0 0.0
  %1658 = vmatmul.mubr.f32.gmra.mrb[0].mxu0 %v873
  %v1659 = vpop.f32.mrb[0].mxu0
  %v1660 = vadd.f32 0.0, %v1659
  %v1661 = vpop.f32.mrb[0].mxu0
  %v1662 = vadd.f32 0.0, %v1661
  %1663 = vmatprep.mubr.f32.mxu0 0.0
  %1664 = vmatmul.mubr.f32.gmra.mrb[0].mxu0 %v875
  %v1665 = vpop.f32.mrb[0].mxu0
  %v1666 = vadd.f32 0.0, %v1665
  %v1667 = vpop.f32.mrb[0].mxu0
  %v1668 = vadd.f32 0.0, %v1667
  %1669 = vmatprep.mubr.f32.mxu0 0.0
  %1670 = vmatmul.mubr.f32.gmra.mrb[0].mxu0 %v877
  %v1671 = vpop.f32.mrb[0].mxu0
  %v1672 = vadd.f32 0.0, %v1671
  %v1673 = vpop.f32.mrb[0].mxu0
  %v1674 = vadd.f32 0.0, %v1673
  %1675 = vmatprep.mubr.f32.mxu0 0.0
  %1676 = vmatmul.mubr.f32.gmra.mrb[0].mxu0 %v879
  %v1677 = vpop.f32.mrb[0].mxu0
  %v1678 = vadd.f32 0.0, %v1677
  %v1679 = vpop.f32.mrb[0].mxu0
  %v1680 = vadd.f32 0.0, %v1679
  %1681 = vmatprep.mubr.f32.mxu0 0.0
  %1682 = vmatmul.mubr.f32.gmra.mrb[0].mxu0 %v881
  %v1683 = vpop.f32.mrb[0].mxu0
  %v1684 = vadd.f32 0.0, %v1683
  %v1685 = vpop.f32.mrb[0].mxu0
  %v1686 = vadd.f32 0.0, %v1685
  %1687 = vdwg.mxu0
  %1688 = vmatprep.subr.mxu0 %v710
  %1689 = vmatpush1.msra.mxu0 %v709
  %1690 = vmatprep.subr.mxu0 %v728
  %1691 = vmatpush1.msra.mxu0 %v727
  %1692 = vmatprep.subr.mxu0 %v746
  %1693 = vmatpush1.msra.mxu0 %v745
  %1694 = vmatprep.subr.mxu0 %v764
  %1695 = vmatpush1.msra.mxu0 %v763
  %1696 = vmatprep.subr.mxu0 %v782
  %1697 = vmatpush1.msra.mxu0 %v781
  %1698 = vmatprep.subr.mxu0 %v800
  %1699 = vmatpush1.msra.mxu0 %v799
  %1700 = vmatprep.subr.mxu0 %v818
  %1701 = vmatpush1.msra.mxu0 %v817
  %1702 = vmatprep.subr.mxu0 %v836
  %1703 = vmatpush1.msra.mxu0 %v835
  %1704 = vmatprep.subr.mxu0 0.0
  %1705 = vmatpush1.msra.mxu0 0.0
  %1706 = vmatprep.subr.mxu0 0.0
  %1707 = vmatpush1.msra.mxu0 0.0
  %1708 = vmatprep.subr.mxu0 0.0
  %1709 = vmatpush1.msra.mxu0 0.0
  %1710 = vmatprep.subr.mxu0 0.0
  %1711 = vmatpush1.msra.mxu0 0.0
  %1712 = vmatprep.subr.mxu0 0.0
  %1713 = vmatpush1.msra.mxu0 0.0
  %1714 = vmatprep.subr.mxu0 0.0
  %1715 = vmatpush1.msra.mxu0 0.0
  %1716 = vmatprep.subr.mxu0 0.0
  %1717 = vmatpush1.msra.mxu0 0.0
  %1718 = vmatprep.subr.mxu0 0.0
  %1719 = vmatpush1.msra.mxu0 0.0
  %1720 = vmatprep.subr.mxu0 0.0
  %1721 = vmatpush1.msra.mxu0 0.0
  %1722 = vmatprep.subr.mxu0 0.0
  %1723 = vmatpush1.msra.mxu0 0.0
  %1724 = vmatprep.subr.mxu0 0.0
  %1725 = vmatpush1.msra.mxu0 0.0
  %1726 = vmatprep.subr.mxu0 0.0
  %1727 = vmatpush1.msra.mxu0 0.0
  %1728 = vmatprep.subr.mxu0 0.0
  %1729 = vmatpush1.msra.mxu0 0.0
  %1730 = vmatprep.subr.mxu0 0.0
  %1731 = vmatpush1.msra.mxu0 0.0
  %1732 = vmatprep.subr.mxu0 0.0
  %1733 = vmatpush1.msra.mxu0 0.0
  %1734 = vmatprep.subr.mxu0 0.0
  %1735 = vmatpush1.msra.mxu0 0.0
  %1736 = vmatprep.subr.mxu0 0.0
  %1737 = vmatpush1.msra.mxu0 0.0
  %1738 = vmatprep.subr.mxu0 0.0
  %1739 = vmatpush1.msra.mxu0 0.0
  %1740 = vmatprep.subr.mxu0 0.0
  %1741 = vmatpush1.msra.mxu0 0.0
  %1742 = vmatprep.subr.mxu0 0.0
  %1743 = vmatpush1.msra.mxu0 0.0
  %1744 = vmatprep.subr.mxu0 0.0
  %1745 = vmatpush1.msra.mxu0 0.0
  %1746 = vmatprep.subr.mxu0 0.0
  %1747 = vmatpush1.msra.mxu0 0.0
  %1748 = vmatprep.subr.mxu0 0.0
  %1749 = vmatpush1.msra.mxu0 0.0
  %1750 = vmatprep.subr.mxu0 0.0
  %1751 = vmatpush1.msra.mxu0 0.0
  %1752 = vmatprep.mubr.f32.mxu0 0.0
  %1753 = vmatmul.mubr.f32.gmra.mrb[0].mxu0 %v844
  %v1754 = vpop.f32.mrb[0].mxu0
  %v1755 = vadd.f32 0.0, %v1754
  %v1756 = vpop.f32.mrb[0].mxu0
  %v1757 = vadd.f32 0.0, %v1756
  %1758 = vmatprep.mubr.f32.mxu0 0.0
  %1759 = vmatmul.mubr.f32.gmra.mrb[0].mxu0 %v847
  %v1760 = vpop.f32.mrb[0].mxu0
  %v1761 = vadd.f32 0.0, %v1760
  %v1762 = vpop.f32.mrb[0].mxu0
  %v1763 = vadd.f32 0.0, %v1762
  %1764 = vmatprep.mubr.f32.mxu0 0.0
  %1765 = vmatmul.mubr.f32.gmra.mrb[0].mxu0 %v850
  %v1766 = vpop.f32.mrb[0].mxu0
  %v1767 = vadd.f32 0.0, %v1766
  %v1768 = vpop.f32.mrb[0].mxu0
  %v1769 = vadd.f32 0.0, %v1768
  %1770 = vmatprep.mubr.f32.mxu0 0.0
  %1771 = vmatmul.mubr.f32.gmra.mrb[0].mxu0 %v853
  %v1772 = vpop.f32.mrb[0].mxu0
  %v1773 = vadd.f32 0.0, %v1772
  %v1774 = vpop.f32.mrb[0].mxu0
  %v1775 = vadd.f32 0.0, %v1774
  %1776 = vmatprep.mubr.f32.mxu0 0.0
  %1777 = vmatmul.mubr.f32.gmra.mrb[0].mxu0 %v856
  %v1778 = vpop.f32.mrb[0].mxu0
  %v1779 = vadd.f32 0.0, %v1778
  %v1780 = vpop.f32.mrb[0].mxu0
  %v1781 = vadd.f32 0.0, %v1780
  %1782 = vmatprep.mubr.f32.mxu0 0.0
  %1783 = vmatmul.mubr.f32.gmra.mrb[0].mxu0 %v859
  %v1784 = vpop.f32.mrb[0].mxu0
  %v1785 = vadd.f32 0.0, %v1784
  %v1786 = vpop.f32.mrb[0].mxu0
  %v1787 = vadd.f32 0.0, %v1786
  %1788 = vmatprep.mubr.f32.mxu0 0.0
  %1789 = vmatmul.mubr.f32.gmra.mrb[0].mxu0 %v862
  %v1790 = vpop.f32.mrb[0].mxu0
  %v1791 = vadd.f32 0.0, %v1790
  %v1792 = vpop.f32.mrb[0].mxu0
  %v1793 = vadd.f32 0.0, %v1792
  %1794 = vmatprep.mubr.f32.mxu0 0.0
  %1795 = vmatmul.mubr.f32.gmra.mrb[0].mxu0 %v865
  %v1796 = vpop.f32.mrb[0].mxu0
  %v1797 = vadd.f32 0.0, %v1796
  %v1798 = vpop.f32.mrb[0].mxu0
  %v1799 = vadd.f32 0.0, %v1798
  %1800 = vmatprep.mubr.f32.mxu0 0.0
  %1801 = vmatmul.mubr.f32.gmra.mrb[0].mxu0 %v867
  %v1802 = vpop.f32.mrb[0].mxu0
  %v1803 = vadd.f32 0.0, %v1802
  %v1804 = vpop.f32.mrb[0].mxu0
  %v1805 = vadd.f32 0.0, %v1804
  %1806 = vmatprep.mubr.f32.mxu0 0.0
  %1807 = vmatmul.mubr.f32.gmra.mrb[0].mxu0 %v869
  %v1808 = vpop.f32.mrb[0].mxu0
  %v1809 = vadd.f32 0.0, %v1808
  %v1810 = vpop.f32.mrb[0].mxu0
  %v1811 = vadd.f32 0.0, %v1810
  %1812 = vmatprep.mubr.f32.mxu0 0.0
  %1813 = vmatmul.mubr.f32.gmra.mrb[0].mxu0 %v871
  %v1814 = vpop.f32.mrb[0].mxu0
  %v1815 = vadd.f32 0.0, %v1814
  %v1816 = vpop.f32.mrb[0].mxu0
  %v1817 = vadd.f32 0.0, %v1816
  %1818 = vmatprep.mubr.f32.mxu0 0.0
  %1819 = vmatmul.mubr.f32.gmra.mrb[0].mxu0 %v873
  %v1820 = vpop.f32.mrb[0].mxu0
  %v1821 = vadd.f32 0.0, %v1820
  %v1822 = vpop.f32.mrb[0].mxu0
  %v1823 = vadd.f32 0.0, %v1822
  %1824 = vmatprep.mubr.f32.mxu0 0.0
  %1825 = vmatmul.mubr.f32.gmra.mrb[0].mxu0 %v875
  %v1826 = vpop.f32.mrb[0].mxu0
  %v1827 = vadd.f32 0.0, %v1826
  %v1828 = vpop.f32.mrb[0].mxu0
  %v1829 = vadd.f32 0.0, %v1828
  %1830 = vmatprep.mubr.f32.mxu0 0.0
  %1831 = vmatmul.mubr.f32.gmra.mrb[0].mxu0 %v877
  %v1832 = vpop.f32.mrb[0].mxu0
  %v1833 = vadd.f32 0.0, %v1832
  %v1834 = vpop.f32.mrb[0].mxu0
  %v1835 = vadd.f32 0.0, %v1834
  %1836 = vmatprep.mubr.f32.mxu0 0.0
  %1837 = vmatmul.mubr.f32.gmra.mrb[0].mxu0 %v879
  %v1838 = vpop.f32.mrb[0].mxu0
  %v1839 = vadd.f32 0.0, %v1838
  %v1840 = vpop.f32.mrb[0].mxu0
  %v1841 = vadd.f32 0.0, %v1840
  %1842 = vmatprep.mubr.f32.mxu0 0.0
  %1843 = vmatmul.mubr.f32.gmra.mrb[0].mxu0 %v881
  %v1844 = vpop.f32.mrb[0].mxu0
  %v1845 = vadd.f32 0.0, %v1844
  %v1846 = vpop.f32.mrb[0].mxu0
  %v1847 = vadd.f32 0.0, %v1846
  %1848 = vdwg.mxu0
  %1849 = vmatprep.subr.mxu0 %v712
  %1850 = vmatpush1.msra.mxu0 %v711
  %1851 = vmatprep.subr.mxu0 %v730
  %1852 = vmatpush1.msra.mxu0 %v729
  %1853 = vmatprep.subr.mxu0 %v748
  %1854 = vmatpush1.msra.mxu0 %v747
  %1855 = vmatprep.subr.mxu0 %v766
  %1856 = vmatpush1.msra.mxu0 %v765
  %1857 = vmatprep.subr.mxu0 %v784
  %1858 = vmatpush1.msra.mxu0 %v783
  %1859 = vmatprep.subr.mxu0 %v802
  %1860 = vmatpush1.msra.mxu0 %v801
  %1861 = vmatprep.subr.mxu0 %v820
  %1862 = vmatpush1.msra.mxu0 %v819
  %1863 = vmatprep.subr.mxu0 %v838
  %1864 = vmatpush1.msra.mxu0 %v837
  %1865 = vmatprep.subr.mxu0 0.0
  %1866 = vmatpush1.msra.mxu0 0.0
  %1867 = vmatprep.subr.mxu0 0.0
  %1868 = vmatpush1.msra.mxu0 0.0
  %1869 = vmatprep.subr.mxu0 0.0
  %1870 = vmatpush1.msra.mxu0 0.0
  %1871 = vmatprep.subr.mxu0 0.0
  %1872 = vmatpush1.msra.mxu0 0.0
  %1873 = vmatprep.subr.mxu0 0.0
  %1874 = vmatpush1.msra.mxu0 0.0
  %1875 = vmatprep.subr.mxu0 0.0
  %1876 = vmatpush1.msra.mxu0 0.0
  %1877 = vmatprep.subr.mxu0 0.0
  %1878 = vmatpush1.msra.mxu0 0.0
  %1879 = vmatprep.subr.mxu0 0.0
  %1880 = vmatpush1.msra.mxu0 0.0
  %1881 = vmatprep.subr.mxu0 0.0
  %1882 = vmatpush1.msra.mxu0 0.0
  %1883 = vmatprep.subr.mxu0 0.0
  %1884 = vmatpush1.msra.mxu0 0.0
  %1885 = vmatprep.subr.mxu0 0.0
  %1886 = vmatpush1.msra.mxu0 0.0
  %1887 = vmatprep.subr.mxu0 0.0
  %1888 = vmatpush1.msra.mxu0 0.0
  %1889 = vmatprep.subr.mxu0 0.0
  %1890 = vmatpush1.msra.mxu0 0.0
  %1891 = vmatprep.subr.mxu0 0.0
  %1892 = vmatpush1.msra.mxu0 0.0
  %1893 = vmatprep.subr.mxu0 0.0
  %1894 = vmatpush1.msra.mxu0 0.0
  %1895 = vmatprep.subr.mxu0 0.0
  %1896 = vmatpush1.msra.mxu0 0.0
  %1897 = vmatprep.subr.mxu0 0.0
  %1898 = vmatpush1.msra.mxu0 0.0
  %1899 = vmatprep.subr.mxu0 0.0
  %1900 = vmatpush1.msra.mxu0 0.0
  %1901 = vmatprep.subr.mxu0 0.0
  %1902 = vmatpush1.msra.mxu0 0.0
  %1903 = vmatprep.subr.mxu0 0.0
  %1904 = vmatpush1.msra.mxu0 0.0
  %1905 = vmatprep.subr.mxu0 0.0
  %1906 = vmatpush1.msra.mxu0 0.0
  %1907 = vmatprep.subr.mxu0 0.0
  %1908 = vmatpush1.msra.mxu0 0.0
  %1909 = vmatprep.subr.mxu0 0.0
  %1910 = vmatpush1.msra.mxu0 0.0
  %1911 = vmatprep.subr.mxu0 0.0
  %1912 = vmatpush1.msra.mxu0 0.0
  %1913 = vmatprep.mubr.f32.mxu0 0.0
  %1914 = vmatmul.mubr.f32.gmra.mrb[0].mxu0 %v844
  %v1915 = vpop.f32.mrb[0].mxu0
  %v1916 = vadd.f32 0.0, %v1915
  %v1917 = vpop.f32.mrb[0].mxu0
  %v1918 = vadd.f32 0.0, %v1917
  %1919 = vmatprep.mubr.f32.mxu0 0.0
  %1920 = vmatmul.mubr.f32.gmra.mrb[0].mxu0 %v847
  %v1921 = vpop.f32.mrb[0].mxu0
  %v1922 = vadd.f32 0.0, %v1921
  %v1923 = vpop.f32.mrb[0].mxu0
  %v1924 = vadd.f32 0.0, %v1923
  %1925 = vmatprep.mubr.f32.mxu0 0.0
  %1926 = vmatmul.mubr.f32.gmra.mrb[0].mxu0 %v850
  %v1927 = vpop.f32.mrb[0].mxu0
  %v1928 = vadd.f32 0.0, %v1927
  %v1929 = vpop.f32.mrb[0].mxu0
  %v1930 = vadd.f32 0.0, %v1929
  %1931 = vmatprep.mubr.f32.mxu0 0.0
  %1932 = vmatmul.mubr.f32.gmra.mrb[0].mxu0 %v853
  %v1933 = vpop.f32.mrb[0].mxu0
  %v1934 = vadd.f32 0.0, %v1933
  %v1935 = vpop.f32.mrb[0].mxu0
  %v1936 = vadd.f32 0.0, %v1935
  %1937 = vmatprep.mubr.f32.mxu0 0.0
  %1938 = vmatmul.mubr.f32.gmra.mrb[0].mxu0 %v856
  %v1939 = vpop.f32.mrb[0].mxu0
  %v1940 = vadd.f32 0.0, %v1939
  %v1941 = vpop.f32.mrb[0].mxu0
  %v1942 = vadd.f32 0.0, %v1941
  %1943 = vmatprep.mubr.f32.mxu0 0.0
  %1944 = vmatmul.mubr.f32.gmra.mrb[0].mxu0 %v859
  %v1945 = vpop.f32.mrb[0].mxu0
  %v1946 = vadd.f32 0.0, %v1945
  %v1947 = vpop.f32.mrb[0].mxu0
  %v1948 = vadd.f32 0.0, %v1947
  %1949 = vmatprep.mubr.f32.mxu0 0.0
  %1950 = vmatmul.mubr.f32.gmra.mrb[0].mxu0 %v862
  %v1951 = vpop.f32.mrb[0].mxu0
  %v1952 = vadd.f32 0.0, %v1951
  %v1953 = vpop.f32.mrb[0].mxu0
  %v1954 = vadd.f32 0.0, %v1953
  %1955 = vmatprep.mubr.f32.mxu0 0.0
  %1956 = vmatmul.mubr.f32.gmra.mrb[0].mxu0 %v865
  %v1957 = vpop.f32.mrb[0].mxu0
  %v1958 = vadd.f32 0.0, %v1957
  %v1959 = vpop.f32.mrb[0].mxu0
  %v1960 = vadd.f32 0.0, %v1959
  %1961 = vmatprep.mubr.f32.mxu0 0.0
  %1962 = vmatmul.mubr.f32.gmra.mrb[0].mxu0 %v867
  %v1963 = vpop.f32.mrb[0].mxu0
  %v1964 = vadd.f32 0.0, %v1963
  %v1965 = vpop.f32.mrb[0].mxu0
  %v1966 = vadd.f32 0.0, %v1965
  %1967 = vmatprep.mubr.f32.mxu0 0.0
  %1968 = vmatmul.mubr.f32.gmra.mrb[0].mxu0 %v869
  %v1969 = vpop.f32.mrb[0].mxu0
  %v1970 = vadd.f32 0.0, %v1969
  %v1971 = vpop.f32.mrb[0].mxu0
  %v1972 = vadd.f32 0.0, %v1971
  %1973 = vmatprep.mubr.f32.mxu0 0.0
  %1974 = vmatmul.mubr.f32.gmra.mrb[0].mxu0 %v871
  %v1975 = vpop.f32.mrb[0].mxu0
  %v1976 = vadd.f32 0.0, %v1975
  %v1977 = vpop.f32.mrb[0].mxu0
  %v1978 = vadd.f32 0.0, %v1977
  %1979 = vmatprep.mubr.f32.mxu0 0.0
  %1980 = vmatmul.mubr.f32.gmra.mrb[0].mxu0 %v873
  %v1981 = vpop.f32.mrb[0].mxu0
  %v1982 = vadd.f32 0.0, %v1981
  %v1983 = vpop.f32.mrb[0].mxu0
  %v1984 = vadd.f32 0.0, %v1983
  %1985 = vmatprep.mubr.f32.mxu0 0.0
  %1986 = vmatmul.mubr.f32.gmra.mrb[0].mxu0 %v875
  %v1987 = vpop.f32.mrb[0].mxu0
  %v1988 = vadd.f32 0.0, %v1987
  %v1989 = vpop.f32.mrb[0].mxu0
  %v1990 = vadd.f32 0.0, %v1989
  %1991 = vmatprep.mubr.f32.mxu0 0.0
  %1992 = vmatmul.mubr.f32.gmra.mrb[0].mxu0 %v877
  %v1993 = vpop.f32.mrb[0].mxu0
  %v1994 = vadd.f32 0.0, %v1993
  %v1995 = vpop.f32.mrb[0].mxu0
  %v1996 = vadd.f32 0.0, %v1995
  %1997 = vmatprep.mubr.f32.mxu0 0.0
  %1998 = vmatmul.mubr.f32.gmra.mrb[0].mxu0 %v879
  %v1999 = vpop.f32.mrb[0].mxu0
  %v2000 = vadd.f32 0.0, %v1999
  %v2001 = vpop.f32.mrb[0].mxu0
  %v2002 = vadd.f32 0.0, %v2001
  %2003 = vmatprep.mubr.f32.mxu0 0.0
  %2004 = vmatmul.mubr.f32.gmra.mrb[0].mxu0 %v881
  %v2005 = vpop.f32.mrb[0].mxu0
  %v2006 = vadd.f32 0.0, %v2005
  %v2007 = vpop.f32.mrb[0].mxu0
  %v2008 = vadd.f32 0.0, %v2007
  %2009 = vdwg.mxu0
  %2010 = vmatprep.subr.mxu0 %v714
  %2011 = vmatpush1.msra.mxu0 %v713
  %2012 = vmatprep.subr.mxu0 %v732
  %2013 = vmatpush1.msra.mxu0 %v731
  %2014 = vmatprep.subr.mxu0 %v750
  %2015 = vmatpush1.msra.mxu0 %v749
  %2016 = vmatprep.subr.mxu0 %v768
  %2017 = vmatpush1.msra.mxu0 %v767
  %2018 = vmatprep.subr.mxu0 %v786
  %2019 = vmatpush1.msra.mxu0 %v785
  %2020 = vmatprep.subr.mxu0 %v804
  %2021 = vmatpush1.msra.mxu0 %v803
  %2022 = vmatprep.subr.mxu0 %v822
  %2023 = vmatpush1.msra.mxu0 %v821
  %2024 = vmatprep.subr.mxu0 %v840
  %2025 = vmatpush1.msra.mxu0 %v839
  %2026 = vmatprep.subr.mxu0 0.0
  %2027 = vmatpush1.msra.mxu0 0.0
  %2028 = vmatprep.subr.mxu0 0.0
  %2029 = vmatpush1.msra.mxu0 0.0
  %2030 = vmatprep.subr.mxu0 0.0
  %2031 = vmatpush1.msra.mxu0 0.0
  %2032 = vmatprep.subr.mxu0 0.0
  %2033 = vmatpush1.msra.mxu0 0.0
  %2034 = vmatprep.subr.mxu0 0.0
  %2035 = vmatpush1.msra.mxu0 0.0
  %2036 = vmatprep.subr.mxu0 0.0
  %2037 = vmatpush1.msra.mxu0 0.0
  %2038 = vmatprep.subr.mxu0 0.0
  %2039 = vmatpush1.msra.mxu0 0.0
  %2040 = vmatprep.subr.mxu0 0.0
  %2041 = vmatpush1.msra.mxu0 0.0
  %2042 = vmatprep.subr.mxu0 0.0
  %2043 = vmatpush1.msra.mxu0 0.0
  %2044 = vmatprep.subr.mxu0 0.0
  %2045 = vmatpush1.msra.mxu0 0.0
  %2046 = vmatprep.subr.mxu0 0.0
  %2047 = vmatpush1.msra.mxu0 0.0
  %2048 = vmatprep.subr.mxu0 0.0
  %2049 = vmatpush1.msra.mxu0 0.0
  %2050 = vmatprep.subr.mxu0 0.0
  %2051 = vmatpush1.msra.mxu0 0.0
  %2052 = vmatprep.subr.mxu0 0.0
  %2053 = vmatpush1.msra.mxu0 0.0
  %2054 = vmatprep.subr.mxu0 0.0
  %2055 = vmatpush1.msra.mxu0 0.0
  %2056 = vmatprep.subr.mxu0 0.0
  %2057 = vmatpush1.msra.mxu0 0.0
  %2058 = vmatprep.subr.mxu0 0.0
  %2059 = vmatpush1.msra.mxu0 0.0
  %2060 = vmatprep.subr.mxu0 0.0
  %2061 = vmatpush1.msra.mxu0 0.0
  %2062 = vmatprep.subr.mxu0 0.0
  %2063 = vmatpush1.msra.mxu0 0.0
  %2064 = vmatprep.subr.mxu0 0.0
  %2065 = vmatpush1.msra.mxu0 0.0
  %2066 = vmatprep.subr.mxu0 0.0
  %2067 = vmatpush1.msra.mxu0 0.0
  %2068 = vmatprep.subr.mxu0 0.0
  %2069 = vmatpush1.msra.mxu0 0.0
  %2070 = vmatprep.subr.mxu0 0.0
  %2071 = vmatpush1.msra.mxu0 0.0
  %2072 = vmatprep.subr.mxu0 0.0
  %2073 = vmatpush1.msra.mxu0 0.0
  %2074 = vmatprep.mubr.f32.mxu0 0.0
  %2075 = vmatmul.mubr.f32.gmra.mrb[0].mxu0 %v844
  %v2076 = vpop.f32.mrb[0].mxu0
  %v2077 = vadd.f32 0.0, %v2076
  %v2078 = vpop.f32.mrb[0].mxu0
  %v2079 = vadd.f32 0.0, %v2078
  %2080 = vmatprep.mubr.f32.mxu0 0.0
  %2081 = vmatmul.mubr.f32.gmra.mrb[0].mxu0 %v847
  %v2082 = vpop.f32.mrb[0].mxu0
  %v2083 = vadd.f32 0.0, %v2082
  %v2084 = vpop.f32.mrb[0].mxu0
  %v2085 = vadd.f32 0.0, %v2084
  %2086 = vmatprep.mubr.f32.mxu0 0.0
  %2087 = vmatmul.mubr.f32.gmra.mrb[0].mxu0 %v850
  %v2088 = vpop.f32.mrb[0].mxu0
  %v2089 = vadd.f32 0.0, %v2088
  %v2090 = vpop.f32.mrb[0].mxu0
  %v2091 = vadd.f32 0.0, %v2090
  %2092 = vmatprep.mubr.f32.mxu0 0.0
  %2093 = vmatmul.mubr.f32.gmra.mrb[0].mxu0 %v853
  %v2094 = vpop.f32.mrb[0].mxu0
  %v2095 = vadd.f32 0.0, %v2094
  %v2096 = vpop.f32.mrb[0].mxu0
  %v2097 = vadd.f32 0.0, %v2096
  %2098 = vmatprep.mubr.f32.mxu0 0.0
  %2099 = vmatmul.mubr.f32.gmra.mrb[0].mxu0 %v856
  %v2100 = vpop.f32.mrb[0].mxu0
  %v2101 = vadd.f32 0.0, %v2100
  %v2102 = vpop.f32.mrb[0].mxu0
  %v2103 = vadd.f32 0.0, %v2102
  %2104 = vmatprep.mubr.f32.mxu0 0.0
  %2105 = vmatmul.mubr.f32.gmra.mrb[0].mxu0 %v859
  %v2106 = vpop.f32.mrb[0].mxu0
  %v2107 = vadd.f32 0.0, %v2106
  %v2108 = vpop.f32.mrb[0].mxu0
  %v2109 = vadd.f32 0.0, %v2108
  %2110 = vmatprep.mubr.f32.mxu0 0.0
  %2111 = vmatmul.mubr.f32.gmra.mrb[0].mxu0 %v862
  %v2112 = vpop.f32.mrb[0].mxu0
  %v2113 = vadd.f32 0.0, %v2112
  %v2114 = vpop.f32.mrb[0].mxu0
  %v2115 = vadd.f32 0.0, %v2114
  %2116 = vmatprep.mubr.f32.mxu0 0.0
  %2117 = vmatmul.mubr.f32.gmra.mrb[0].mxu0 %v865
  %v2118 = vpop.f32.mrb[0].mxu0
  %v2119 = vadd.f32 0.0, %v2118
  %v2120 = vpop.f32.mrb[0].mxu0
  %v2121 = vadd.f32 0.0, %v2120
  %2122 = vmatprep.mubr.f32.mxu0 0.0
  %2123 = vmatmul.mubr.f32.gmra.mrb[0].mxu0 %v867
  %v2124 = vpop.f32.mrb[0].mxu0
  %v2125 = vadd.f32 0.0, %v2124
  %v2126 = vpop.f32.mrb[0].mxu0
  %v2127 = vadd.f32 0.0, %v2126
  %2128 = vmatprep.mubr.f32.mxu0 0.0
  %2129 = vmatmul.mubr.f32.gmra.mrb[0].mxu0 %v869
  %v2130 = vpop.f32.mrb[0].mxu0
  %v2131 = vadd.f32 0.0, %v2130
  %v2132 = vpop.f32.mrb[0].mxu0
  %v2133 = vadd.f32 0.0, %v2132
  %2134 = vmatprep.mubr.f32.mxu0 0.0
  %2135 = vmatmul.mubr.f32.gmra.mrb[0].mxu0 %v871
  %v2136 = vpop.f32.mrb[0].mxu0
  %v2137 = vadd.f32 0.0, %v2136
  %v2138 = vpop.f32.mrb[0].mxu0
  %v2139 = vadd.f32 0.0, %v2138
  %2140 = vmatprep.mubr.f32.mxu0 0.0
  %2141 = vmatmul.mubr.f32.gmra.mrb[0].mxu0 %v873
  %v2142 = vpop.f32.mrb[0].mxu0
  %v2143 = vadd.f32 0.0, %v2142
  %v2144 = vpop.f32.mrb[0].mxu0
  %v2145 = vadd.f32 0.0, %v2144
  %2146 = vmatprep.mubr.f32.mxu0 0.0
  %2147 = vmatmul.mubr.f32.gmra.mrb[0].mxu0 %v875
  %v2148 = vpop.f32.mrb[0].mxu0
  %v2149 = vadd.f32 0.0, %v2148
  %v2150 = vpop.f32.mrb[0].mxu0
  %v2151 = vadd.f32 0.0, %v2150
  %2152 = vmatprep.mubr.f32.mxu0 0.0
  %2153 = vmatmul.mubr.f32.gmra.mrb[0].mxu0 %v877
  %v2154 = vpop.f32.mrb[0].mxu0
  %v2155 = vadd.f32 0.0, %v2154
  %v2156 = vpop.f32.mrb[0].mxu0
  %v2157 = vadd.f32 0.0, %v2156
  %2158 = vmatprep.mubr.f32.mxu0 0.0
  %2159 = vmatmul.mubr.f32.gmra.mrb[0].mxu0 %v879
  %v2160 = vpop.f32.mrb[0].mxu0
  %v2161 = vadd.f32 0.0, %v2160
  %v2162 = vpop.f32.mrb[0].mxu0
  %v2163 = vadd.f32 0.0, %v2162
  %2164 = vmatprep.mubr.f32.mxu0 0.0
  %2165 = vmatmul.mubr.f32.gmra.mrb[0].mxu0 %v881
  %v2166 = vpop.f32.mrb[0].mxu0
  %v2167 = vadd.f32 0.0, %v2166
  %v2168 = vpop.f32.mrb[0].mxu0
  %v2169 = vadd.f32 0.0, %v2168
  %2170 = vdwg.mxu0
  %2171 = vmatprep.subr.mxu0 %v716
  %2172 = vmatpush1.msra.mxu0 %v715
  %2173 = vmatprep.subr.mxu0 %v734
  %2174 = vmatpush1.msra.mxu0 %v733
  %2175 = vmatprep.subr.mxu0 %v752
  %2176 = vmatpush1.msra.mxu0 %v751
  %2177 = vmatprep.subr.mxu0 %v770
  %2178 = vmatpush1.msra.mxu0 %v769
  %2179 = vmatprep.subr.mxu0 %v788
  %2180 = vmatpush1.msra.mxu0 %v787
  %2181 = vmatprep.subr.mxu0 %v806
  %2182 = vmatpush1.msra.mxu0 %v805
  %2183 = vmatprep.subr.mxu0 %v824
  %2184 = vmatpush1.msra.mxu0 %v823
  %2185 = vmatprep.subr.mxu0 %v842
  %2186 = vmatpush1.msra.mxu0 %v841
  %2187 = vmatprep.subr.mxu0 0.0
  %2188 = vmatpush1.msra.mxu0 0.0
  %2189 = vmatprep.subr.mxu0 0.0
  %2190 = vmatpush1.msra.mxu0 0.0
  %2191 = vmatprep.subr.mxu0 0.0
  %2192 = vmatpush1.msra.mxu0 0.0
  %2193 = vmatprep.subr.mxu0 0.0
  %2194 = vmatpush1.msra.mxu0 0.0
  %2195 = vmatprep.subr.mxu0 0.0
  %2196 = vmatpush1.msra.mxu0 0.0
  %2197 = vmatprep.subr.mxu0 0.0
  %2198 = vmatpush1.msra.mxu0 0.0
  %2199 = vmatprep.subr.mxu0 0.0
  %2200 = vmatpush1.msra.mxu0 0.0
  %2201 = vmatprep.subr.mxu0 0.0
  %2202 = vmatpush1.msra.mxu0 0.0
  %2203 = vmatprep.subr.mxu0 0.0
  %2204 = vmatpush1.msra.mxu0 0.0
  %2205 = vmatprep.subr.mxu0 0.0
  %2206 = vmatpush1.msra.mxu0 0.0
  %2207 = vmatprep.subr.mxu0 0.0
  %2208 = vmatpush1.msra.mxu0 0.0
  %2209 = vmatprep.subr.mxu0 0.0
  %2210 = vmatpush1.msra.mxu0 0.0
  %2211 = vmatprep.subr.mxu0 0.0
  %2212 = vmatpush1.msra.mxu0 0.0
  %2213 = vmatprep.subr.mxu0 0.0
  %2214 = vmatpush1.msra.mxu0 0.0
  %2215 = vmatprep.subr.mxu0 0.0
  %2216 = vmatpush1.msra.mxu0 0.0
  %2217 = vmatprep.subr.mxu0 0.0
  %2218 = vmatpush1.msra.mxu0 0.0
  %2219 = vmatprep.subr.mxu0 0.0
  %2220 = vmatpush1.msra.mxu0 0.0
  %2221 = vmatprep.subr.mxu0 0.0
  %2222 = vmatpush1.msra.mxu0 0.0
  %2223 = vmatprep.subr.mxu0 0.0
  %2224 = vmatpush1.msra.mxu0 0.0
  %2225 = vmatprep.subr.mxu0 0.0
  %2226 = vmatpush1.msra.mxu0 0.0
  %2227 = vmatprep.subr.mxu0 0.0
  %2228 = vmatpush1.msra.mxu0 0.0
  %2229 = vmatprep.subr.mxu0 0.0
  %2230 = vmatpush1.msra.mxu0 0.0
  %2231 = vmatprep.subr.mxu0 0.0
  %2232 = vmatpush1.msra.mxu0 0.0
  %2233 = vmatprep.subr.mxu0 0.0
  %2234 = vmatpush1.msra.mxu0 0.0
  %2235 = vmatprep.mubr.f32.mxu0 0.0
  %2236 = vmatmul.mubr.f32.gmra.mrb[0].mxu0 %v844
  %v2237 = vpop.f32.mrb[0].mxu0
  %v2238 = vadd.f32 0.0, %v2237
  %v2239 = vpop.f32.mrb[0].mxu0
  %v2240 = vadd.f32 0.0, %v2239
  %2241 = vmatprep.mubr.f32.mxu0 0.0
  %2242 = vmatmul.mubr.f32.gmra.mrb[0].mxu0 %v847
  %v2243 = vpop.f32.mrb[0].mxu0
  %v2244 = vadd.f32 0.0, %v2243
  %v2245 = vpop.f32.mrb[0].mxu0
  %v2246 = vadd.f32 0.0, %v2245
  %2247 = vmatprep.mubr.f32.mxu0 0.0
  %2248 = vmatmul.mubr.f32.gmra.mrb[0].mxu0 %v850
  %v2249 = vpop.f32.mrb[0].mxu0
  %v2250 = vadd.f32 0.0, %v2249
  %v2251 = vpop.f32.mrb[0].mxu0
  %v2252 = vadd.f32 0.0, %v2251
  %2253 = vmatprep.mubr.f32.mxu0 0.0
  %2254 = vmatmul.mubr.f32.gmra.mrb[0].mxu0 %v853
  %v2255 = vpop.f32.mrb[0].mxu0
  %v2256 = vadd.f32 0.0, %v2255
  %v2257 = vpop.f32.mrb[0].mxu0
  %v2258 = vadd.f32 0.0, %v2257
  %2259 = vmatprep.mubr.f32.mxu0 0.0
  %2260 = vmatmul.mubr.f32.gmra.mrb[0].mxu0 %v856
  %v2261 = vpop.f32.mrb[0].mxu0
  %v2262 = vadd.f32 0.0, %v2261
  %v2263 = vpop.f32.mrb[0].mxu0
  %v2264 = vadd.f32 0.0, %v2263
  %2265 = vmatprep.mubr.f32.mxu0 0.0
  %2266 = vmatmul.mubr.f32.gmra.mrb[0].mxu0 %v859
  %v2267 = vpop.f32.mrb[0].mxu0
  %v2268 = vadd.f32 0.0, %v2267
  %v2269 = vpop.f32.mrb[0].mxu0
  %v2270 = vadd.f32 0.0, %v2269
  %2271 = vmatprep.mubr.f32.mxu0 0.0
  %2272 = vmatmul.mubr.f32.gmra.mrb[0].mxu0 %v862
  %v2273 = vpop.f32.mrb[0].mxu0
  %v2274 = vadd.f32 0.0, %v2273
  %v2275 = vpop.f32.mrb[0].mxu0
  %v2276 = vadd.f32 0.0, %v2275
  %2277 = vmatprep.mubr.f32.mxu0 0.0
  %2278 = vmatmul.mubr.f32.gmra.mrb[0].mxu0 %v865
  %v2279 = vpop.f32.mrb[0].mxu0
  %v2280 = vadd.f32 0.0, %v2279
  %v2281 = vpop.f32.mrb[0].mxu0
  %v2282 = vadd.f32 0.0, %v2281
  %2283 = vmatprep.mubr.f32.mxu0 0.0
  %2284 = vmatmul.mubr.f32.gmra.mrb[0].mxu0 %v867
  %v2285 = vpop.f32.mrb[0].mxu0
  %v2286 = vadd.f32 0.0, %v2285
  %v2287 = vpop.f32.mrb[0].mxu0
  %v2288 = vadd.f32 0.0, %v2287
  %2289 = vmatprep.mubr.f32.mxu0 0.0
  %2290 = vmatmul.mubr.f32.gmra.mrb[0].mxu0 %v869
  %v2291 = vpop.f32.mrb[0].mxu0
  %v2292 = vadd.f32 0.0, %v2291
  %v2293 = vpop.f32.mrb[0].mxu0
  %v2294 = vadd.f32 0.0, %v2293
  %2295 = vmatprep.mubr.f32.mxu0 0.0
  %2296 = vmatmul.mubr.f32.gmra.mrb[0].mxu0 %v871
  %v2297 = vpop.f32.mrb[0].mxu0
  %v2298 = vadd.f32 0.0, %v2297
  %v2299 = vpop.f32.mrb[0].mxu0
  %v2300 = vadd.f32 0.0, %v2299
  %2301 = vmatprep.mubr.f32.mxu0 0.0
  %2302 = vmatmul.mubr.f32.gmra.mrb[0].mxu0 %v873
  %v2303 = vpop.f32.mrb[0].mxu0
  %v2304 = vadd.f32 0.0, %v2303
  %v2305 = vpop.f32.mrb[0].mxu0
  %v2306 = vadd.f32 0.0, %v2305
  %2307 = vmatprep.mubr.f32.mxu0 0.0
  %2308 = vmatmul.mubr.f32.gmra.mrb[0].mxu0 %v875
  %v2309 = vpop.f32.mrb[0].mxu0
  %v2310 = vadd.f32 0.0, %v2309
  %v2311 = vpop.f32.mrb[0].mxu0
  %v2312 = vadd.f32 0.0, %v2311
  %2313 = vmatprep.mubr.f32.mxu0 0.0
  %2314 = vmatmul.mubr.f32.gmra.mrb[0].mxu0 %v877
  %v2315 = vpop.f32.mrb[0].mxu0
  %v2316 = vadd.f32 0.0, %v2315
  %v2317 = vpop.f32.mrb[0].mxu0
  %v2318 = vadd.f32 0.0, %v2317
  %2319 = vmatprep.mubr.f32.mxu0 0.0
  %2320 = vmatmul.mubr.f32.gmra.mrb[0].mxu0 %v879
  %v2321 = vpop.f32.mrb[0].mxu0
  %v2322 = vadd.f32 0.0, %v2321
  %v2323 = vpop.f32.mrb[0].mxu0
  %v2324 = vadd.f32 0.0, %v2323
  %2325 = vmatprep.mubr.f32.mxu0 0.0
  %2326 = vmatmul.mubr.f32.gmra.mrb[0].mxu0 %v881
  %v2327 = vpop.f32.mrb[0].mxu0
  %v2328 = vadd.f32 0.0, %v2327
  %v2329 = vpop.f32.mrb[0].mxu0
  %v2330 = vadd.f32 0.0, %v2329
  %2331 = vdwg.mxu0
  %v2332 = vld [vmem:[%s3] sm:$0x77]
  %v2333 = vld [vmem:[%s3 + $0x8] sm:$0x77]
  %v2334 = vld [vmem:[%s3 + $0x10] sm:$0x7]
  %v2335 = vld [vmem:[%s4] sm:$0x7]
  %2337 = vset.pattern.permute.xlu0 0
  %2338 = vperm.xlu0 %2337, %v2335
  %v2339 = vpop.permute.xlu0 %2338
  %v2344 = vcombine.high %v2332, %v2332
  %v2345 = vcombine.high %v2333, %v2333
  %v2348 = vsel %vm217, %v2334, 0
  %2350 = vmatprep.subr.mxu0 %v952
  %2351 = vmatpush1.msra.mxu0 %v950
  %2352 = vmatprep.subr.mxu0 %v958
  %2353 = vmatpush1.msra.mxu0 %v956
  %2354 = vmatprep.subr.mxu0 %v964
  %2355 = vmatpush1.msra.mxu0 %v962
  %2356 = vmatprep.subr.mxu0 %v970
  %2357 = vmatpush1.msra.mxu0 %v968
  %2358 = vmatprep.subr.mxu0 %v976
  %2359 = vmatpush1.msra.mxu0 %v974
  %2360 = vmatprep.subr.mxu0 %v982
  %2361 = vmatpush1.msra.mxu0 %v980
  %2362 = vmatprep.subr.mxu0 %v988
  %2363 = vmatpush1.msra.mxu0 %v986
  %2364 = vmatprep.subr.mxu0 %v994
  %2365 = vmatpush1.msra.mxu0 %v992
  %2366 = vmatprep.subr.mxu0 %v1113
  %2367 = vmatpush1.msra.mxu0 %v1111
  %2368 = vmatprep.subr.mxu0 %v1119
  %2369 = vmatpush1.msra.mxu0 %v1117
  %2370 = vmatprep.subr.mxu0 %v1125
  %2371 = vmatpush1.msra.mxu0 %v1123
  %2372 = vmatprep.subr.mxu0 %v1131
  %2373 = vmatpush1.msra.mxu0 %v1129
  %2374 = vmatprep.subr.mxu0 %v1137
  %2375 = vmatpush1.msra.mxu0 %v1135
  %2376 = vmatprep.subr.mxu0 %v1143
  %2377 = vmatpush1.msra.mxu0 %v1141
  %2378 = vmatprep.subr.mxu0 %v1149
  %2379 = vmatpush1.msra.mxu0 %v1147
  %2380 = vmatprep.subr.mxu0 %v1155
  %2381 = vmatpush1.msra.mxu0 %v1153
  %2382 = vmatprep.subr.mxu0 %v1274
  %2383 = vmatpush1.msra.mxu0 %v1272
  %2384 = vmatprep.subr.mxu0 %v1280
  %2385 = vmatpush1.msra.mxu0 %v1278
  %2386 = vmatprep.subr.mxu0 %v1286
  %2387 = vmatpush1.msra.mxu0 %v1284
  %2388 = vmatprep.subr.mxu0 %v1292
  %2389 = vmatpush1.msra.mxu0 %v1290
  %2390 = vmatprep.subr.mxu0 %v1298
  %2391 = vmatpush1.msra.mxu0 %v1296
  %2392 = vmatprep.subr.mxu0 %v1304
  %2393 = vmatpush1.msra.mxu0 %v1302
  %2394 = vmatprep.subr.mxu0 %v1310
  %2395 = vmatpush1.msra.mxu0 %v1308
  %2396 = vmatprep.subr.mxu0 %v1316
  %2397 = vmatpush1.msra.mxu0 %v1314
  %2398 = vmatprep.subr.mxu0 %v1435
  %2399 = vmatpush1.msra.mxu0 %v1433
  %2400 = vmatprep.subr.mxu0 %v1441
  %2401 = vmatpush1.msra.mxu0 %v1439
  %2402 = vmatprep.subr.mxu0 %v1447
  %2403 = vmatpush1.msra.mxu0 %v1445
  %2404 = vmatprep.subr.mxu0 %v1453
  %2405 = vmatpush1.msra.mxu0 %v1451
  %2406 = vmatprep.subr.mxu0 %v1459
  %2407 = vmatpush1.msra.mxu0 %v1457
  %2408 = vmatprep.subr.mxu0 %v1465
  %2409 = vmatpush1.msra.mxu0 %v1463
  %2410 = vmatprep.subr.mxu0 %v1471
  %2411 = vmatpush1.msra.mxu0 %v1469
  %2412 = vmatprep.subr.mxu0 %v1477
  %2413 = vmatpush1.msra.mxu0 %v1475
  %2414 = vmatprep.mubr.f32.mxu0 %v2344
  %2415 = vmatmul.mubr.f32.gmra.mrb[0].mxu0 %v2332
  %v2416 = vpop.f32.mrb[0].mxu0
  %v2417 = vadd.f32 %v2339, %v2416
  %v2418 = vpop.f32.mrb[0].mxu0
  %v2419 = vadd.f32 %v2339, %v2418
  %2420 = vdwg.mxu0
  %2421 = vmatprep.subr.mxu0 %v1596
  %2422 = vmatpush1.msra.mxu0 %v1594
  %2423 = vmatprep.subr.mxu0 %v1602
  %2424 = vmatpush1.msra.mxu0 %v1600
  %2425 = vmatprep.subr.mxu0 %v1608
  %2426 = vmatpush1.msra.mxu0 %v1606
  %2427 = vmatprep.subr.mxu0 %v1614
  %2428 = vmatpush1.msra.mxu0 %v1612
  %2429 = vmatprep.subr.mxu0 %v1620
  %2430 = vmatpush1.msra.mxu0 %v1618
  %2431 = vmatprep.subr.mxu0 %v1626
  %2432 = vmatpush1.msra.mxu0 %v1624
  %2433 = vmatprep.subr.mxu0 %v1632
  %2434 = vmatpush1.msra.mxu0 %v1630
  %2435 = vmatprep.subr.mxu0 %v1638
  %2436 = vmatpush1.msra.mxu0 %v1636
  %2437 = vmatprep.subr.mxu0 %v1757
  %2438 = vmatpush1.msra.mxu0 %v1755
  %2439 = vmatprep.subr.mxu0 %v1763
  %2440 = vmatpush1.msra.mxu0 %v1761
  %2441 = vmatprep.subr.mxu0 %v1769
  %2442 = vmatpush1.msra.mxu0 %v1767
  %2443 = vmatprep.subr.mxu0 %v1775
  %2444 = vmatpush1.msra.mxu0 %v1773
  %2445 = vmatprep.subr.mxu0 %v1781
  %2446 = vmatpush1.msra.mxu0 %v1779
  %2447 = vmatprep.subr.mxu0 %v1787
  %2448 = vmatpush1.msra.mxu0 %v1785
  %2449 = vmatprep.subr.mxu0 %v1793
  %2450 = vmatpush1.msra.mxu0 %v1791
  %2451 = vmatprep.subr.mxu0 %v1799
  %2452 = vmatpush1.msra.mxu0 %v1797
  %2453 = vmatprep.subr.mxu0 %v1918
  %2454 = vmatpush1.msra.mxu0 %v1916
  %2455 = vmatprep.subr.mxu0 %v1924
  %2456 = vmatpush1.msra.mxu0 %v1922
  %2457 = vmatprep.subr.mxu0 %v1930
  %2458 = vmatpush1.msra.mxu0 %v1928
  %2459 = vmatprep.subr.mxu0 %v1936
  %2460 = vmatpush1.msra.mxu0 %v1934
  %2461 = vmatprep.subr.mxu0 %v1942
  %2462 = vmatpush1.msra.mxu0 %v1940
  %2463 = vmatprep.subr.mxu0 %v1948
  %2464 = vmatpush1.msra.mxu0 %v1946
  %2465 = vmatprep.subr.mxu0 %v1954
  %2466 = vmatpush1.msra.mxu0 %v1952
  %2467 = vmatprep.subr.mxu0 %v1960
  %2468 = vmatpush1.msra.mxu0 %v1958
  %2469 = vmatprep.subr.mxu0 %v2079
  %2470 = vmatpush1.msra.mxu0 %v2077
  %2471 = vmatprep.subr.mxu0 %v2085
  %2472 = vmatpush1.msra.mxu0 %v2083
  %2473 = vmatprep.subr.mxu0 %v2091
  %2474 = vmatpush1.msra.mxu0 %v2089
  %2475 = vmatprep.subr.mxu0 %v2097
  %2476 = vmatpush1.msra.mxu0 %v2095
  %2477 = vmatprep.subr.mxu0 %v2103
  %2478 = vmatpush1.msra.mxu0 %v2101
  %2479 = vmatprep.subr.mxu0 %v2109
  %2480 = vmatpush1.msra.mxu0 %v2107
  %2481 = vmatprep.subr.mxu0 %v2115
  %2482 = vmatpush1.msra.mxu0 %v2113
  %2483 = vmatprep.subr.mxu0 %v2121
  %2484 = vmatpush1.msra.mxu0 %v2119
  %2485 = vmatprep.mubr.f32.mxu0 %v2345
  %2486 = vmatmul.mubr.f32.gmra.mrb[0].mxu0 %v2333
  %v2487 = vpop.f32.mrb[0].mxu0
  %v2488 = vadd.f32 %v2417, %v2487
  %v2489 = vpop.f32.mrb[0].mxu0
  %v2490 = vadd.f32 %v2419, %v2489
  %2491 = vdwg.mxu0
  %2492 = vmatprep.subr.mxu0 %v2240
  %2493 = vmatpush1.msra.mxu0 %v2238
  %2494 = vmatprep.subr.mxu0 %v2246
  %2495 = vmatpush1.msra.mxu0 %v2244
  %2496 = vmatprep.subr.mxu0 %v2252
  %2497 = vmatpush1.msra.mxu0 %v2250
  %2498 = vmatprep.subr.mxu0 %v2258
  %2499 = vmatpush1.msra.mxu0 %v2256
  %2500 = vmatprep.subr.mxu0 %v2264
  %2501 = vmatpush1.msra.mxu0 %v2262
  %2502 = vmatprep.subr.mxu0 %v2270
  %2503 = vmatpush1.msra.mxu0 %v2268
  %2504 = vmatprep.subr.mxu0 %v2276
  %2505 = vmatpush1.msra.mxu0 %v2274
  %2506 = vmatprep.subr.mxu0 %v2282
  %2507 = vmatpush1.msra.mxu0 %v2280
  %2508 = vmatprep.subr.mxu0 0.0
  %2509 = vmatpush1.msra.mxu0 0.0
  %2510 = vmatprep.subr.mxu0 0.0
  %2511 = vmatpush1.msra.mxu0 0.0
  %2512 = vmatprep.subr.mxu0 0.0
  %2513 = vmatpush1.msra.mxu0 0.0
  %2514 = vmatprep.subr.mxu0 0.0
  %2515 = vmatpush1.msra.mxu0 0.0
  %2516 = vmatprep.subr.mxu0 0.0
  %2517 = vmatpush1.msra.mxu0 0.0
  %2518 = vmatprep.subr.mxu0 0.0
  %2519 = vmatpush1.msra.mxu0 0.0
  %2520 = vmatprep.subr.mxu0 0.0
  %2521 = vmatpush1.msra.mxu0 0.0
  %2522 = vmatprep.subr.mxu0 0.0
  %2523 = vmatpush1.msra.mxu0 0.0
  %2524 = vmatprep.subr.mxu0 0.0
  %2525 = vmatpush1.msra.mxu0 0.0
  %2526 = vmatprep.subr.mxu0 0.0
  %2527 = vmatpush1.msra.mxu0 0.0
  %2528 = vmatprep.subr.mxu0 0.0
  %2529 = vmatpush1.msra.mxu0 0.0
  %2530 = vmatprep.subr.mxu0 0.0
  %2531 = vmatpush1.msra.mxu0 0.0
  %2532 = vmatprep.subr.mxu0 0.0
  %2533 = vmatpush1.msra.mxu0 0.0
  %2534 = vmatprep.subr.mxu0 0.0
  %2535 = vmatpush1.msra.mxu0 0.0
  %2536 = vmatprep.subr.mxu0 0.0
  %2537 = vmatpush1.msra.mxu0 0.0
  %2538 = vmatprep.subr.mxu0 0.0
  %2539 = vmatpush1.msra.mxu0 0.0
  %2540 = vmatprep.subr.mxu0 0.0
  %2541 = vmatpush1.msra.mxu0 0.0
  %2542 = vmatprep.subr.mxu0 0.0
  %2543 = vmatpush1.msra.mxu0 0.0
  %2544 = vmatprep.subr.mxu0 0.0
  %2545 = vmatpush1.msra.mxu0 0.0
  %2546 = vmatprep.subr.mxu0 0.0
  %2547 = vmatpush1.msra.mxu0 0.0
  %2548 = vmatprep.subr.mxu0 0.0
  %2549 = vmatpush1.msra.mxu0 0.0
  %2550 = vmatprep.subr.mxu0 0.0
  %2551 = vmatpush1.msra.mxu0 0.0
  %2552 = vmatprep.subr.mxu0 0.0
  %2553 = vmatpush1.msra.mxu0 0.0
  %2554 = vmatprep.subr.mxu0 0.0
  %2555 = vmatpush1.msra.mxu0 0.0
  %2556 = vmatprep.mubr.f32.mxu0 0.0
  %2557 = vmatmul.mubr.f32.gmra.mrb[0].mxu0 %v2348
  %v2558 = vpop.f32.mrb[0].mxu0
  %v2559 = vadd.f32 %v2488, %v2558
  %v2560 = vpop.f32.mrb[0].mxu0
  %v2561 = vadd.f32 %v2490, %v2560
  %2562 = vdwg.mxu0
  %2563 = vmatprep.subr.mxu0 %v1000
  %2564 = vmatpush1.msra.mxu0 %v998
  %2565 = vmatprep.subr.mxu0 %v1006
  %2566 = vmatpush1.msra.mxu0 %v1004
  %2567 = vmatprep.subr.mxu0 %v1012
  %2568 = vmatpush1.msra.mxu0 %v1010
  %2569 = vmatprep.subr.mxu0 %v1018
  %2570 = vmatpush1.msra.mxu0 %v1016
  %2571 = vmatprep.subr.mxu0 %v1024
  %2572 = vmatpush1.msra.mxu0 %v1022
  %2573 = vmatprep.subr.mxu0 %v1030
  %2574 = vmatpush1.msra.mxu0 %v1028
  %2575 = vmatprep.subr.mxu0 %v1036
  %2576 = vmatpush1.msra.mxu0 %v1034
  %2577 = vmatprep.subr.mxu0 %v1042
  %2578 = vmatpush1.msra.mxu0 %v1040
  %2579 = vmatprep.subr.mxu0 %v1161
  %2580 = vmatpush1.msra.mxu0 %v1159
  %2581 = vmatprep.subr.mxu0 %v1167
  %2582 = vmatpush1.msra.mxu0 %v1165
  %2583 = vmatprep.subr.mxu0 %v1173
  %2584 = vmatpush1.msra.mxu0 %v1171
  %2585 = vmatprep.subr.mxu0 %v1179
  %2586 = vmatpush1.msra.mxu0 %v1177
  %2587 = vmatprep.subr.mxu0 %v1185
  %2588 = vmatpush1.msra.mxu0 %v1183
  %2589 = vmatprep.subr.mxu0 %v1191
  %2590 = vmatpush1.msra.mxu0 %v1189
  %2591 = vmatprep.subr.mxu0 %v1197
  %2592 = vmatpush1.msra.mxu0 %v1195
  %2593 = vmatprep.subr.mxu0 %v1203
  %2594 = vmatpush1.msra.mxu0 %v1201
  %2595 = vmatprep.subr.mxu0 %v1322
  %2596 = vmatpush1.msra.mxu0 %v1320
  %2597 = vmatprep.subr.mxu0 %v1328
  %2598 = vmatpush1.msra.mxu0 %v1326
  %2599 = vmatprep.subr.mxu0 %v1334
  %2600 = vmatpush1.msra.mxu0 %v1332
  %2601 = vmatprep.subr.mxu0 %v1340
  %2602 = vmatpush1.msra.mxu0 %v1338
  %2603 = vmatprep.subr.mxu0 %v1346
  %2604 = vmatpush1.msra.mxu0 %v1344
  %2605 = vmatprep.subr.mxu0 %v1352
  %2606 = vmatpush1.msra.mxu0 %v1350
  %2607 = vmatprep.subr.mxu0 %v1358
  %2608 = vmatpush1.msra.mxu0 %v1356
  %2609 = vmatprep.subr.mxu0 %v1364
  %2610 = vmatpush1.msra.mxu0 %v1362
  %2611 = vmatprep.subr.mxu0 %v1483
  %2612 = vmatpush1.msra.mxu0 %v1481
  %2613 = vmatprep.subr.mxu0 %v1489
  %2614 = vmatpush1.msra.mxu0 %v1487
  %2615 = vmatprep.subr.mxu0 %v1495
  %2616 = vmatpush1.msra.mxu0 %v1493
  %2617 = vmatprep.subr.mxu0 %v1501
  %2618 = vmatpush1.msra.mxu0 %v1499
  %2619 = vmatprep.subr.mxu0 %v1507
  %2620 = vmatpush1.msra.mxu0 %v1505
  %2621 = vmatprep.subr.mxu0 %v1513
  %2622 = vmatpush1.msra.mxu0 %v1511
  %2623 = vmatprep.subr.mxu0 %v1519
  %2624 = vmatpush1.msra.mxu0 %v1517
  %2625 = vmatprep.subr.mxu0 %v1525
  %2626 = vmatpush1.msra.mxu0 %v1523
  %2627 = vmatprep.mubr.f32.mxu0 %v2344
  %2628 = vmatmul.mubr.f32.gmra.mrb[0].mxu0 %v2332
  %v2629 = vpop.f32.mrb[0].mxu0
  %v2630 = vadd.f32 %v2339, %v2629
  %v2631 = vpop.f32.mrb[0].mxu0
  %v2632 = vadd.f32 %v2339, %v2631
  %2633 = vdwg.mxu0
  %2634 = vmatprep.subr.mxu0 %v1644
  %2635 = vmatpush1.msra.mxu0 %v1642
  %2636 = vmatprep.subr.mxu0 %v1650
  %2637 = vmatpush1.msra.mxu0 %v1648
  %2638 = vmatprep.subr.mxu0 %v1656
  %2639 = vmatpush1.msra.mxu0 %v1654
  %2640 = vmatprep.subr.mxu0 %v1662
  %2641 = vmatpush1.msra.mxu0 %v1660
  %2642 = vmatprep.subr.mxu0 %v1668
  %2643 = vmatpush1.msra.mxu0 %v1666
  %2644 = vmatprep.subr.mxu0 %v1674
  %2645 = vmatpush1.msra.mxu0 %v1672
  %2646 = vmatprep.subr.mxu0 %v1680
  %2647 = vmatpush1.msra.mxu0 %v1678
  %2648 = vmatprep.subr.mxu0 %v1686
  %2649 = vmatpush1.msra.mxu0 %v1684
  %2650 = vmatprep.subr.mxu0 %v1805
  %2651 = vmatpush1.msra.mxu0 %v1803
  %2652 = vmatprep.subr.mxu0 %v1811
  %2653 = vmatpush1.msra.mxu0 %v1809
  %2654 = vmatprep.subr.mxu0 %v1817
  %2655 = vmatpush1.msra.mxu0 %v1815
  %2656 = vmatprep.subr.mxu0 %v1823
  %2657 = vmatpush1.msra.mxu0 %v1821
  %2658 = vmatprep.subr.mxu0 %v1829
  %2659 = vmatpush1.msra.mxu0 %v1827
  %2660 = vmatprep.subr.mxu0 %v1835
  %2661 = vmatpush1.msra.mxu0 %v1833
  %2662 = vmatprep.subr.mxu0 %v1841
  %2663 = vmatpush1.msra.mxu0 %v1839
  %2664 = vmatprep.subr.mxu0 %v1847
  %2665 = vmatpush1.msra.mxu0 %v1845
  %2666 = vmatprep.subr.mxu0 %v1966
  %2667 = vmatpush1.msra.mxu0 %v1964
  %2668 = vmatprep.subr.mxu0 %v1972
  %2669 = vmatpush1.msra.mxu0 %v1970
  %2670 = vmatprep.subr.mxu0 %v1978
  %2671 = vmatpush1.msra.mxu0 %v1976
  %2672 = vmatprep.subr.mxu0 %v1984
  %2673 = vmatpush1.msra.mxu0 %v1982
  %2674 = vmatprep.subr.mxu0 %v1990
  %2675 = vmatpush1.msra.mxu0 %v1988
  %2676 = vmatprep.subr.mxu0 %v1996
  %2677 = vmatpush1.msra.mxu0 %v1994
  %2678 = vmatprep.subr.mxu0 %v2002
  %2679 = vmatpush1.msra.mxu0 %v2000
  %2680 = vmatprep.subr.mxu0 %v2008
  %2681 = vmatpush1.msra.mxu0 %v2006
  %2682 = vmatprep.subr.mxu0 %v2127
  %2683 = vmatpush1.msra.mxu0 %v2125
  %2684 = vmatprep.subr.mxu0 %v2133
  %2685 = vmatpush1.msra.mxu0 %v2131
  %2686 = vmatprep.subr.mxu0 %v2139
  %2687 = vmatpush1.msra.mxu0 %v2137
  %2688 = vmatprep.subr.mxu0 %v2145
  %2689 = vmatpush1.msra.mxu0 %v2143
  %2690 = vmatprep.subr.mxu0 %v2151
  %2691 = vmatpush1.msra.mxu0 %v2149
  %2692 = vmatprep.subr.mxu0 %v2157
  %2693 = vmatpush1.msra.mxu0 %v2155
  %2694 = vmatprep.subr.mxu0 %v2163
  %2695 = vmatpush1.msra.mxu0 %v2161
  %2696 = vmatprep.subr.mxu0 %v2169
  %2697 = vmatpush1.msra.mxu0 %v2167
  %2698 = vmatprep.mubr.f32.mxu0 %v2345
  %2699 = vmatmul.mubr.f32.gmra.mrb[0].mxu0 %v2333
  %v2700 = vpop.f32.mrb[0].mxu0
  %v2701 = vadd.f32 %v2630, %v2700
  %v2702 = vpop.f32.mrb[0].mxu0
  %v2703 = vadd.f32 %v2632, %v2702
  %2704 = vdwg.mxu0
  %2705 = vmatprep.subr.mxu0 %v2288
  %2706 = vmatpush1.msra.mxu0 %v2286
  %2707 = vmatprep.subr.mxu0 %v2294
  %2708 = vmatpush1.msra.mxu0 %v2292
  %2709 = vmatprep.subr.mxu0 %v2300
  %2710 = vmatpush1.msra.mxu0 %v2298
  %2711 = vmatprep.subr.mxu0 %v2306
  %2712 = vmatpush1.msra.mxu0 %v2304
  %2713 = vmatprep.subr.mxu0 %v2312
  %2714 = vmatpush1.msra.mxu0 %v2310
  %2715 = vmatprep.subr.mxu0 %v2318
  %2716 = vmatpush1.msra.mxu0 %v2316
  %2717 = vmatprep.subr.mxu0 %v2324
  %2718 = vmatpush1.msra.mxu0 %v2322
  %2719 = vmatprep.subr.mxu0 %v2330
  %2720 = vmatpush1.msra.mxu0 %v2328
  %2721 = vmatprep.subr.mxu0 0.0
  %2722 = vmatpush1.msra.mxu0 0.0
  %2723 = vmatprep.subr.mxu0 0.0
  %2724 = vmatpush1.msra.mxu0 0.0
  %2725 = vmatprep.subr.mxu0 0.0
  %2726 = vmatpush1.msra.mxu0 0.0
  %2727 = vmatprep.subr.mxu0 0.0
  %2728 = vmatpush1.msra.mxu0 0.0
  %2729 = vmatprep.subr.mxu0 0.0
  %2730 = vmatpush1.msra.mxu0 0.0
  %2731 = vmatprep.subr.mxu0 0.0
  %2732 = vmatpush1.msra.mxu0 0.0
  %2733 = vmatprep.subr.mxu0 0.0
  %2734 = vmatpush1.msra.mxu0 0.0
  %2735 = vmatprep.subr.mxu0 0.0
  %2736 = vmatpush1.msra.mxu0 0.0
  %2737 = vmatprep.subr.mxu0 0.0
  %2738 = vmatpush1.msra.mxu0 0.0
  %2739 = vmatprep.subr.mxu0 0.0
  %2740 = vmatpush1.msra.mxu0 0.0
  %2741 = vmatprep.subr.mxu0 0.0
  %2742 = vmatpush1.msra.mxu0 0.0
  %2743 = vmatprep.subr.mxu0 0.0
  %2744 = vmatpush1.msra.mxu0 0.0
  %2745 = vmatprep.subr.mxu0 0.0
  %2746 = vmatpush1.msra.mxu0 0.0
  %2747 = vmatprep.subr.mxu0 0.0
  %2748 = vmatpush1.msra.mxu0 0.0
  %2749 = vmatprep.subr.mxu0 0.0
  %2750 = vmatpush1.msra.mxu0 0.0
  %2751 = vmatprep.subr.mxu0 0.0
  %2752 = vmatpush1.msra.mxu0 0.0
  %2753 = vmatprep.subr.mxu0 0.0
  %2754 = vmatpush1.msra.mxu0 0.0
  %2755 = vmatprep.subr.mxu0 0.0
  %2756 = vmatpush1.msra.mxu0 0.0
  %2757 = vmatprep.subr.mxu0 0.0
  %2758 = vmatpush1.msra.mxu0 0.0
  %2759 = vmatprep.subr.mxu0 0.0
  %2760 = vmatpush1.msra.mxu0 0.0
  %2761 = vmatprep.subr.mxu0 0.0
  %2762 = vmatpush1.msra.mxu0 0.0
  %2763 = vmatprep.subr.mxu0 0.0
  %2764 = vmatpush1.msra.mxu0 0.0
  %2765 = vmatprep.subr.mxu0 0.0
  %2766 = vmatpush1.msra.mxu0 0.0
  %2767 = vmatprep.subr.mxu0 0.0
  %2768 = vmatpush1.msra.mxu0 0.0
  %2769 = vmatprep.mubr.f32.mxu0 0.0
  %2770 = vmatmul.mubr.f32.gmra.mrb[0].mxu0 %v2348
  %v2771 = vpop.f32.mrb[0].mxu0
  %v2772 = vadd.f32 %v2701, %v2771
  %v2773 = vpop.f32.mrb[0].mxu0
  %v2774 = vadd.f32 %v2703, %v2773
  %2775 = vdwg.mxu0
  %v2776 = vsel %vm108, %v2559, 0.0
  %v2777 = vsel %vm108, %v2561, 0.0
  %v2778 = vadd.f32 %v2776, %v2777
  %2779 = vadd.xlane.f32.xlu0 %v2778
  %v2780 = vpop.xlane.xlu0 %2779
  %v2781 = vrcp.pop 256.0
  %v2782 = vmul.f32 %v2780, %v2781
  %v2783 = vsub.f32 %v2559, %v2782
  %v2784 = vsub.f32 %v2561, %v2782
  %v2785 = vmul.f32 %v2783, %v2783
  %v2786 = vmul.f32 %v2784, %v2784
  %v2787 = vsel %vm108, %v2785, 0.0
  %v2788 = vsel %vm108, %v2786, 0.0
  %v2789 = vadd.f32 %v2787, %v2788
  %2790 = vadd.xlane.f32.xlu0 %v2789
  %v2791 = vpop.xlane.xlu0 %2790
  %v2792 = vmul.f32 %v2791, %v2781
  %v2793 = vadd.f32 %v2792, 1e-05
  %v2794 = vrsqrt.pop %v2793
  %v2795 = vmul.f32 %v2783, %v2794
  %v2796 = vmul.f32 %v2784, %v2794
  %v2797 = vxor.u32 %v2795, 2147483648
  %v2798 = vxor.u32 %v2796, 2147483648
  %v2799 = vmul.f32 %v2797, 1.442695
  %v2800 = vpow.pop %v2799
  %v2801 = vmul.f32 %v2798, 1.442695
  %v2802 = vpow.pop %v2801
  %v2803 = vadd.f32 %v2800, 1.0
  %v2804 = vadd.f32 %v2802, 1.0
  %v2805 = vrcp.pop %v2803
  %v2806 = vmul.f32 1.0, %v2805
  %v2807 = vrcp.pop %v2804
  %v2808 = vmul.f32 1.0, %v2807
  %v2809 = vmul.f32 %v2795, %v2806
  %v2810 = vmul.f32 %v2796, %v2808
  %v2813 = vcombine.low %v2809, %v2810
  %2815 = vst [vmem:[%s6] sm:$0x77] %v2813
  %v2816 = vsel %vm108, %v2772, 0.0
  %v2817 = vsel %vm108, %v2774, 0.0
  %v2818 = vadd.f32 %v2816, %v2817
  %2819 = vadd.xlane.f32.xlu0 %v2818
  %v2820 = vpop.xlane.xlu0 %2819
  %v2821 = vmul.f32 %v2820, %v2781
  %v2822 = vsub.f32 %v2772, %v2821
  %v2823 = vsub.f32 %v2774, %v2821
  %v2824 = vmul.f32 %v2822, %v2822
  %v2825 = vmul.f32 %v2823, %v2823
  %v2826 = vsel %vm108, %v2824, 0.0
  %v2827 = vsel %vm108, %v2825, 0.0
  %v2828 = vadd.f32 %v2826, %v2827
  %2829 = vadd.xlane.f32.xlu0 %v2828
  %v2830 = vpop.xlane.xlu0 %2829
  %v2831 = vmul.f32 %v2830, %v2781
  %v2832 = vadd.f32 %v2831, 1e-05
  %v2833 = vrsqrt.pop %v2832
  %v2834 = vmul.f32 %v2822, %v2833
  %v2835 = vmul.f32 %v2823, %v2833
  %v2836 = vxor.u32 %v2834, 2147483648
  %v2837 = vxor.u32 %v2835, 2147483648
  %v2838 = vmul.f32 %v2836, 1.442695
  %v2839 = vpow.pop %v2838
  %v2840 = vmul.f32 %v2837, 1.442695
  %v2841 = vpow.pop %v2840
  %v2842 = vadd.f32 %v2839, 1.0
  %v2843 = vadd.f32 %v2841, 1.0
  %v2844 = vrcp.pop %v2842
  %v2845 = vmul.f32 1.0, %v2844
  %v2846 = vrcp.pop %v2843
  %v2847 = vmul.f32 1.0, %v2846
  %v2848 = vmul.f32 %v2834, %v2845
  %v2849 = vmul.f32 %v2835, %v2847
  %v2852 = vcombine.low %v2848, %v2849
  %s2854 = scalar_lea.vmem %s6, 8
  %2855 = vst [vmem:[%s2854] sm:$0x77] %v2852
  // Predicated region
  $region26: #{autoencoder_forward.1} parent=0 // pred_check
    _
  $region27: #{autoencoder_forward.1} parent=0 // pred_check_branch
    %2857 = sbr.rel (0) target = $region29
  $region28: #{autoencoder_forward.1} parent=0 // pred_region
    _
  $region29: #{autoencoder_forward.1} parent=0 // pred_fallthru
    _
  // Predicated region
  $region30: #{autoencoder_forward.1} parent=0 // pred_check
    _
  $region31: #{autoencoder_forward.1} parent=0 // pred_check_branch
    %2859 = sbr.rel (0) target = $region33
  $region32: #{autoencoder_forward.1} parent=0 // pred_region
    _
  $region33: #{autoencoder_forward.1} parent=0 // pred_fallthru
    _

</llo_original>
